<compile_context>
chip_gen: v7x
topology: tpu7x:2x2x1
jax: 0.10.0
libtpu: 0.0.40
codegen_flags: <defaults>
</compile_context>

<pallas_src>
import math
import jax
import jax.numpy as jnp
from jax.experimental import pallas as pl
from jax.experimental.pallas import tpu as pltpu

F32 = jnp.float32


# ----------------------------- in-kernel helpers -----------------------------

def _layer_norm(x, w, b, eps=1e-5):
    mu = jnp.mean(x, axis=-1, keepdims=True)
    var = jnp.mean((x - mu) ** 2, axis=-1, keepdims=True)
    return (x - mu) * jax.lax.rsqrt(var + eps) * w + b


def _new_gelu(x):
    # x*x*x (no pow); keep elementwise math in f32 (v5e has no bf16 VPU/EUP).
    return 0.5 * x * (1.0 + jnp.tanh(
        math.sqrt(2.0 / math.pi) * (x + 0.044715 * x * x * x)))


def _mm(a, w):
    # f32 operands, f32 accumulation on the MXU.
    return jnp.dot(a, w, preferred_element_type=F32)


# --------------------------------- the kernel --------------------------------

def _gpts_kernel(times_ref, data_ref, mask_ref,
                 w_te_ref, b_te_ref,
                 w_in_d_ref, w_in_m_ref, w_in_t_ref, b_in_ref,
                 ln1_w_ref, ln1_b_ref,
                 wq_ref, wk_ref, wv_ref, bq_ref, bk_ref, bv_ref,
                 wp_ref, bp_ref,
                 ln2_w_ref, ln2_b_ref,
                 fc_w_ref, fc_b_ref, mp_w_ref, mp_b_ref,
                 lnf_w_ref, lnf_b_ref,
                 out_ref, x_ref):
    l = pl.program_id(1)
    n_layers = pl.num_programs(1)

    T = data_ref.shape[1]
    nhead = wp_ref.shape[1]
    hd = wp_ref.shape[2]
    scale = 1.0 / math.sqrt(hd)

    # ---- first layer step: time embedding + input projection ----
    @pl.when(l == 0)
    def _init():
        t_log = jnp.log(times_ref[0] + 1e-5)                 # (T, 1)
        te = t_log * w_te_ref[...] + b_te_ref[...]           # (T, E) on the VPU
        col = jax.lax.broadcasted_iota(jnp.int32, te.shape, 1)
        te = jnp.where(col == 0, te, jnp.sin(te))            # col0 linear, rest sin()
        x0 = (_mm(data_ref[0], w_in_d_ref[...])
              + _mm(mask_ref[0], w_in_m_ref[...])
              + _mm(te, w_in_t_ref[...])
              + b_in_ref[...])                               # (T, C) f32
        x_ref[...] = x0

    x = x_ref[...]                                           # residual stream, f32

    # additive causal mask (cheap iota, recomputed per grid step)
    row = jax.lax.broadcasted_iota(jnp.int32, (T, T), 0)
    col = jax.lax.broadcasted_iota(jnp.int32, (T, T), 1)
    causal_add = jnp.where(col <= row, 0.0, -1e30).astype(F32)

    # ---- causal self-attention (heads batched in one einsum) ----
    h = _layer_norm(x, ln1_w_ref[0], ln1_b_ref[0])
    q = _mm(h, wq_ref[0]) + bq_ref[0]                        # (T, C)
    k = _mm(h, wk_ref[0]) + bk_ref[0]
    v = _mm(h, wv_ref[0]) + bv_ref[0]
    qh = jnp.swapaxes(q.reshape(T, nhead, hd), 0, 1)         # (H, T, hd)
    kh = jnp.swapaxes(k.reshape(T, nhead, hd), 0, 1)
    vh = jnp.swapaxes(v.reshape(T, nhead, hd), 0, 1)

    s = jnp.einsum('htd,hsd->hts', qh, kh,
                   preferred_element_type=F32) * scale + causal_add[None]
    m = jnp.max(s, axis=-1, keepdims=True)
    e = jnp.exp(s - m)
    denom = jnp.sum(e, axis=-1, keepdims=True)
    p = e * pl.reciprocal(denom, approx=True)                # EUP reciprocal
    o = jnp.einsum('hts,hsd->htd', p, vh,
                   preferred_element_type=F32)               # (H, T, hd)

    # per-head output projection, summed over heads == concat-then-proj
    yh = jnp.einsum('htd,hdc->htc', o, wp_ref[0],
                    preferred_element_type=F32)              # (H, T, C)
    x = x + jnp.sum(yh, axis=0) + bp_ref[0]

    # ---- MLP ----
    h = _layer_norm(x, ln2_w_ref[0], ln2_b_ref[0])
    h = _mm(h, fc_w_ref[0]) + fc_b_ref[0]                    # (T, 4C)
    h = _new_gelu(h)
    h = _mm(h, mp_w_ref[0]) + mp_b_ref[0]                    # (T, C)
    x = x + h

    x_ref[...] = x

    # ---- final layer norm + output store ----
    @pl.when(l == n_layers - 1)
    def _finalize():
        out_ref[0] = _layer_norm(x, lnf_w_ref[...], lnf_b_ref[...])


# --------------------------------- wrapper ------------------------------------

def gpts_forward(times_in, data_in, mask_in, params, nhead):
    B, T, V = data_in.shape
    w_in = params["w_in"]
    C = w_in.shape[1]
    L = params["ln1_w"].shape[0]
    hd = C // nhead

    times3 = times_in[..., None].astype(F32)                 # (B, T, 1)

    # --- wrapper-side weight repacking (trace-time, cheap) ---
    w_te = jnp.concatenate([params["w_lin"], params["w_per"]], axis=1)   # (1, E)
    b_te = jnp.concatenate([params["b_lin"], params["b_per"]], axis=1)   # (1, E)
    w_in_d = w_in[:V]
    w_in_m = w_in[V:2 * V]
    w_in_t = w_in[2 * V:]
    aw, ab = params["attn_w"], params["attn_b"]
    wq = aw[:, :, :C]
    wk = aw[:, :, C:2 * C]
    wv = aw[:, :, 2 * C:]
    bq = ab[:, :, :C]
    bk = ab[:, :, C:2 * C]
    bv = ab[:, :, 2 * C:]
    wp = params["proj_w"].reshape(L, nhead, hd, C)
    fc_w = params["fc_w"]
    mp_w = params["mpw"]

    inputs = [times3, data_in.astype(F32), mask_in.astype(F32),
              w_te, b_te, w_in_d, w_in_m, w_in_t, params["b_in"],
              params["ln1_w"], params["ln1_b"],
              wq, wk, wv, bq, bk, bv,
              wp, params["proj_b"],
              params["ln2_w"], params["ln2_b"],
              fc_w, params["fc_b"], mp_w, params["mpb"],
              params["lnf_w"], params["lnf_b"]]

    def batched(shape):
        nd = len(shape)
        return pl.BlockSpec((1,) + tuple(shape[1:]),
                            lambda b, l, nd=nd: (b,) + (0,) * (nd - 1))

    def const(shape):
        nd = len(shape)
        return pl.BlockSpec(tuple(shape), lambda b, l, nd=nd: (0,) * nd)

    def per_layer(shape):
        nd = len(shape)
        return pl.BlockSpec((1,) + tuple(shape[1:]),
                            lambda b, l, nd=nd: (l,) + (0,) * (nd - 1))

    in_specs = [
        batched(times3.shape), batched(data_in.shape), batched(mask_in.shape),
        const(w_te.shape), const(b_te.shape),
        const(w_in_d.shape), const(w_in_m.shape), const(w_in_t.shape),
        const(params["b_in"].shape),
        per_layer(params["ln1_w"].shape), per_layer(params["ln1_b"].shape),
        per_layer(wq.shape), per_layer(wk.shape), per_layer(wv.shape),
        per_layer(bq.shape), per_layer(bk.shape), per_layer(bv.shape),
        per_layer(wp.shape), per_layer(params["proj_b"].shape),
        per_layer(params["ln2_w"].shape), per_layer(params["ln2_b"].shape),
        per_layer(fc_w.shape), per_layer(params["fc_b"].shape),
        per_layer(mp_w.shape), per_layer(params["mpb"].shape),
        const(params["lnf_w"].shape), const(params["lnf_b"].shape),
    ]

    out_spec = pl.BlockSpec((1, T, C), lambda b, l: (b, 0, 0))

    # TODO(synk): batch-tile multiple sequences per grid step (Bt>1) for large B
    # to amortize per-step overhead; kept Bt=1 here (B=2 keeps both v7x cores busy).
    fn = pl.pallas_call(
        _gpts_kernel,
        out_shape=jax.ShapeDtypeStruct((B, T, C), F32),
        grid=(B, L),
        in_specs=in_specs,
        out_specs=out_spec,
        scratch_shapes=[pltpu.VMEM((T, C), F32)],
        compiler_params=pltpu.CompilerParams(
            dimension_semantics=("parallel", "arbitrary"),
            vmem_limit_bytes=32 * 1024 * 1024),
    )
    return fn(*inputs)


# ------------------------------ parameter init --------------------------------

def init_params(key, V, E, C, L):
    ks = jax.random.split(key, 8)

    def nrm(k, shape, std=0.02):
        return jax.random.normal(k, shape, F32) * std

    return dict(
        # TimeEmbedding: periodic Linear(1, E-1), linear Linear(1, 1)
        w_per=nrm(ks[0], (1, E - 1)), b_per=jnp.zeros((1, E - 1), F32),
        w_lin=nrm(ks[1], (1, 1)), b_lin=jnp.zeros((1, 1), F32),
        # input_lyr: Linear(2V + E, C)
        w_in=nrm(ks[2], (2 * V + E, C)), b_in=jnp.zeros((1, C), F32),
        # per-layer block params (stacked over L)
        ln1_w=jnp.ones((L, 1, C), F32), ln1_b=jnp.zeros((L, 1, C), F32),
        attn_w=nrm(ks[3], (L, C, 3 * C)), attn_b=jnp.zeros((L, 1, 3 * C), F32),
        proj_w=nrm(ks[4], (L, C, C), std=0.02 / math.sqrt(2 * L)),
        proj_b=jnp.zeros((L, 1, C), F32),
        ln2_w=jnp.ones((L, 1, C), F32), ln2_b=jnp.zeros((L, 1, C), F32),
        fc_w=nrm(ks[5], (L, C, 4 * C)), fc_b=jnp.zeros((L, 1, 4 * C), F32),
        mpw=nrm(ks[6], (L, 4 * C, C), std=0.02 / math.sqrt(2 * L)),
        mpb=jnp.zeros((L, 1, C), F32),
        # ln_f
        lnf_w=jnp.ones((1, C), F32), lnf_b=jnp.zeros((1, C), F32),
    )


# ----------------------------- pure-JAX reference ------------------------------
# Mirrors the kernel's f32 matmul arithmetic so the tolerance check is tight
# while keeping the original module semantics.

def reference_forward(times_in, data_in, mask_in, p, nhead):
    def mm(a, w):
        return jnp.dot(a, w, preferred_element_type=F32)

    def ln(x, w, b, eps=1e-5):
        mu = jnp.mean(x, -1, keepdims=True)
        var = jnp.mean((x - mu) ** 2, -1, keepdims=True)
        return (x - mu) * jax.lax.rsqrt(var + eps) * w + b

    V = data_in.shape[-1]
    C = p["w_in"].shape[1]
    L = p["ln1_w"].shape[0]
    hd = C // nhead
    scale = 1.0 / math.sqrt(hd)

    t_log = jnp.log(times_in[..., None] + 1e-5)
    te = jnp.concatenate(
        [t_log * p["w_lin"][0] + p["b_lin"][0],
         jnp.sin(t_log * p["w_per"][0] + p["b_per"][0])], axis=-1)
    x = (mm(data_in, p["w_in"][:V]) + mm(mask_in, p["w_in"][V:2 * V])
         + mm(te, p["w_in"][2 * V:]) + p["b_in"][0])

    B, T, _ = x.shape
    causal_add = jnp.where(jnp.tril(jnp.ones((T, T), bool)), 0.0, -1e30).astype(F32)

    for l in range(L):
        h = ln(x, p["ln1_w"][l, 0], p["ln1_b"][l, 0])
        aw, ab = p["attn_w"][l], p["attn_b"][l, 0]
        q = mm(h, aw[:, :C]) + ab[:C]
        k = mm(h, aw[:, C:2 * C]) + ab[C:2 * C]
        v = mm(h, aw[:, 2 * C:]) + ab[2 * C:]
        qh = q.reshape(B, T, nhead, hd).transpose(0, 2, 1, 3)
        kh = k.reshape(B, T, nhead, hd).transpose(0, 2, 1, 3)
        vh = v.reshape(B, T, nhead, hd).transpose(0, 2, 1, 3)
        s = jnp.einsum('bhtd,bhsd->bhts', qh, kh,
                       preferred_element_type=F32) * scale + causal_add
        s = s - s.max(-1, keepdims=True)
        e = jnp.exp(s)
        att = e / e.sum(-1, keepdims=True)
        o = jnp.einsum('bhts,bhsd->bhtd', att, vh, preferred_element_type=F32)
        wp_h = p["proj_w"][l].reshape(nhead, hd, C)
        y = jnp.einsum('bhtd,hdc->bhtc', o, wp_h,
                       preferred_element_type=F32).sum(1) + p["proj_b"][l, 0]
        x = x + y
        h = ln(x, p["ln2_w"][l, 0], p["ln2_b"][l, 0])
        h = mm(h, p["fc_w"][l]) + p["fc_b"][l, 0]
        h = 0.5 * h * (1.0 + jnp.tanh(
            math.sqrt(2.0 / math.pi) * (h + 0.044715 * h * h * h)))
        h = mm(h, p["mpw"][l]) + p["mpb"][l, 0]
        x = x + h
    return ln(x, p["lnf_w"][0], p["lnf_b"][0])


# ----------------------------------- main --------------------------------------

if __name__ == "__main__":
    # small config: variable_num=4, embed_time=8, n_embd=32, nhead=4,
    # mhatt_n_layer=2, train_obj='gpt', dropout=0 (eval)
    B, T, V, E, C, NHEAD, L = 2, 8, 4, 8, 32, 4, 2

    key = jax.random.PRNGKey(0)
    k_t, k_d, k_m, k_p = jax.random.split(key, 4)

    times_in = jnp.sort(jax.random.uniform(k_t, (B, T), F32,
                                           minval=0.05, maxval=1.0), axis=-1)
    mask_in = (jax.random.uniform(k_m, (B, T, V)) > 0.3).astype(F32)
    data_in = jax.random.normal(k_d, (B, T, V), F32) * mask_in  # obeys check_mask
    params = init_params(k_p, V, E, C, L)

    out = gpts_forward(times_in, data_in, mask_in, params, NHEAD)
    out = jax.block_until_ready(out)

    ref = reference_forward(times_in, data_in, mask_in, params, NHEAD)
    ref = jax.block_until_ready(ref)
    assert out.shape == (B, T, C)
    max_err = float(jnp.max(jnp.abs(out - ref)))
    if not bool(jnp.allclose(out, ref, atol=2e-2, rtol=2e-2)):
        raise AssertionError(
            f"Pallas kernel output mismatches reference (max abs err {max_err:.3e})")

    # TODO(synk): evolve module (StatesMapper / ivp solver) and lm_head are not
    # exercised by GPTS.forward(), so they are not implemented here.
    print("KERNEL_OK")
</pallas_src>

<mosaic_0001>
module attributes {stable_mosaic.version = 11 : i64} {
  func.func @_gpts_kernel(%arg0: i32, %arg1: i32, %arg2: memref<1x8x1xf32, #tpu.memory_space<vmem>>, %arg3: memref<1x8x4xf32, #tpu.memory_space<vmem>>, %arg4: memref<1x8x4xf32, #tpu.memory_space<vmem>>, %arg5: memref<1x8xf32, #tpu.memory_space<vmem>>, %arg6: memref<1x8xf32, #tpu.memory_space<vmem>>, %arg7: memref<4x32xf32, #tpu.memory_space<vmem>>, %arg8: memref<4x32xf32, #tpu.memory_space<vmem>>, %arg9: memref<8x32xf32, #tpu.memory_space<vmem>>, %arg10: memref<1x32xf32, #tpu.memory_space<vmem>>, %arg11: memref<1x1x32xf32, #tpu.memory_space<vmem>>, %arg12: memref<1x1x32xf32, #tpu.memory_space<vmem>>, %arg13: memref<1x32x32xf32, #tpu.memory_space<vmem>>, %arg14: memref<1x32x32xf32, #tpu.memory_space<vmem>>, %arg15: memref<1x32x32xf32, #tpu.memory_space<vmem>>, %arg16: memref<1x1x32xf32, #tpu.memory_space<vmem>>, %arg17: memref<1x1x32xf32, #tpu.memory_space<vmem>>, %arg18: memref<1x1x32xf32, #tpu.memory_space<vmem>>, %arg19: memref<1x4x8x32xf32, #tpu.memory_space<vmem>>, %arg20: memref<1x1x32xf32, #tpu.memory_space<vmem>>, %arg21: memref<1x1x32xf32, #tpu.memory_space<vmem>>, %arg22: memref<1x1x32xf32, #tpu.memory_space<vmem>>, %arg23: memref<1x32x128xf32, #tpu.memory_space<vmem>>, %arg24: memref<1x1x128xf32, #tpu.memory_space<vmem>>, %arg25: memref<1x128x32xf32, #tpu.memory_space<vmem>>, %arg26: memref<1x1x32xf32, #tpu.memory_space<vmem>>, %arg27: memref<1x32xf32, #tpu.memory_space<vmem>>, %arg28: memref<1x32xf32, #tpu.memory_space<vmem>>, %arg29: memref<1x8x32xf32, #tpu.memory_space<vmem>>, %arg30: memref<8x32xf32, #tpu.memory_space<vmem>>) attributes {dimension_semantics = [#tpu.dimension_semantics<parallel>, #tpu.dimension_semantics<arbitrary>], iteration_bounds = array<i64: 2, 2>, scalar_prefetch = 0 : i64, scratch_operands = 1 : i64, tpu.core_type = #tpu.core_type<tc>, window_params = [{transform_indices = @transform_0, window_bounds = array<i64: 1, 8, 1>}, {transform_indices = @transform_1, window_bounds = array<i64: 1, 8, 4>}, {transform_indices = @transform_2, window_bounds = array<i64: 1, 8, 4>}, {pipeline_mode = #tpu.pipeline_mode<synchronous>, transform_indices = @transform_3, window_bounds = array<i64: 1, 8>}, {pipeline_mode = #tpu.pipeline_mode<synchronous>, transform_indices = @transform_4, window_bounds = array<i64: 1, 8>}, {pipeline_mode = #tpu.pipeline_mode<synchronous>, transform_indices = @transform_5, window_bounds = array<i64: 4, 32>}, {pipeline_mode = #tpu.pipeline_mode<synchronous>, transform_indices = @transform_6, window_bounds = array<i64: 4, 32>}, {pipeline_mode = #tpu.pipeline_mode<synchronous>, transform_indices = @transform_7, window_bounds = array<i64: 8, 32>}, {pipeline_mode = #tpu.pipeline_mode<synchronous>, transform_indices = @transform_8, window_bounds = array<i64: 1, 32>}, {transform_indices = @transform_9, window_bounds = array<i64: 1, 1, 32>}, {transform_indices = @transform_10, window_bounds = array<i64: 1, 1, 32>}, {transform_indices = @transform_11, window_bounds = array<i64: 1, 32, 32>}, {transform_indices = @transform_12, window_bounds = array<i64: 1, 32, 32>}, {transform_indices = @transform_13, window_bounds = array<i64: 1, 32, 32>}, {transform_indices = @transform_14, window_bounds = array<i64: 1, 1, 32>}, {transform_indices = @transform_15, window_bounds = array<i64: 1, 1, 32>}, {transform_indices = @transform_16, window_bounds = array<i64: 1, 1, 32>}, {transform_indices = @transform_17, window_bounds = array<i64: 1, 4, 8, 32>}, {transform_indices = @transform_18, window_bounds = array<i64: 1, 1, 32>}, {transform_indices = @transform_19, window_bounds = array<i64: 1, 1, 32>}, {transform_indices = @transform_20, window_bounds = array<i64: 1, 1, 32>}, {transform_indices = @transform_21, window_bounds = array<i64: 1, 32, 128>}, {transform_indices = @transform_22, window_bounds = array<i64: 1, 1, 128>}, {transform_indices = @transform_23, window_bounds = array<i64: 1, 128, 32>}, {transform_indices = @transform_24, window_bounds = array<i64: 1, 1, 32>}, {pipeline_mode = #tpu.pipeline_mode<synchronous>, transform_indices = @transform_25, window_bounds = array<i64: 1, 32>}, {pipeline_mode = #tpu.pipeline_mode<synchronous>, transform_indices = @transform_26, window_bounds = array<i64: 1, 32>}, {transform_indices = @transform_27, window_bounds = array<i64: 1, 8, 32>}]} {
    %c0_i32 = arith.constant 0 : i32
    %0 = arith.cmpi eq, %arg1, %c0_i32 : i32
    %1 = arith.extui %0 : i1 to i32
    %c0_i32_0 = arith.constant 0 : i32
    %2 = arith.cmpi ne, %1, %c0_i32_0 : i32
    scf.if %2 {
      %c0_81 = arith.constant 0 : index
      %c0_82 = arith.constant 0 : index
      %c0_83 = arith.constant 0 : index
      %147 = vector.load %arg2[%c0_81, %c0_82, %c0_83] : memref<1x8x1xf32, #tpu.memory_space<vmem>>, vector<1x8x1xf32>
      %148 = vector.shape_cast %147 : vector<1x8x1xf32> to vector<8x1xf32>
      %cst_84 = arith.constant 9.99999974E-6 : f32
      %149 = vector.broadcast %cst_84 : f32 to vector<8x1xf32>
      %150 = arith.addf %148, %149 : vector<8x1xf32>
      %151 = math.log %150 : vector<8x1xf32>
      %c0_85 = arith.constant 0 : index
      %c0_86 = arith.constant 0 : index
      %152 = vector.load %arg5[%c0_85, %c0_86] : memref<1x8xf32, #tpu.memory_space<vmem>>, vector<1x8xf32>
      %153 = vector.broadcast %151 : vector<8x1xf32> to vector<8x8xf32>
      %154 = vector.broadcast %152 : vector<1x8xf32> to vector<8x8xf32>
      %155 = arith.mulf %153, %154 : vector<8x8xf32>
      %c0_87 = arith.constant 0 : index
      %c0_88 = arith.constant 0 : index
      %156 = vector.load %arg6[%c0_87, %c0_88] : memref<1x8xf32, #tpu.memory_space<vmem>>, vector<1x8xf32>
      %157 = vector.broadcast %156 : vector<1x8xf32> to vector<8x8xf32>
      %158 = arith.addf %155, %157 : vector<8x8xf32>
      %159 = tpu.iota {dimensions = array<i32: 1>} : vector<8x8xi32>
      %c0_i32_89 = arith.constant 0 : i32
      %160 = vector.broadcast %c0_i32_89 : i32 to vector<8x8xi32>
      %161 = arith.cmpi eq, %159, %160 : vector<8x8xi32>
      %162 = math.sin %158 : vector<8x8xf32>
      %163 = arith.select %161, %158, %162 : vector<8x8xi1>, vector<8x8xf32>
      %c0_90 = arith.constant 0 : index
      %c0_91 = arith.constant 0 : index
      %c0_92 = arith.constant 0 : index
      %164 = vector.load %arg3[%c0_90, %c0_91, %c0_92] : memref<1x8x4xf32, #tpu.memory_space<vmem>>, vector<1x8x4xf32>
      %165 = vector.shape_cast %164 : vector<1x8x4xf32> to vector<8x4xf32>
      %c0_93 = arith.constant 0 : index
      %c0_94 = arith.constant 0 : index
      %166 = vector.load %arg7[%c0_93, %c0_94] : memref<4x32xf32, #tpu.memory_space<vmem>>, vector<4x32xf32>
      %cst_95 = arith.constant dense<0.000000e+00> : vector<8x32xf32>
      %167 = tpu.matmul %165, %166, %cst_95 {dimension_numbers = #tpu.dot_dimension_numbers<[1], [0], [0], [1], [0, 0, 1, 1], [], []>} : vector<8x4xf32>, vector<4x32xf32>, vector<8x32xf32> -> vector<8x32xf32>
      %c0_96 = arith.constant 0 : index
      %c0_97 = arith.constant 0 : index
      %c0_98 = arith.constant 0 : index
      %168 = vector.load %arg4[%c0_96, %c0_97, %c0_98] : memref<1x8x4xf32, #tpu.memory_space<vmem>>, vector<1x8x4xf32>
      %169 = vector.shape_cast %168 : vector<1x8x4xf32> to vector<8x4xf32>
      %c0_99 = arith.constant 0 : index
      %c0_100 = arith.constant 0 : index
      %170 = vector.load %arg8[%c0_99, %c0_100] : memref<4x32xf32, #tpu.memory_space<vmem>>, vector<4x32xf32>
      %cst_101 = arith.constant dense<0.000000e+00> : vector<8x32xf32>
      %171 = tpu.matmul %169, %170, %cst_101 {dimension_numbers = #tpu.dot_dimension_numbers<[1], [0], [0], [1], [0, 0, 1, 1], [], []>} : vector<8x4xf32>, vector<4x32xf32>, vector<8x32xf32> -> vector<8x32xf32>
      %172 = arith.addf %167, %171 : vector<8x32xf32>
      %c0_102 = arith.constant 0 : index
      %c0_103 = arith.constant 0 : index
      %173 = vector.load %arg9[%c0_102, %c0_103] : memref<8x32xf32, #tpu.memory_space<vmem>>, vector<8x32xf32>
      %cst_104 = arith.constant dense<0.000000e+00> : vector<8x32xf32>
      %174 = tpu.matmul %163, %173, %cst_104 {dimension_numbers = #tpu.dot_dimension_numbers<[1], [0], [0], [1], [0, 0, 1, 1], [], []>} : vector<8x8xf32>, vector<8x32xf32>, vector<8x32xf32> -> vector<8x32xf32>
      %175 = arith.addf %172, %174 : vector<8x32xf32>
      %c0_105 = arith.constant 0 : index
      %c0_106 = arith.constant 0 : index
      %176 = vector.load %arg10[%c0_105, %c0_106] : memref<1x32xf32, #tpu.memory_space<vmem>>, vector<1x32xf32>
      %177 = vector.broadcast %176 : vector<1x32xf32> to vector<8x32xf32>
      %178 = arith.addf %175, %177 : vector<8x32xf32>
      %c0_107 = arith.constant 0 : index
      %c0_108 = arith.constant 0 : index
      %179 = vector.load %arg30[%c0_107, %c0_108] : memref<8x32xf32, #tpu.memory_space<vmem>>, vector<8x32xf32>
      tpu.vector_store %arg30[%c0_107, %c0_108], %178 {strides = array<i32>} : memref<8x32xf32, #tpu.memory_space<vmem>>, vector<8x32xf32>,
    } else {
    }
    %c0 = arith.constant 0 : index
    %c0_1 = arith.constant 0 : index
    %3 = vector.load %arg30[%c0, %c0_1] : memref<8x32xf32, #tpu.memory_space<vmem>>, vector<8x32xf32>
    %4 = tpu.iota {dimensions = array<i32: 0>} : vector<8x8xi32>
    %5 = tpu.iota {dimensions = array<i32: 1>} : vector<8x8xi32>
    %6 = arith.cmpi sle, %5, %4 : vector<8x8xi32>
    %cst = arith.constant 0.000000e+00 : f32
    %cst_2 = arith.constant -1.000000e+30 : f32
    %7 = vector.broadcast %cst : f32 to vector<8x8xf32>
    %8 = vector.broadcast %cst_2 : f32 to vector<8x8xf32>
    %9 = arith.select %6, %7, %8 : vector<8x8xi1>, vector<8x8xf32>
    %c0_3 = arith.constant 0 : index
    %c0_4 = arith.constant 0 : index
    %c0_5 = arith.constant 0 : index
    %10 = vector.load %arg11[%c0_3, %c0_4, %c0_5] : memref<1x1x32xf32, #tpu.memory_space<vmem>>, vector<1x1x32xf32>
    %11 = vector.shape_cast %10 : vector<1x1x32xf32> to vector<1x32xf32>
    %c0_6 = arith.constant 0 : index
    %c0_7 = arith.constant 0 : index
    %c0_8 = arith.constant 0 : index
    %12 = vector.load %arg12[%c0_6, %c0_7, %c0_8] : memref<1x1x32xf32, #tpu.memory_space<vmem>>, vector<1x1x32xf32>
    %13 = vector.shape_cast %12 : vector<1x1x32xf32> to vector<1x32xf32>
    %cst_9 = arith.constant dense<0.000000e+00> : vector<8xf32>
    %14 = vector.multi_reduction <add>, %3, %cst_9 [1] : vector<8x32xf32> to vector<8xf32>
    %15 = vector.shape_cast %14 : vector<8xf32> to vector<8x1xf32>
    %cst_10 = arith.constant 3.200000e+01 : f32
    %16 = vector.broadcast %cst_10 : f32 to vector<8x1xf32>
    %17 = arith.divf %15, %16 : vector<8x1xf32>
    %18 = vector.broadcast %17 : vector<8x1xf32> to vector<8x32xf32>
    %19 = arith.subf %3, %18 : vector<8x32xf32>
    %20 = arith.mulf %19, %19 : vector<8x32xf32>
    %cst_11 = arith.constant dense<0.000000e+00> : vector<8xf32>
    %21 = vector.multi_reduction <add>, %20, %cst_11 [1] : vector<8x32xf32> to vector<8xf32>
    %22 = vector.shape_cast %21 : vector<8xf32> to vector<8x1xf32>
    %cst_12 = arith.constant 3.200000e+01 : f32
    %23 = vector.broadcast %cst_12 : f32 to vector<8x1xf32>
    %24 = arith.divf %22, %23 : vector<8x1xf32>
    %25 = vector.broadcast %17 : vector<8x1xf32> to vector<8x32xf32>
    %26 = arith.subf %3, %25 : vector<8x32xf32>
    %cst_13 = arith.constant 9.99999974E-6 : f32
    %27 = vector.broadcast %cst_13 : f32 to vector<8x1xf32>
    %28 = arith.addf %24, %27 : vector<8x1xf32>
    %29 = math.rsqrt %28 : vector<8x1xf32>
    %30 = vector.broadcast %29 : vector<8x1xf32> to vector<8x32xf32>
    %31 = arith.mulf %26, %30 : vector<8x32xf32>
    %32 = vector.broadcast %11 : vector<1x32xf32> to vector<8x32xf32>
    %33 = arith.mulf %31, %32 : vector<8x32xf32>
    %34 = vector.broadcast %13 : vector<1x32xf32> to vector<8x32xf32>
    %35 = arith.addf %33, %34 : vector<8x32xf32>
    %c0_14 = arith.constant 0 : index
    %c0_15 = arith.constant 0 : index
    %c0_16 = arith.constant 0 : index
    %36 = vector.load %arg13[%c0_14, %c0_15, %c0_16] : memref<1x32x32xf32, #tpu.memory_space<vmem>>, vector<1x32x32xf32>
    %37 = vector.shape_cast %36 : vector<1x32x32xf32> to vector<32x32xf32>
    %cst_17 = arith.constant dense<0.000000e+00> : vector<8x32xf32>
    %38 = tpu.matmul %35, %37, %cst_17 {dimension_numbers = #tpu.dot_dimension_numbers<[1], [0], [0], [1], [0, 0, 1, 1], [], []>} : vector<8x32xf32>, vector<32x32xf32>, vector<8x32xf32> -> vector<8x32xf32>
    %c0_18 = arith.constant 0 : index
    %c0_19 = arith.constant 0 : index
    %c0_20 = arith.constant 0 : index
    %39 = vector.load %arg16[%c0_18, %c0_19, %c0_20] : memref<1x1x32xf32, #tpu.memory_space<vmem>>, vector<1x1x32xf32>
    %40 = vector.shape_cast %39 : vector<1x1x32xf32> to vector<1x32xf32>
    %41 = vector.broadcast %40 : vector<1x32xf32> to vector<8x32xf32>
    %42 = arith.addf %38, %41 : vector<8x32xf32>
    %c0_21 = arith.constant 0 : index
    %c0_22 = arith.constant 0 : index
    %c0_23 = arith.constant 0 : index
    %43 = vector.load %arg14[%c0_21, %c0_22, %c0_23] : memref<1x32x32xf32, #tpu.memory_space<vmem>>, vector<1x32x32xf32>
    %44 = vector.shape_cast %43 : vector<1x32x32xf32> to vector<32x32xf32>
    %cst_24 = arith.constant dense<0.000000e+00> : vector<8x32xf32>
    %45 = tpu.matmul %35, %44, %cst_24 {dimension_numbers = #tpu.dot_dimension_numbers<[1], [0], [0], [1], [0, 0, 1, 1], [], []>} : vector<8x32xf32>, vector<32x32xf32>, vector<8x32xf32> -> vector<8x32xf32>
    %c0_25 = arith.constant 0 : index
    %c0_26 = arith.constant 0 : index
    %c0_27 = arith.constant 0 : index
    %46 = vector.load %arg17[%c0_25, %c0_26, %c0_27] : memref<1x1x32xf32, #tpu.memory_space<vmem>>, vector<1x1x32xf32>
    %47 = vector.shape_cast %46 : vector<1x1x32xf32> to vector<1x32xf32>
    %48 = vector.broadcast %47 : vector<1x32xf32> to vector<8x32xf32>
    %49 = arith.addf %45, %48 : vector<8x32xf32>
    %c0_28 = arith.constant 0 : index
    %c0_29 = arith.constant 0 : index
    %c0_30 = arith.constant 0 : index
    %50 = vector.load %arg15[%c0_28, %c0_29, %c0_30] : memref<1x32x32xf32, #tpu.memory_space<vmem>>, vector<1x32x32xf32>
    %51 = vector.shape_cast %50 : vector<1x32x32xf32> to vector<32x32xf32>
    %cst_31 = arith.constant dense<0.000000e+00> : vector<8x32xf32>
    %52 = tpu.matmul %35, %51, %cst_31 {dimension_numbers = #tpu.dot_dimension_numbers<[1], [0], [0], [1], [0, 0, 1, 1], [], []>} : vector<8x32xf32>, vector<32x32xf32>, vector<8x32xf32> -> vector<8x32xf32>
    %c0_32 = arith.constant 0 : index
    %c0_33 = arith.constant 0 : index
    %c0_34 = arith.constant 0 : index
    %53 = vector.load %arg18[%c0_32, %c0_33, %c0_34] : memref<1x1x32xf32, #tpu.memory_space<vmem>>, vector<1x1x32xf32>
    %54 = vector.shape_cast %53 : vector<1x1x32xf32> to vector<1x32xf32>
    %55 = vector.broadcast %54 : vector<1x32xf32> to vector<8x32xf32>
    %56 = arith.addf %52, %55 : vector<8x32xf32>
    %57 = vector.shape_cast %42 : vector<8x32xf32> to vector<8x4x8xf32>
    %58 = tpu.transpose %57, [1, 0, 2] : vector<8x4x8xf32> -> vector<4x8x8xf32>
    %59 = vector.shape_cast %49 : vector<8x32xf32> to vector<8x4x8xf32>
    %60 = tpu.transpose %59, [1, 0, 2] : vector<8x4x8xf32> -> vector<4x8x8xf32>
    %61 = vector.shape_cast %56 : vector<8x32xf32> to vector<8x4x8xf32>
    %62 = tpu.transpose %61, [1, 0, 2] : vector<8x4x8xf32> -> vector<4x8x8xf32>
    "tpu.trace_start"() <{level = 10 : i32, message = "htd,hsd->hts"}> : () -> ()
    %cst_35 = arith.constant dense<0.000000e+00> : vector<4x8x8xf32>
    %63 = tpu.matmul %58, %60, %cst_35 {dimension_numbers = #tpu.dot_dimension_numbers<[2], [2], [1], [1], [0, 0, 0, 1, 1, 1], [0], [0]>} : vector<4x8x8xf32>, vector<4x8x8xf32>, vector<4x8x8xf32> -> vector<4x8x8xf32>
    "tpu.trace_stop"() : () -> ()
    %cst_36 = arith.constant 0.353553385 : f32
    %64 = vector.broadcast %cst_36 : f32 to vector<4x8x8xf32>
    %65 = arith.mulf %63, %64 : vector<4x8x8xf32>
    %66 = vector.shape_cast %9 : vector<8x8xf32> to vector<1x8x8xf32>
    %67 = vector.broadcast %66 : vector<1x8x8xf32> to vector<4x8x8xf32>
    %68 = arith.addf %65, %67 : vector<4x8x8xf32>
    %cst_37 = arith.constant dense<0xFF800000> : vector<4x8xf32>
    %69 = vector.multi_reduction <maximumf>, %68, %cst_37 [2] : vector<4x8x8xf32> to vector<4x8xf32>
    %70 = vector.shape_cast %69 : vector<4x8xf32> to vector<4x8x1xf32>
    %71 = vector.broadcast %70 : vector<4x8x1xf32> to vector<4x8x8xf32>
    %72 = arith.subf %68, %71 : vector<4x8x8xf32>
    %73 = math.exp %72 : vector<4x8x8xf32>
    %cst_38 = arith.constant dense<0.000000e+00> : vector<4x8xf32>
    %74 = vector.multi_reduction <add>, %73, %cst_38 [2] : vector<4x8x8xf32> to vector<4x8xf32>
    %75 = vector.shape_cast %74 : vector<4x8xf32> to vector<4x8x1xf32>
    %76 = tpu.reciprocal %75 {approx = true} : vector<4x8x1xf32> -> vector<4x8x1xf32>
    %77 = vector.broadcast %76 : vector<4x8x1xf32> to vector<4x8x8xf32>
    %78 = arith.mulf %73, %77 : vector<4x8x8xf32>
    "tpu.trace_start"() <{level = 10 : i32, message = "hts,hsd->htd"}> : () -> ()
    %cst_39 = arith.constant dense<0.000000e+00> : vector<4x8x8xf32>
    %79 = tpu.matmul %78, %62, %cst_39 {dimension_numbers = #tpu.dot_dimension_numbers<[2], [1], [1], [2], [0, 0, 0, 1, 1, 2], [0], [0]>} : vector<4x8x8xf32>, vector<4x8x8xf32>, vector<4x8x8xf32> -> vector<4x8x8xf32>
    "tpu.trace_stop"() : () -> ()
    %c0_40 = arith.constant 0 : index
    %c0_41 = arith.constant 0 : index
    %c0_42 = arith.constant 0 : index
    %c0_43 = arith.constant 0 : index
    %80 = vector.load %arg19[%c0_40, %c0_41, %c0_42, %c0_43] : memref<1x4x8x32xf32, #tpu.memory_space<vmem>>, vector<1x4x8x32xf32>
    %81 = vector.shape_cast %80 : vector<1x4x8x32xf32> to vector<4x8x32xf32>
    "tpu.trace_start"() <{level = 10 : i32, message = "htd,hdc->htc"}> : () -> ()
    %cst_44 = arith.constant dense<0.000000e+00> : vector<4x8x32xf32>
    %82 = tpu.matmul %79, %81, %cst_44 {dimension_numbers = #tpu.dot_dimension_numbers<[2], [1], [1], [2], [0, 0, 0, 1, 1, 2], [0], [0]>} : vector<4x8x8xf32>, vector<4x8x32xf32>, vector<4x8x32xf32> -> vector<4x8x32xf32>
    "tpu.trace_stop"() : () -> ()
    %cst_45 = arith.constant dense<0.000000e+00> : vector<8x32xf32>
    %83 = vector.multi_reduction <add>, %82, %cst_45 [0] : vector<4x8x32xf32> to vector<8x32xf32>
    %84 = arith.addf %3, %83 : vector<8x32xf32>
    %c0_46 = arith.constant 0 : index
    %c0_47 = arith.constant 0 : index
    %c0_48 = arith.constant 0 : index
    %85 = vector.load %arg20[%c0_46, %c0_47, %c0_48] : memref<1x1x32xf32, #tpu.memory_space<vmem>>, vector<1x1x32xf32>
    %86 = vector.shape_cast %85 : vector<1x1x32xf32> to vector<1x32xf32>
    %87 = vector.broadcast %86 : vector<1x32xf32> to vector<8x32xf32>
    %88 = arith.addf %84, %87 : vector<8x32xf32>
    %c0_49 = arith.constant 0 : index
    %c0_50 = arith.constant 0 : index
    %c0_51 = arith.constant 0 : index
    %89 = vector.load %arg21[%c0_49, %c0_50, %c0_51] : memref<1x1x32xf32, #tpu.memory_space<vmem>>, vector<1x1x32xf32>
    %90 = vector.shape_cast %89 : vector<1x1x32xf32> to vector<1x32xf32>
    %c0_52 = arith.constant 0 : index
    %c0_53 = arith.constant 0 : index
    %c0_54 = arith.constant 0 : index
    %91 = vector.load %arg22[%c0_52, %c0_53, %c0_54] : memref<1x1x32xf32, #tpu.memory_space<vmem>>, vector<1x1x32xf32>
    %92 = vector.shape_cast %91 : vector<1x1x32xf32> to vector<1x32xf32>
    %cst_55 = arith.constant dense<0.000000e+00> : vector<8xf32>
    %93 = vector.multi_reduction <add>, %88, %cst_55 [1] : vector<8x32xf32> to vector<8xf32>
    %94 = vector.shape_cast %93 : vector<8xf32> to vector<8x1xf32>
    %cst_56 = arith.constant 3.200000e+01 : f32
    %95 = vector.broadcast %cst_56 : f32 to vector<8x1xf32>
    %96 = arith.divf %94, %95 : vector<8x1xf32>
    %97 = vector.broadcast %96 : vector<8x1xf32> to vector<8x32xf32>
    %98 = arith.subf %88, %97 : vector<8x32xf32>
    %99 = arith.mulf %98, %98 : vector<8x32xf32>
    %cst_57 = arith.constant dense<0.000000e+00> : vector<8xf32>
    %100 = vector.multi_reduction <add>, %99, %cst_57 [1] : vector<8x32xf32> to vector<8xf32>
    %101 = vector.shape_cast %100 : vector<8xf32> to vector<8x1xf32>
    %cst_58 = arith.constant 3.200000e+01 : f32
    %102 = vector.broadcast %cst_58 : f32 to vector<8x1xf32>
    %103 = arith.divf %101, %102 : vector<8x1xf32>
    %104 = vector.broadcast %96 : vector<8x1xf32> to vector<8x32xf32>
    %105 = arith.subf %88, %104 : vector<8x32xf32>
    %cst_59 = arith.constant 9.99999974E-6 : f32
    %106 = vector.broadcast %cst_59 : f32 to vector<8x1xf32>
    %107 = arith.addf %103, %106 : vector<8x1xf32>
    %108 = math.rsqrt %107 : vector<8x1xf32>
    %109 = vector.broadcast %108 : vector<8x1xf32> to vector<8x32xf32>
    %110 = arith.mulf %105, %109 : vector<8x32xf32>
    %111 = vector.broadcast %90 : vector<1x32xf32> to vector<8x32xf32>
    %112 = arith.mulf %110, %111 : vector<8x32xf32>
    %113 = vector.broadcast %92 : vector<1x32xf32> to vector<8x32xf32>
    %114 = arith.addf %112, %113 : vector<8x32xf32>
    %c0_60 = arith.constant 0 : index
    %c0_61 = arith.constant 0 : index
    %c0_62 = arith.constant 0 : index
    %115 = vector.load %arg23[%c0_60, %c0_61, %c0_62] : memref<1x32x128xf32, #tpu.memory_space<vmem>>, vector<1x32x128xf32>
    %116 = vector.shape_cast %115 : vector<1x32x128xf32> to vector<32x128xf32>
    %cst_63 = arith.constant dense<0.000000e+00> : vector<8x128xf32>
    %117 = tpu.matmul %114, %116, %cst_63 {dimension_numbers = #tpu.dot_dimension_numbers<[1], [0], [0], [1], [0, 0, 1, 1], [], []>} : vector<8x32xf32>, vector<32x128xf32>, vector<8x128xf32> -> vector<8x128xf32>
    %c0_64 = arith.constant 0 : index
    %c0_65 = arith.constant 0 : index
    %c0_66 = arith.constant 0 : index
    %118 = vector.load %arg24[%c0_64, %c0_65, %c0_66] : memref<1x1x128xf32, #tpu.memory_space<vmem>>, vector<1x1x128xf32>
    %119 = vector.shape_cast %118 : vector<1x1x128xf32> to vector<1x128xf32>
    %120 = vector.broadcast %119 : vector<1x128xf32> to vector<8x128xf32>
    %121 = arith.addf %117, %120 : vector<8x128xf32>
    %cst_67 = arith.constant 5.000000e-01 : f32
    %122 = vector.broadcast %cst_67 : f32 to vector<8x128xf32>
    %123 = arith.mulf %122, %121 : vector<8x128xf32>
    %cst_68 = arith.constant 4.471500e-02 : f32
    %124 = vector.broadcast %cst_68 : f32 to vector<8x128xf32>
    %125 = arith.mulf %124, %121 : vector<8x128xf32>
    %126 = arith.mulf %125, %121 : vector<8x128xf32>
    %127 = arith.mulf %126, %121 : vector<8x128xf32>
    %128 = arith.addf %121, %127 : vector<8x128xf32>
    %cst_69 = arith.constant 0.797884583 : f32
    %129 = vector.broadcast %cst_69 : f32 to vector<8x128xf32>
    %130 = arith.mulf %129, %128 : vector<8x128xf32>
    %131 = math.tanh %130 : vector<8x128xf32>
    %cst_70 = arith.constant 1.000000e+00 : f32
    %132 = vector.broadcast %cst_70 : f32 to vector<8x128xf32>
    %133 = arith.addf %132, %131 : vector<8x128xf32>
    %134 = arith.mulf %123, %133 : vector<8x128xf32>
    %c0_71 = arith.constant 0 : index
    %c0_72 = arith.constant 0 : index
    %c0_73 = arith.constant 0 : index
    %135 = vector.load %arg25[%c0_71, %c0_72, %c0_73] : memref<1x128x32xf32, #tpu.memory_space<vmem>>, vector<1x128x32xf32>
    %136 = vector.shape_cast %135 : vector<1x128x32xf32> to vector<128x32xf32>
    %cst_74 = arith.constant dense<0.000000e+00> : vector<8x32xf32>
    %137 = tpu.matmul %134, %136, %cst_74 {dimension_numbers = #tpu.dot_dimension_numbers<[1], [0], [0], [1], [0, 0, 1, 1], [], []>} : vector<8x128xf32>, vector<128x32xf32>, vector<8x32xf32> -> vector<8x32xf32>
    %c0_75 = arith.constant 0 : index
    %c0_76 = arith.constant 0 : index
    %c0_77 = arith.constant 0 : index
    %138 = vector.load %arg26[%c0_75, %c0_76, %c0_77] : memref<1x1x32xf32, #tpu.memory_space<vmem>>, vector<1x1x32xf32>
    %139 = vector.shape_cast %138 : vector<1x1x32xf32> to vector<1x32xf32>
    %140 = vector.broadcast %139 : vector<1x32xf32> to vector<8x32xf32>
    %141 = arith.addf %137, %140 : vector<8x32xf32>
    %142 = arith.addf %88, %141 : vector<8x32xf32>
    %c0_78 = arith.constant 0 : index
    %c0_79 = arith.constant 0 : index
    %143 = vector.load %arg30[%c0_78, %c0_79] : memref<8x32xf32, #tpu.memory_space<vmem>>, vector<8x32xf32>
    tpu.vector_store %arg30[%c0_78, %c0_79], %142 {strides = array<i32>} : memref<8x32xf32, #tpu.memory_space<vmem>>, vector<8x32xf32>,
    %c1_i32 = arith.constant 1 : i32
    %144 = arith.cmpi eq, %arg1, %c1_i32 : i32
    %145 = arith.extui %144 : i1 to i32
    %c0_i32_80 = arith.constant 0 : i32
    %146 = arith.cmpi ne, %145, %c0_i32_80 : i32
    scf.if %146 {
      %c0_81 = arith.constant 0 : index
      %c0_82 = arith.constant 0 : index
      %147 = vector.load %arg27[%c0_81, %c0_82] : memref<1x32xf32, #tpu.memory_space<vmem>>, vector<1x32xf32>
      %c0_83 = arith.constant 0 : index
      %c0_84 = arith.constant 0 : index
      %148 = vector.load %arg28[%c0_83, %c0_84] : memref<1x32xf32, #tpu.memory_space<vmem>>, vector<1x32xf32>
      %cst_85 = arith.constant dense<0.000000e+00> : vector<8xf32>
      %149 = vector.multi_reduction <add>, %142, %cst_85 [1] : vector<8x32xf32> to vector<8xf32>
      %150 = vector.shape_cast %149 : vector<8xf32> to vector<8x1xf32>
      %cst_86 = arith.constant 3.200000e+01 : f32
      %151 = vector.broadcast %cst_86 : f32 to vector<8x1xf32>
      %152 = arith.divf %150, %151 : vector<8x1xf32>
      %153 = vector.broadcast %152 : vector<8x1xf32> to vector<8x32xf32>
      %154 = arith.subf %142, %153 : vector<8x32xf32>
      %155 = arith.mulf %154, %154 : vector<8x32xf32>
      %cst_87 = arith.constant dense<0.000000e+00> : vector<8xf32>
      %156 = vector.multi_reduction <add>, %155, %cst_87 [1] : vector<8x32xf32> to vector<8xf32>
      %157 = vector.shape_cast %156 : vector<8xf32> to vector<8x1xf32>
      %cst_88 = arith.constant 3.200000e+01 : f32
      %158 = vector.broadcast %cst_88 : f32 to vector<8x1xf32>
      %159 = arith.divf %157, %158 : vector<8x1xf32>
      %160 = vector.broadcast %152 : vector<8x1xf32> to vector<8x32xf32>
      %161 = arith.subf %142, %160 : vector<8x32xf32>
      %cst_89 = arith.constant 9.99999974E-6 : f32
      %162 = vector.broadcast %cst_89 : f32 to vector<8x1xf32>
      %163 = arith.addf %159, %162 : vector<8x1xf32>
      %164 = math.rsqrt %163 : vector<8x1xf32>
      %165 = vector.broadcast %164 : vector<8x1xf32> to vector<8x32xf32>
      %166 = arith.mulf %161, %165 : vector<8x32xf32>
      %167 = vector.broadcast %147 : vector<1x32xf32> to vector<8x32xf32>
      %168 = arith.mulf %166, %167 : vector<8x32xf32>
      %169 = vector.broadcast %148 : vector<1x32xf32> to vector<8x32xf32>
      %170 = arith.addf %168, %169 : vector<8x32xf32>
      %c0_90 = arith.constant 0 : index
      %c0_91 = arith.constant 0 : index
      %c0_92 = arith.constant 0 : index
      %171 = vector.load %arg29[%c0_90, %c0_91, %c0_92] : memref<1x8x32xf32, #tpu.memory_space<vmem>>, vector<1x8x32xf32>
      %172 = vector.shape_cast %171 : vector<1x8x32xf32> to vector<8x32xf32>
      %173 = vector.shape_cast %170 : vector<8x32xf32> to vector<1x8x32xf32>
      tpu.vector_store %arg29[%c0_90, %c0_91, %c0_92], %173 {strides = array<i32>} : memref<1x8x32xf32, #tpu.memory_space<vmem>>, vector<1x8x32xf32>,
    } else {
    }
    return
  }
  func.func @transform_0(%arg0: i32, %arg1: i32) -> (i32, i32, i32) {
    %c0_i32 = arith.constant 0 : i32
    %c0_i32_0 = arith.constant 0 : i32
    %c0_i32_1 = arith.constant 0 : i32
    return %arg0, %c0_i32, %c0_i32_0 : i32, i32, i32
  }
  func.func @transform_1(%arg0: i32, %arg1: i32) -> (i32, i32, i32) {
    %c0_i32 = arith.constant 0 : i32
    %c0_i32_0 = arith.constant 0 : i32
    %c0_i32_1 = arith.constant 0 : i32
    return %arg0, %c0_i32, %c0_i32_0 : i32, i32, i32
  }
  func.func @transform_2(%arg0: i32, %arg1: i32) -> (i32, i32, i32) {
    %c0_i32 = arith.constant 0 : i32
    %c0_i32_0 = arith.constant 0 : i32
    %c0_i32_1 = arith.constant 0 : i32
    return %arg0, %c0_i32, %c0_i32_0 : i32, i32, i32
  }
  func.func @transform_3(%arg0: i32, %arg1: i32) -> (i32, i32) {
    %c0_i32 = arith.constant 0 : i32
    %c0_i32_0 = arith.constant 0 : i32
    %c0_i32_1 = arith.constant 0 : i32
    return %c0_i32, %c0_i32_0 : i32, i32
  }
  func.func @transform_4(%arg0: i32, %arg1: i32) -> (i32, i32) {
    %c0_i32 = arith.constant 0 : i32
    %c0_i32_0 = arith.constant 0 : i32
    %c0_i32_1 = arith.constant 0 : i32
    return %c0_i32, %c0_i32_0 : i32, i32
  }
  func.func @transform_5(%arg0: i32, %arg1: i32) -> (i32, i32) {
    %c0_i32 = arith.constant 0 : i32
    %c0_i32_0 = arith.constant 0 : i32
    %c0_i32_1 = arith.constant 0 : i32
    return %c0_i32, %c0_i32_0 : i32, i32
  }
  func.func @transform_6(%arg0: i32, %arg1: i32) -> (i32, i32) {
    %c0_i32 = arith.constant 0 : i32
    %c0_i32_0 = arith.constant 0 : i32
    %c0_i32_1 = arith.constant 0 : i32
    return %c0_i32, %c0_i32_0 : i32, i32
  }
  func.func @transform_7(%arg0: i32, %arg1: i32) -> (i32, i32) {
    %c0_i32 = arith.constant 0 : i32
    %c0_i32_0 = arith.constant 0 : i32
    %c0_i32_1 = arith.constant 0 : i32
    return %c0_i32, %c0_i32_0 : i32, i32
  }
  func.func @transform_8(%arg0: i32, %arg1: i32) -> (i32, i32) {
    %c0_i32 = arith.constant 0 : i32
    %c0_i32_0 = arith.constant 0 : i32
    %c0_i32_1 = arith.constant 0 : i32
    return %c0_i32, %c0_i32_0 : i32, i32
  }
  func.func @transform_9(%arg0: i32, %arg1: i32) -> (i32, i32, i32) {
    %c0_i32 = arith.constant 0 : i32
    %c0_i32_0 = arith.constant 0 : i32
    %c0_i32_1 = arith.constant 0 : i32
    return %arg1, %c0_i32, %c0_i32_0 : i32, i32, i32
  }
  func.func @transform_10(%arg0: i32, %arg1: i32) -> (i32, i32, i32) {
    %c0_i32 = arith.constant 0 : i32
    %c0_i32_0 = arith.constant 0 : i32
    %c0_i32_1 = arith.constant 0 : i32
    return %arg1, %c0_i32, %c0_i32_0 : i32, i32, i32
  }
  func.func @transform_11(%arg0: i32, %arg1: i32) -> (i32, i32, i32) {
    %c0_i32 = arith.constant 0 : i32
    %c0_i32_0 = arith.constant 0 : i32
    %c0_i32_1 = arith.constant 0 : i32
    return %arg1, %c0_i32, %c0_i32_0 : i32, i32, i32
  }
  func.func @transform_12(%arg0: i32, %arg1: i32) -> (i32, i32, i32) {
    %c0_i32 = arith.constant 0 : i32
    %c0_i32_0 = arith.constant 0 : i32
    %c0_i32_1 = arith.constant 0 : i32
    return %arg1, %c0_i32, %c0_i32_0 : i32, i32, i32
  }
  func.func @transform_13(%arg0: i32, %arg1: i32) -> (i32, i32, i32) {
    %c0_i32 = arith.constant 0 : i32
    %c0_i32_0 = arith.constant 0 : i32
    %c0_i32_1 = arith.constant 0 : i32
    return %arg1, %c0_i32, %c0_i32_0 : i32, i32, i32
  }
  func.func @transform_14(%arg0: i32, %arg1: i32) -> (i32, i32, i32) {
    %c0_i32 = arith.constant 0 : i32
    %c0_i32_0 = arith.constant 0 : i32
    %c0_i32_1 = arith.constant 0 : i32
    return %arg1, %c0_i32, %c0_i32_0 : i32, i32, i32
  }
  func.func @transform_15(%arg0: i32, %arg1: i32) -> (i32, i32, i32) {
    %c0_i32 = arith.constant 0 : i32
    %c0_i32_0 = arith.constant 0 : i32
    %c0_i32_1 = arith.constant 0 : i32
    return %arg1, %c0_i32, %c0_i32_0 : i32, i32, i32
  }
  func.func @transform_16(%arg0: i32, %arg1: i32) -> (i32, i32, i32) {
    %c0_i32 = arith.constant 0 : i32
    %c0_i32_0 = arith.constant 0 : i32
    %c0_i32_1 = arith.constant 0 : i32
    return %arg1, %c0_i32, %c0_i32_0 : i32, i32, i32
  }
  func.func @transform_17(%arg0: i32, %arg1: i32) -> (i32, i32, i32, i32) {
    %c0_i32 = arith.constant 0 : i32
    %c0_i32_0 = arith.constant 0 : i32
    %c0_i32_1 = arith.constant 0 : i32
    %c0_i32_2 = arith.constant 0 : i32
    return %arg1, %c0_i32, %c0_i32_0, %c0_i32_1 : i32, i32, i32, i32
  }
  func.func @transform_18(%arg0: i32, %arg1: i32) -> (i32, i32, i32) {
    %c0_i32 = arith.constant 0 : i32
    %c0_i32_0 = arith.constant 0 : i32
    %c0_i32_1 = arith.constant 0 : i32
    return %arg1, %c0_i32, %c0_i32_0 : i32, i32, i32
  }
  func.func @transform_19(%arg0: i32, %arg1: i32) -> (i32, i32, i32) {
    %c0_i32 = arith.constant 0 : i32
    %c0_i32_0 = arith.constant 0 : i32
    %c0_i32_1 = arith.constant 0 : i32
    return %arg1, %c0_i32, %c0_i32_0 : i32, i32, i32
  }
  func.func @transform_20(%arg0: i32, %arg1: i32) -> (i32, i32, i32) {
    %c0_i32 = arith.constant 0 : i32
    %c0_i32_0 = arith.constant 0 : i32
    %c0_i32_1 = arith.constant 0 : i32
    return %arg1, %c0_i32, %c0_i32_0 : i32, i32, i32
  }
  func.func @transform_21(%arg0: i32, %arg1: i32) -> (i32, i32, i32) {
    %c0_i32 = arith.constant 0 : i32
    %c0_i32_0 = arith.constant 0 : i32
    %c0_i32_1 = arith.constant 0 : i32
    return %arg1, %c0_i32, %c0_i32_0 : i32, i32, i32
  }
  func.func @transform_22(%arg0: i32, %arg1: i32) -> (i32, i32, i32) {
    %c0_i32 = arith.constant 0 : i32
    %c0_i32_0 = arith.constant 0 : i32
    %c0_i32_1 = arith.constant 0 : i32
    return %arg1, %c0_i32, %c0_i32_0 : i32, i32, i32
  }
  func.func @transform_23(%arg0: i32, %arg1: i32) -> (i32, i32, i32) {
    %c0_i32 = arith.constant 0 : i32
    %c0_i32_0 = arith.constant 0 : i32
    %c0_i32_1 = arith.constant 0 : i32
    return %arg1, %c0_i32, %c0_i32_0 : i32, i32, i32
  }
  func.func @transform_24(%arg0: i32, %arg1: i32) -> (i32, i32, i32) {
    %c0_i32 = arith.constant 0 : i32
    %c0_i32_0 = arith.constant 0 : i32
    %c0_i32_1 = arith.constant 0 : i32
    return %arg1, %c0_i32, %c0_i32_0 : i32, i32, i32
  }
  func.func @transform_25(%arg0: i32, %arg1: i32) -> (i32, i32) {
    %c0_i32 = arith.constant 0 : i32
    %c0_i32_0 = arith.constant 0 : i32
    %c0_i32_1 = arith.constant 0 : i32
    return %c0_i32, %c0_i32_0 : i32, i32
  }
  func.func @transform_26(%arg0: i32, %arg1: i32) -> (i32, i32) {
    %c0_i32 = arith.constant 0 : i32
    %c0_i32_0 = arith.constant 0 : i32
    %c0_i32_1 = arith.constant 0 : i32
    return %c0_i32, %c0_i32_0 : i32, i32
  }
  func.func @transform_27(%arg0: i32, %arg1: i32) -> (i32, i32, i32) {
    %c0_i32 = arith.constant 0 : i32
    %c0_i32_0 = arith.constant 0 : i32
    %c0_i32_1 = arith.constant 0 : i32
    return %arg0, %c0_i32, %c0_i32_0 : i32, i32, i32
  }
}

</mosaic_0001>

<llo_original>
// kernel: tpu_custom_call.1
$region0: #{tpu_custom_call.1}
  #allocation0 [shape = 'u32[]', space=smem, size = 0x4, offset = 0x4, fixed_abs, tag = 'smem constant byte address 0x4 - core index']
  #allocation1 [shape = 'u32[144,128]{1,0:T(1,128)}', space=vmem, size = 0x12000, scoped, tag = 'internal scratch']
  #allocation2 [shape = 'f32[8,32]{1,0:T(8,128)}', space=vmem, size = 0x1000, scoped, tag = 'scratch operand']
  %s0 = inlined_call_operand.vmem [shape: f32[2,8,1], index: 0, kind: input, shape index: {}]
  %s1 = inlined_call_operand.vmem [shape: f32[2,8,4], index: 1, kind: input, shape index: {}]
  %s2 = inlined_call_operand.vmem [shape: f32[2,8,4], index: 2, kind: input, shape index: {}]
  %s3 = inlined_call_operand.vmem [shape: f32[1,8], index: 3, kind: input, shape index: {}]
  %s4 = inlined_call_operand.vmem [shape: f32[1,8], index: 4, kind: input, shape index: {}]
  %s5 = inlined_call_operand.vmem [shape: f32[4,32], index: 5, kind: input, shape index: {}]
  %s6 = inlined_call_operand.vmem [shape: f32[4,32], index: 6, kind: input, shape index: {}]
  %s7 = inlined_call_operand.vmem [shape: f32[8,32], index: 7, kind: input, shape index: {}]
  %s8 = inlined_call_operand.vmem [shape: f32[1,32], index: 8, kind: input, shape index: {}]
  %s9 = inlined_call_operand.vmem [shape: f32[2,1,32], index: 9, kind: input, shape index: {}]
  %s10 = inlined_call_operand.vmem [shape: f32[2,1,32], index: 10, kind: input, shape index: {}]
  %s11 = inlined_call_operand.vmem [shape: f32[2,32,32], index: 11, kind: input, shape index: {}]
  %s12 = inlined_call_operand.vmem [shape: f32[2,32,32], index: 12, kind: input, shape index: {}]
  %s13 = inlined_call_operand.vmem [shape: f32[2,32,32], index: 13, kind: input, shape index: {}]
  %s14 = inlined_call_operand.vmem [shape: f32[2,1,32], index: 14, kind: input, shape index: {}]
  %s15 = inlined_call_operand.vmem [shape: f32[2,1,32], index: 15, kind: input, shape index: {}]
  %s16 = inlined_call_operand.vmem [shape: f32[2,1,32], index: 16, kind: input, shape index: {}]
  %s17 = inlined_call_operand.vmem [shape: f32[2,4,8,32], index: 17, kind: input, shape index: {}]
  %s18 = inlined_call_operand.vmem [shape: f32[2,1,32], index: 18, kind: input, shape index: {}]
  %s19 = inlined_call_operand.vmem [shape: f32[2,1,32], index: 19, kind: input, shape index: {}]
  %s20 = inlined_call_operand.vmem [shape: f32[2,1,32], index: 20, kind: input, shape index: {}]
  %s21 = inlined_call_operand.vmem [shape: f32[2,32,128], index: 21, kind: input, shape index: {}]
  %s22 = inlined_call_operand.vmem [shape: f32[2,1,128], index: 22, kind: input, shape index: {}]
  %s23 = inlined_call_operand.vmem [shape: f32[2,128,32], index: 23, kind: input, shape index: {}]
  %s24 = inlined_call_operand.vmem [shape: f32[2,1,32], index: 24, kind: input, shape index: {}]
  %s25 = inlined_call_operand.vmem [shape: f32[1,32], index: 25, kind: input, shape index: {}]
  %s26 = inlined_call_operand.vmem [shape: f32[1,32], index: 26, kind: input, shape index: {}]
  %s27 = inlined_call_operand.hbm [shape: f32[2,8,32], index: 27, kind: output, shape index: {}]
  %s28 = sld [smem:[#allocation0]]
  $region149: #{tpu_custom_call.1} parent=0
    _
  %s30 = ssub.s32 1, %s28
  %s31 = scalar_select 0, %s30, %s28
  $region1: #{tpu_custom_call.1} parent=0
    #allocation3 [shape = 'u8[8192]{0}', space=vmem, size = 0x2000, scoped, tag = 'output window, operand 0']
    #allocation4 [shape = 's32[2]{0}', space=sflag, size = 0x8, scoped, tag = 'scoped memory for tpu_custom_call.1']
    %32 = vsyncpa [#allocation4], 0
    %s33 = scalar_lea.sflag [#allocation4], 1
    %34 = vsyncpa %s33, 0
    loop: start=0, step=1, limit=6
    $region2: #{tpu_custom_call.1} parent=1 // loop_pre_header
      _
    $region3: #{tpu_custom_call.1} parent=1 // loop_header
      %s36 = sphi 0, %s40
      %p37 = scmp.ge.s32.totalorder %s36, 6
      %s43 = sphi 0, %s55
      %s44 = sphi 0, %s51
      %s45 = sphi 0, %s43
      %s46 = sphi 0, %s44
      %s47 = sphi 0, %s45
      %s48 = sphi 0, %s46
      %s58 = sphi 0, %s60
      %s61 = sphi 0, %s58
      %s62 = sphi 0, %s61
      %s78 = sphi 0, %s62
      %s84 = sphi 0, %s86
      %s87 = sphi 0, %s84
      %s88 = sphi 0, %s87
      %s104 = sphi 0, %s88
      %s110 = sphi 0, %s112
      %s113 = sphi 0, %s110
      %s114 = sphi 0, %s113
      %s130 = sphi 0, %s114
      %s134 = sphi 0, %s134
      %s136 = sphi 0, %s134
      %s137 = sphi 0, %s136
      %s151 = sphi 0, %s137
      %s155 = sphi 0, %s155
      %s157 = sphi 0, %s155
      %s158 = sphi 0, %s157
      %s172 = sphi 0, %s158
      %s176 = sphi 0, %s176
      %s178 = sphi 0, %s176
      %s179 = sphi 0, %s178
      %s193 = sphi 0, %s179
      %s197 = sphi 0, %s197
      %s199 = sphi 0, %s197
      %s200 = sphi 0, %s199
      %s214 = sphi 0, %s200
      %s218 = sphi 0, %s218
      %s220 = sphi 0, %s218
      %s221 = sphi 0, %s220
      %s235 = sphi 0, %s221
      %s239 = sphi 0, %s239
      %s241 = sphi 0, %s239
      %s242 = sphi 0, %s241
      %s256 = sphi 0, %s242
      %s262 = sphi 0, %s264
      %s265 = sphi 0, %s262
      %s266 = sphi 0, %s265
      %s282 = sphi 0, %s266
      %s288 = sphi 0, %s290
      %s291 = sphi 0, %s288
      %s292 = sphi 0, %s291
      %s308 = sphi 0, %s292
      %s314 = sphi 0, %s316
      %s317 = sphi 0, %s314
      %s318 = sphi 0, %s317
      %s334 = sphi 0, %s318
      %s340 = sphi 0, %s342
      %s343 = sphi 0, %s340
      %s344 = sphi 0, %s343
      %s360 = sphi 0, %s344
      %s366 = sphi 0, %s368
      %s369 = sphi 0, %s366
      %s370 = sphi 0, %s369
      %s386 = sphi 0, %s370
      %s392 = sphi 0, %s394
      %s395 = sphi 0, %s392
      %s396 = sphi 0, %s395
      %s412 = sphi 0, %s396
      %s418 = sphi 0, %s420
      %s421 = sphi 0, %s418
      %s422 = sphi 0, %s421
      %s438 = sphi 0, %s422
      %s444 = sphi 0, %s446
      %s447 = sphi 0, %s444
      %s448 = sphi 0, %s447
      %s464 = sphi 0, %s448
      %s470 = sphi 0, %s472
      %s473 = sphi 0, %s470
      %s474 = sphi 0, %s473
      %s490 = sphi 0, %s474
      %s496 = sphi 0, %s498
      %s499 = sphi 0, %s496
      %s500 = sphi 0, %s499
      %s516 = sphi 0, %s500
      %s522 = sphi 0, %s524
      %s525 = sphi 0, %s522
      %s526 = sphi 0, %s525
      %s542 = sphi 0, %s526
      %s548 = sphi 0, %s550
      %s551 = sphi 0, %s548
      %s552 = sphi 0, %s551
      %s568 = sphi 0, %s552
      %s574 = sphi 0, %s576
      %s577 = sphi 0, %s574
      %s578 = sphi 0, %s577
      %s594 = sphi 0, %s578
      %s600 = sphi 0, %s602
      %s603 = sphi 0, %s600
      %s604 = sphi 0, %s603
      %s620 = sphi 0, %s604
      %s626 = sphi 0, %s628
      %s629 = sphi 0, %s626
      %s630 = sphi 0, %s629
      %s646 = sphi 0, %s630
      %s652 = sphi 0, %s654
      %s655 = sphi 0, %s652
      %s656 = sphi 0, %s655
      %s672 = sphi 0, %s656
      %s676 = sphi 0, %s676
      %s678 = sphi 0, %s676
      %s679 = sphi 0, %s678
      %s693 = sphi 0, %s679
      %s697 = sphi 0, %s697
      %s699 = sphi 0, %s697
      %s700 = sphi 0, %s699
      %s714 = sphi 0, %s700
      %s720 = sphi 0, %s722
      %s723 = sphi 0, %s720
      %s724 = sphi 0, %s723
      %s740 = sphi 0, %s724
    $region4: #{tpu_custom_call.1} parent=1 // loop_header_branch
      %39 = sbr.rel (%p37) target = $region8
    $region5: #{tpu_custom_call.1} parent=1 // loop_body
      %s41 = ssub.s32 %s36, 1
      %s42 = ssub.s32 %s36, 2
      %s49 = sadd.s32 1, %s44
      %p50 = scmp.ge.s32.totalorder %s49, 2
      %s51 = scalar_select %p50, 0, %s49
      %s52 = sadd.s32 1, %s43
      %s53 = scalar_select %p50, %s52, %s43
      %p54 = scmp.ge.s32.totalorder %s53, 2
      %s55 = scalar_select %p54, 0, %s53
      %s56 = ssub.s32 %s43, %s55
      %p57 = scmp.eq.s32.totalorder %s56, 0
      %s59 = sadd.s32 %s58, 1
      %s60 = scalar_select %p57, %s58, %s59
      %p63 = pneg %p57
      %p64 = scmp.eq.s32.totalorder %s36, 3
      %p65 = por %p63, %p64
      %p66 = scmp.ne.s32.totalorder %s58, %s61
      %p67 = scmp.eq.s32.totalorder %s36, 0
      %p68 = por %p66, %p67
      %p69 = scmp.ne.s32.totalorder %s58, %s61
      %p70 = scmp.eq.s32.totalorder %s41, 3
      %p71 = por %p69, %p70
      %p72 = scmp.ne.s32.totalorder %s61, %s62
      %p73 = scmp.eq.s32.totalorder %s41, 0
      %p74 = por %p72, %p73
      %p75 = scmp.ne.s32.totalorder %s61, %s62
      %p76 = scmp.eq.s32.totalorder %s42, 3
      %p77 = por %p75, %p76
      %p79 = scmp.ne.s32.totalorder %s62, %s78
      %p80 = scmp.eq.s32.totalorder %s42, 0
      %p81 = por %p79, %p80
      %s82 = ssub.s32 %s43, %s55
      %p83 = scmp.eq.s32.totalorder %s82, 0
      %s85 = sadd.s32 %s84, 1
      %s86 = scalar_select %p83, %s84, %s85
      %p89 = pneg %p83
      %p90 = scmp.eq.s32.totalorder %s36, 3
      %p91 = por %p89, %p90
      %p92 = scmp.ne.s32.totalorder %s84, %s87
      %p93 = scmp.eq.s32.totalorder %s36, 0
      %p94 = por %p92, %p93
      %p95 = scmp.ne.s32.totalorder %s84, %s87
      %p96 = scmp.eq.s32.totalorder %s41, 3
      %p97 = por %p95, %p96
      %p98 = scmp.ne.s32.totalorder %s87, %s88
      %p99 = scmp.eq.s32.totalorder %s41, 0
      %p100 = por %p98, %p99
      %p101 = scmp.ne.s32.totalorder %s87, %s88
      %p102 = scmp.eq.s32.totalorder %s42, 3
      %p103 = por %p101, %p102
      %p105 = scmp.ne.s32.totalorder %s88, %s104
      %p106 = scmp.eq.s32.totalorder %s42, 0
      %p107 = por %p105, %p106
      %s108 = ssub.s32 %s43, %s55
      %p109 = scmp.eq.s32.totalorder %s108, 0
      %s111 = sadd.s32 %s110, 1
      %s112 = scalar_select %p109, %s110, %s111
      %p115 = pneg %p109
      %p116 = scmp.eq.s32.totalorder %s36, 3
      %p117 = por %p115, %p116
      %p118 = scmp.ne.s32.totalorder %s110, %s113
      %p119 = scmp.eq.s32.totalorder %s36, 0
      %p120 = por %p118, %p119
      %p121 = scmp.ne.s32.totalorder %s110, %s113
      %p122 = scmp.eq.s32.totalorder %s41, 3
      %p123 = por %p121, %p122
      %p124 = scmp.ne.s32.totalorder %s113, %s114
      %p125 = scmp.eq.s32.totalorder %s41, 0
      %p126 = por %p124, %p125
      %p127 = scmp.ne.s32.totalorder %s113, %s114
      %p128 = scmp.eq.s32.totalorder %s42, 3
      %p129 = por %p127, %p128
      %p131 = scmp.ne.s32.totalorder %s114, %s130
      %p132 = scmp.eq.s32.totalorder %s42, 0
      %p133 = por %p131, %p132
      %s135 = sadd.s32 %s134, 1
      %p138 = scmp.eq.s32.totalorder %s36, 3
      %p139 = scmp.ne.s32.totalorder %s134, %s136
      %p140 = scmp.eq.s32.totalorder %s36, 0
      %p141 = por %p139, %p140
      %p142 = scmp.ne.s32.totalorder %s134, %s136
      %p143 = scmp.eq.s32.totalorder %s41, 3
      %p144 = por %p142, %p143
      %p145 = scmp.ne.s32.totalorder %s136, %s137
      %p146 = scmp.eq.s32.totalorder %s41, 0
      %p147 = por %p145, %p146
      %p148 = scmp.ne.s32.totalorder %s136, %s137
      %p149 = scmp.eq.s32.totalorder %s42, 3
      %p150 = por %p148, %p149
      %p152 = scmp.ne.s32.totalorder %s137, %s151
      %p153 = scmp.eq.s32.totalorder %s42, 0
      %p154 = por %p152, %p153
      %s156 = sadd.s32 %s155, 1
      %p159 = scmp.eq.s32.totalorder %s36, 3
      %p160 = scmp.ne.s32.totalorder %s155, %s157
      %p161 = scmp.eq.s32.totalorder %s36, 0
      %p162 = por %p160, %p161
      %p163 = scmp.ne.s32.totalorder %s155, %s157
      %p164 = scmp.eq.s32.totalorder %s41, 3
      %p165 = por %p163, %p164
      %p166 = scmp.ne.s32.totalorder %s157, %s158
      %p167 = scmp.eq.s32.totalorder %s41, 0
      %p168 = por %p166, %p167
      %p169 = scmp.ne.s32.totalorder %s157, %s158
      %p170 = scmp.eq.s32.totalorder %s42, 3
      %p171 = por %p169, %p170
      %p173 = scmp.ne.s32.totalorder %s158, %s172
      %p174 = scmp.eq.s32.totalorder %s42, 0
      %p175 = por %p173, %p174
      %s177 = sadd.s32 %s176, 1
      %p180 = scmp.eq.s32.totalorder %s36, 3
      %p181 = scmp.ne.s32.totalorder %s176, %s178
      %p182 = scmp.eq.s32.totalorder %s36, 0
      %p183 = por %p181, %p182
      %p184 = scmp.ne.s32.totalorder %s176, %s178
      %p185 = scmp.eq.s32.totalorder %s41, 3
      %p186 = por %p184, %p185
      %p187 = scmp.ne.s32.totalorder %s178, %s179
      %p188 = scmp.eq.s32.totalorder %s41, 0
      %p189 = por %p187, %p188
      %p190 = scmp.ne.s32.totalorder %s178, %s179
      %p191 = scmp.eq.s32.totalorder %s42, 3
      %p192 = por %p190, %p191
      %p194 = scmp.ne.s32.totalorder %s179, %s193
      %p195 = scmp.eq.s32.totalorder %s42, 0
      %p196 = por %p194, %p195
      %s198 = sadd.s32 %s197, 1
      %p201 = scmp.eq.s32.totalorder %s36, 3
      %p202 = scmp.ne.s32.totalorder %s197, %s199
      %p203 = scmp.eq.s32.totalorder %s36, 0
      %p204 = por %p202, %p203
      %p205 = scmp.ne.s32.totalorder %s197, %s199
      %p206 = scmp.eq.s32.totalorder %s41, 3
      %p207 = por %p205, %p206
      %p208 = scmp.ne.s32.totalorder %s199, %s200
      %p209 = scmp.eq.s32.totalorder %s41, 0
      %p210 = por %p208, %p209
      %p211 = scmp.ne.s32.totalorder %s199, %s200
      %p212 = scmp.eq.s32.totalorder %s42, 3
      %p213 = por %p211, %p212
      %p215 = scmp.ne.s32.totalorder %s200, %s214
      %p216 = scmp.eq.s32.totalorder %s42, 0
      %p217 = por %p215, %p216
      %s219 = sadd.s32 %s218, 1
      %p222 = scmp.eq.s32.totalorder %s36, 3
      %p223 = scmp.ne.s32.totalorder %s218, %s220
      %p224 = scmp.eq.s32.totalorder %s36, 0
      %p225 = por %p223, %p224
      %p226 = scmp.ne.s32.totalorder %s218, %s220
      %p227 = scmp.eq.s32.totalorder %s41, 3
      %p228 = por %p226, %p227
      %p229 = scmp.ne.s32.totalorder %s220, %s221
      %p230 = scmp.eq.s32.totalorder %s41, 0
      %p231 = por %p229, %p230
      %p232 = scmp.ne.s32.totalorder %s220, %s221
      %p233 = scmp.eq.s32.totalorder %s42, 3
      %p234 = por %p232, %p233
      %p236 = scmp.ne.s32.totalorder %s221, %s235
      %p237 = scmp.eq.s32.totalorder %s42, 0
      %p238 = por %p236, %p237
      %s240 = sadd.s32 %s239, 1
      %p243 = scmp.eq.s32.totalorder %s36, 3
      %p244 = scmp.ne.s32.totalorder %s239, %s241
      %p245 = scmp.eq.s32.totalorder %s36, 0
      %p246 = por %p244, %p245
      %p247 = scmp.ne.s32.totalorder %s239, %s241
      %p248 = scmp.eq.s32.totalorder %s41, 3
      %p249 = por %p247, %p248
      %p250 = scmp.ne.s32.totalorder %s241, %s242
      %p251 = scmp.eq.s32.totalorder %s41, 0
      %p252 = por %p250, %p251
      %p253 = scmp.ne.s32.totalorder %s241, %s242
      %p254 = scmp.eq.s32.totalorder %s42, 3
      %p255 = por %p253, %p254
      %p257 = scmp.ne.s32.totalorder %s242, %s256
      %p258 = scmp.eq.s32.totalorder %s42, 0
      %p259 = por %p257, %p258
      %s260 = ssub.s32 %s44, %s51
      %p261 = scmp.eq.s32.totalorder %s260, 0
      %s263 = sadd.s32 %s262, 1
      %s264 = scalar_select %p261, %s262, %s263
      %p267 = pneg %p261
      %p268 = scmp.eq.s32.totalorder %s36, 3
      %p269 = por %p267, %p268
      %p270 = scmp.ne.s32.totalorder %s262, %s265
      %p271 = scmp.eq.s32.totalorder %s36, 0
      %p272 = por %p270, %p271
      %p273 = scmp.ne.s32.totalorder %s262, %s265
      %p274 = scmp.eq.s32.totalorder %s41, 3
      %p275 = por %p273, %p274
      %p276 = scmp.ne.s32.totalorder %s265, %s266
      %p277 = scmp.eq.s32.totalorder %s41, 0
      %p278 = por %p276, %p277
      %p279 = scmp.ne.s32.totalorder %s265, %s266
      %p280 = scmp.eq.s32.totalorder %s42, 3
      %p281 = por %p279, %p280
      %p283 = scmp.ne.s32.totalorder %s266, %s282
      %p284 = scmp.eq.s32.totalorder %s42, 0
      %p285 = por %p283, %p284
      %s286 = ssub.s32 %s44, %s51
      %p287 = scmp.eq.s32.totalorder %s286, 0
      %s289 = sadd.s32 %s288, 1
      %s290 = scalar_select %p287, %s288, %s289
      %p293 = pneg %p287
      %p294 = scmp.eq.s32.totalorder %s36, 3
      %p295 = por %p293, %p294
      %p296 = scmp.ne.s32.totalorder %s288, %s291
      %p297 = scmp.eq.s32.totalorder %s36, 0
      %p298 = por %p296, %p297
      %p299 = scmp.ne.s32.totalorder %s288, %s291
      %p300 = scmp.eq.s32.totalorder %s41, 3
      %p301 = por %p299, %p300
      %p302 = scmp.ne.s32.totalorder %s291, %s292
      %p303 = scmp.eq.s32.totalorder %s41, 0
      %p304 = por %p302, %p303
      %p305 = scmp.ne.s32.totalorder %s291, %s292
      %p306 = scmp.eq.s32.totalorder %s42, 3
      %p307 = por %p305, %p306
      %p309 = scmp.ne.s32.totalorder %s292, %s308
      %p310 = scmp.eq.s32.totalorder %s42, 0
      %p311 = por %p309, %p310
      %s312 = ssub.s32 %s44, %s51
      %p313 = scmp.eq.s32.totalorder %s312, 0
      %s315 = sadd.s32 %s314, 1
      %s316 = scalar_select %p313, %s314, %s315
      %p319 = pneg %p313
      %p320 = scmp.eq.s32.totalorder %s36, 3
      %p321 = por %p319, %p320
      %p322 = scmp.ne.s32.totalorder %s314, %s317
      %p323 = scmp.eq.s32.totalorder %s36, 0
      %p324 = por %p322, %p323
      %p325 = scmp.ne.s32.totalorder %s314, %s317
      %p326 = scmp.eq.s32.totalorder %s41, 3
      %p327 = por %p325, %p326
      %p328 = scmp.ne.s32.totalorder %s317, %s318
      %p329 = scmp.eq.s32.totalorder %s41, 0
      %p330 = por %p328, %p329
      %p331 = scmp.ne.s32.totalorder %s317, %s318
      %p332 = scmp.eq.s32.totalorder %s42, 3
      %p333 = por %p331, %p332
      %p335 = scmp.ne.s32.totalorder %s318, %s334
      %p336 = scmp.eq.s32.totalorder %s42, 0
      %p337 = por %p335, %p336
      %s338 = ssub.s32 %s44, %s51
      %p339 = scmp.eq.s32.totalorder %s338, 0
      %s341 = sadd.s32 %s340, 1
      %s342 = scalar_select %p339, %s340, %s341
      %p345 = pneg %p339
      %p346 = scmp.eq.s32.totalorder %s36, 3
      %p347 = por %p345, %p346
      %p348 = scmp.ne.s32.totalorder %s340, %s343
      %p349 = scmp.eq.s32.totalorder %s36, 0
      %p350 = por %p348, %p349
      %p351 = scmp.ne.s32.totalorder %s340, %s343
      %p352 = scmp.eq.s32.totalorder %s41, 3
      %p353 = por %p351, %p352
      %p354 = scmp.ne.s32.totalorder %s343, %s344
      %p355 = scmp.eq.s32.totalorder %s41, 0
      %p356 = por %p354, %p355
      %p357 = scmp.ne.s32.totalorder %s343, %s344
      %p358 = scmp.eq.s32.totalorder %s42, 3
      %p359 = por %p357, %p358
      %p361 = scmp.ne.s32.totalorder %s344, %s360
      %p362 = scmp.eq.s32.totalorder %s42, 0
      %p363 = por %p361, %p362
      %s364 = ssub.s32 %s44, %s51
      %p365 = scmp.eq.s32.totalorder %s364, 0
      %s367 = sadd.s32 %s366, 1
      %s368 = scalar_select %p365, %s366, %s367
      %p371 = pneg %p365
      %p372 = scmp.eq.s32.totalorder %s36, 3
      %p373 = por %p371, %p372
      %p374 = scmp.ne.s32.totalorder %s366, %s369
      %p375 = scmp.eq.s32.totalorder %s36, 0
      %p376 = por %p374, %p375
      %p377 = scmp.ne.s32.totalorder %s366, %s369
      %p378 = scmp.eq.s32.totalorder %s41, 3
      %p379 = por %p377, %p378
      %p380 = scmp.ne.s32.totalorder %s369, %s370
      %p381 = scmp.eq.s32.totalorder %s41, 0
      %p382 = por %p380, %p381
      %p383 = scmp.ne.s32.totalorder %s369, %s370
      %p384 = scmp.eq.s32.totalorder %s42, 3
      %p385 = por %p383, %p384
      %p387 = scmp.ne.s32.totalorder %s370, %s386
      %p388 = scmp.eq.s32.totalorder %s42, 0
      %p389 = por %p387, %p388
      %s390 = ssub.s32 %s44, %s51
      %p391 = scmp.eq.s32.totalorder %s390, 0
      %s393 = sadd.s32 %s392, 1
      %s394 = scalar_select %p391, %s392, %s393
      %p397 = pneg %p391
      %p398 = scmp.eq.s32.totalorder %s36, 3
      %p399 = por %p397, %p398
      %p400 = scmp.ne.s32.totalorder %s392, %s395
      %p401 = scmp.eq.s32.totalorder %s36, 0
      %p402 = por %p400, %p401
      %p403 = scmp.ne.s32.totalorder %s392, %s395
      %p404 = scmp.eq.s32.totalorder %s41, 3
      %p405 = por %p403, %p404
      %p406 = scmp.ne.s32.totalorder %s395, %s396
      %p407 = scmp.eq.s32.totalorder %s41, 0
      %p408 = por %p406, %p407
      %p409 = scmp.ne.s32.totalorder %s395, %s396
      %p410 = scmp.eq.s32.totalorder %s42, 3
      %p411 = por %p409, %p410
      %p413 = scmp.ne.s32.totalorder %s396, %s412
      %p414 = scmp.eq.s32.totalorder %s42, 0
      %p415 = por %p413, %p414
      %s416 = ssub.s32 %s44, %s51
      %p417 = scmp.eq.s32.totalorder %s416, 0
      %s419 = sadd.s32 %s418, 1
      %s420 = scalar_select %p417, %s418, %s419
      %p423 = pneg %p417
      %p424 = scmp.eq.s32.totalorder %s36, 3
      %p425 = por %p423, %p424
      %p426 = scmp.ne.s32.totalorder %s418, %s421
      %p427 = scmp.eq.s32.totalorder %s36, 0
      %p428 = por %p426, %p427
      %p429 = scmp.ne.s32.totalorder %s418, %s421
      %p430 = scmp.eq.s32.totalorder %s41, 3
      %p431 = por %p429, %p430
      %p432 = scmp.ne.s32.totalorder %s421, %s422
      %p433 = scmp.eq.s32.totalorder %s41, 0
      %p434 = por %p432, %p433
      %p435 = scmp.ne.s32.totalorder %s421, %s422
      %p436 = scmp.eq.s32.totalorder %s42, 3
      %p437 = por %p435, %p436
      %p439 = scmp.ne.s32.totalorder %s422, %s438
      %p440 = scmp.eq.s32.totalorder %s42, 0
      %p441 = por %p439, %p440
      %s442 = ssub.s32 %s44, %s51
      %p443 = scmp.eq.s32.totalorder %s442, 0
      %s445 = sadd.s32 %s444, 1
      %s446 = scalar_select %p443, %s444, %s445
      %p449 = pneg %p443
      %p450 = scmp.eq.s32.totalorder %s36, 3
      %p451 = por %p449, %p450
      %p452 = scmp.ne.s32.totalorder %s444, %s447
      %p453 = scmp.eq.s32.totalorder %s36, 0
      %p454 = por %p452, %p453
      %p455 = scmp.ne.s32.totalorder %s444, %s447
      %p456 = scmp.eq.s32.totalorder %s41, 3
      %p457 = por %p455, %p456
      %p458 = scmp.ne.s32.totalorder %s447, %s448
      %p459 = scmp.eq.s32.totalorder %s41, 0
      %p460 = por %p458, %p459
      %p461 = scmp.ne.s32.totalorder %s447, %s448
      %p462 = scmp.eq.s32.totalorder %s42, 3
      %p463 = por %p461, %p462
      %p465 = scmp.ne.s32.totalorder %s448, %s464
      %p466 = scmp.eq.s32.totalorder %s42, 0
      %p467 = por %p465, %p466
      %s468 = ssub.s32 %s44, %s51
      %p469 = scmp.eq.s32.totalorder %s468, 0
      %s471 = sadd.s32 %s470, 1
      %s472 = scalar_select %p469, %s470, %s471
      %p475 = pneg %p469
      %p476 = scmp.eq.s32.totalorder %s36, 3
      %p477 = por %p475, %p476
      %p478 = scmp.ne.s32.totalorder %s470, %s473
      %p479 = scmp.eq.s32.totalorder %s36, 0
      %p480 = por %p478, %p479
      %p481 = scmp.ne.s32.totalorder %s470, %s473
      %p482 = scmp.eq.s32.totalorder %s41, 3
      %p483 = por %p481, %p482
      %p484 = scmp.ne.s32.totalorder %s473, %s474
      %p485 = scmp.eq.s32.totalorder %s41, 0
      %p486 = por %p484, %p485
      %p487 = scmp.ne.s32.totalorder %s473, %s474
      %p488 = scmp.eq.s32.totalorder %s42, 3
      %p489 = por %p487, %p488
      %p491 = scmp.ne.s32.totalorder %s474, %s490
      %p492 = scmp.eq.s32.totalorder %s42, 0
      %p493 = por %p491, %p492
      %s494 = ssub.s32 %s44, %s51
      %p495 = scmp.eq.s32.totalorder %s494, 0
      %s497 = sadd.s32 %s496, 1
      %s498 = scalar_select %p495, %s496, %s497
      %p501 = pneg %p495
      %p502 = scmp.eq.s32.totalorder %s36, 3
      %p503 = por %p501, %p502
      %p504 = scmp.ne.s32.totalorder %s496, %s499
      %p505 = scmp.eq.s32.totalorder %s36, 0
      %p506 = por %p504, %p505
      %p507 = scmp.ne.s32.totalorder %s496, %s499
      %p508 = scmp.eq.s32.totalorder %s41, 3
      %p509 = por %p507, %p508
      %p510 = scmp.ne.s32.totalorder %s499, %s500
      %p511 = scmp.eq.s32.totalorder %s41, 0
      %p512 = por %p510, %p511
      %p513 = scmp.ne.s32.totalorder %s499, %s500
      %p514 = scmp.eq.s32.totalorder %s42, 3
      %p515 = por %p513, %p514
      %p517 = scmp.ne.s32.totalorder %s500, %s516
      %p518 = scmp.eq.s32.totalorder %s42, 0
      %p519 = por %p517, %p518
      %s520 = ssub.s32 %s44, %s51
      %p521 = scmp.eq.s32.totalorder %s520, 0
      %s523 = sadd.s32 %s522, 1
      %s524 = scalar_select %p521, %s522, %s523
      %p527 = pneg %p521
      %p528 = scmp.eq.s32.totalorder %s36, 3
      %p529 = por %p527, %p528
      %p530 = scmp.ne.s32.totalorder %s522, %s525
      %p531 = scmp.eq.s32.totalorder %s36, 0
      %p532 = por %p530, %p531
      %p533 = scmp.ne.s32.totalorder %s522, %s525
      %p534 = scmp.eq.s32.totalorder %s41, 3
      %p535 = por %p533, %p534
      %p536 = scmp.ne.s32.totalorder %s525, %s526
      %p537 = scmp.eq.s32.totalorder %s41, 0
      %p538 = por %p536, %p537
      %p539 = scmp.ne.s32.totalorder %s525, %s526
      %p540 = scmp.eq.s32.totalorder %s42, 3
      %p541 = por %p539, %p540
      %p543 = scmp.ne.s32.totalorder %s526, %s542
      %p544 = scmp.eq.s32.totalorder %s42, 0
      %p545 = por %p543, %p544
      %s546 = ssub.s32 %s44, %s51
      %p547 = scmp.eq.s32.totalorder %s546, 0
      %s549 = sadd.s32 %s548, 1
      %s550 = scalar_select %p547, %s548, %s549
      %p553 = pneg %p547
      %p554 = scmp.eq.s32.totalorder %s36, 3
      %p555 = por %p553, %p554
      %p556 = scmp.ne.s32.totalorder %s548, %s551
      %p557 = scmp.eq.s32.totalorder %s36, 0
      %p558 = por %p556, %p557
      %p559 = scmp.ne.s32.totalorder %s548, %s551
      %p560 = scmp.eq.s32.totalorder %s41, 3
      %p561 = por %p559, %p560
      %p562 = scmp.ne.s32.totalorder %s551, %s552
      %p563 = scmp.eq.s32.totalorder %s41, 0
      %p564 = por %p562, %p563
      %p565 = scmp.ne.s32.totalorder %s551, %s552
      %p566 = scmp.eq.s32.totalorder %s42, 3
      %p567 = por %p565, %p566
      %p569 = scmp.ne.s32.totalorder %s552, %s568
      %p570 = scmp.eq.s32.totalorder %s42, 0
      %p571 = por %p569, %p570
      %s572 = ssub.s32 %s44, %s51
      %p573 = scmp.eq.s32.totalorder %s572, 0
      %s575 = sadd.s32 %s574, 1
      %s576 = scalar_select %p573, %s574, %s575
      %p579 = pneg %p573
      %p580 = scmp.eq.s32.totalorder %s36, 3
      %p581 = por %p579, %p580
      %p582 = scmp.ne.s32.totalorder %s574, %s577
      %p583 = scmp.eq.s32.totalorder %s36, 0
      %p584 = por %p582, %p583
      %p585 = scmp.ne.s32.totalorder %s574, %s577
      %p586 = scmp.eq.s32.totalorder %s41, 3
      %p587 = por %p585, %p586
      %p588 = scmp.ne.s32.totalorder %s577, %s578
      %p589 = scmp.eq.s32.totalorder %s41, 0
      %p590 = por %p588, %p589
      %p591 = scmp.ne.s32.totalorder %s577, %s578
      %p592 = scmp.eq.s32.totalorder %s42, 3
      %p593 = por %p591, %p592
      %p595 = scmp.ne.s32.totalorder %s578, %s594
      %p596 = scmp.eq.s32.totalorder %s42, 0
      %p597 = por %p595, %p596
      %s598 = ssub.s32 %s44, %s51
      %p599 = scmp.eq.s32.totalorder %s598, 0
      %s601 = sadd.s32 %s600, 1
      %s602 = scalar_select %p599, %s600, %s601
      %p605 = pneg %p599
      %p606 = scmp.eq.s32.totalorder %s36, 3
      %p607 = por %p605, %p606
      %p608 = scmp.ne.s32.totalorder %s600, %s603
      %p609 = scmp.eq.s32.totalorder %s36, 0
      %p610 = por %p608, %p609
      %p611 = scmp.ne.s32.totalorder %s600, %s603
      %p612 = scmp.eq.s32.totalorder %s41, 3
      %p613 = por %p611, %p612
      %p614 = scmp.ne.s32.totalorder %s603, %s604
      %p615 = scmp.eq.s32.totalorder %s41, 0
      %p616 = por %p614, %p615
      %p617 = scmp.ne.s32.totalorder %s603, %s604
      %p618 = scmp.eq.s32.totalorder %s42, 3
      %p619 = por %p617, %p618
      %p621 = scmp.ne.s32.totalorder %s604, %s620
      %p622 = scmp.eq.s32.totalorder %s42, 0
      %p623 = por %p621, %p622
      %s624 = ssub.s32 %s44, %s51
      %p625 = scmp.eq.s32.totalorder %s624, 0
      %s627 = sadd.s32 %s626, 1
      %s628 = scalar_select %p625, %s626, %s627
      %p631 = pneg %p625
      %p632 = scmp.eq.s32.totalorder %s36, 3
      %p633 = por %p631, %p632
      %p634 = scmp.ne.s32.totalorder %s626, %s629
      %p635 = scmp.eq.s32.totalorder %s36, 0
      %p636 = por %p634, %p635
      %p637 = scmp.ne.s32.totalorder %s626, %s629
      %p638 = scmp.eq.s32.totalorder %s41, 3
      %p639 = por %p637, %p638
      %p640 = scmp.ne.s32.totalorder %s629, %s630
      %p641 = scmp.eq.s32.totalorder %s41, 0
      %p642 = por %p640, %p641
      %p643 = scmp.ne.s32.totalorder %s629, %s630
      %p644 = scmp.eq.s32.totalorder %s42, 3
      %p645 = por %p643, %p644
      %p647 = scmp.ne.s32.totalorder %s630, %s646
      %p648 = scmp.eq.s32.totalorder %s42, 0
      %p649 = por %p647, %p648
      %s650 = ssub.s32 %s44, %s51
      %p651 = scmp.eq.s32.totalorder %s650, 0
      %s653 = sadd.s32 %s652, 1
      %s654 = scalar_select %p651, %s652, %s653
      %p657 = pneg %p651
      %p658 = scmp.eq.s32.totalorder %s36, 3
      %p659 = por %p657, %p658
      %p660 = scmp.ne.s32.totalorder %s652, %s655
      %p661 = scmp.eq.s32.totalorder %s36, 0
      %p662 = por %p660, %p661
      %p663 = scmp.ne.s32.totalorder %s652, %s655
      %p664 = scmp.eq.s32.totalorder %s41, 3
      %p665 = por %p663, %p664
      %p666 = scmp.ne.s32.totalorder %s655, %s656
      %p667 = scmp.eq.s32.totalorder %s41, 0
      %p668 = por %p666, %p667
      %p669 = scmp.ne.s32.totalorder %s655, %s656
      %p670 = scmp.eq.s32.totalorder %s42, 3
      %p671 = por %p669, %p670
      %p673 = scmp.ne.s32.totalorder %s656, %s672
      %p674 = scmp.eq.s32.totalorder %s42, 0
      %p675 = por %p673, %p674
      %s677 = sadd.s32 %s676, 1
      %p680 = scmp.eq.s32.totalorder %s36, 3
      %p681 = scmp.ne.s32.totalorder %s676, %s678
      %p682 = scmp.eq.s32.totalorder %s36, 0
      %p683 = por %p681, %p682
      %p684 = scmp.ne.s32.totalorder %s676, %s678
      %p685 = scmp.eq.s32.totalorder %s41, 3
      %p686 = por %p684, %p685
      %p687 = scmp.ne.s32.totalorder %s678, %s679
      %p688 = scmp.eq.s32.totalorder %s41, 0
      %p689 = por %p687, %p688
      %p690 = scmp.ne.s32.totalorder %s678, %s679
      %p691 = scmp.eq.s32.totalorder %s42, 3
      %p692 = por %p690, %p691
      %p694 = scmp.ne.s32.totalorder %s679, %s693
      %p695 = scmp.eq.s32.totalorder %s42, 0
      %p696 = por %p694, %p695
      %s698 = sadd.s32 %s697, 1
      %p701 = scmp.eq.s32.totalorder %s36, 3
      %p702 = scmp.ne.s32.totalorder %s697, %s699
      %p703 = scmp.eq.s32.totalorder %s36, 0
      %p704 = por %p702, %p703
      %p705 = scmp.ne.s32.totalorder %s697, %s699
      %p706 = scmp.eq.s32.totalorder %s41, 3
      %p707 = por %p705, %p706
      %p708 = scmp.ne.s32.totalorder %s699, %s700
      %p709 = scmp.eq.s32.totalorder %s41, 0
      %p710 = por %p708, %p709
      %p711 = scmp.ne.s32.totalorder %s699, %s700
      %p712 = scmp.eq.s32.totalorder %s42, 3
      %p713 = por %p711, %p712
      %p715 = scmp.ne.s32.totalorder %s700, %s714
      %p716 = scmp.eq.s32.totalorder %s42, 0
      %p717 = por %p715, %p716
      %s718 = ssub.s32 %s43, %s55
      %p719 = scmp.eq.s32.totalorder %s718, 0
      %s721 = sadd.s32 %s720, 1
      %s722 = scalar_select %p719, %s720, %s721
      %p725 = pneg %p719
      %p726 = scmp.eq.s32.totalorder %s36, 3
      %p727 = por %p725, %p726
      %p728 = scmp.ne.s32.totalorder %s720, %s723
      %p729 = scmp.eq.s32.totalorder %s36, 0
      %p730 = por %p728, %p729
      %p731 = scmp.ne.s32.totalorder %s720, %s723
      %p732 = scmp.eq.s32.totalorder %s41, 3
      %p733 = por %p731, %p732
      %p734 = scmp.ne.s32.totalorder %s723, %s724
      %p735 = scmp.eq.s32.totalorder %s41, 0
      %p736 = por %p734, %p735
      %p737 = scmp.ne.s32.totalorder %s723, %s724
      %p738 = scmp.eq.s32.totalorder %s42, 3
      %p739 = por %p737, %p738
      %p741 = scmp.ne.s32.totalorder %s724, %s740
      %p742 = scmp.eq.s32.totalorder %s42, 0
      %p743 = por %p741, %p742
      %p744 = scmp.le.s32.totalorder 1, %s36
      %p745 = scmp.lt.s32.totalorder %s36, 5
      %p746 = pnand %p744, %p745
      %p747 = pneg %p746
      // Predicated region
      $region9: #{tpu_custom_call.1} parent=5 // pred_check
        _
      $region10: #{tpu_custom_call.1} parent=5 // pred_check_branch
        %749 = sbr.rel (%p746) target = $region12
      $region11: #{tpu_custom_call.1} parent=5 // pred_region
        %s750 = ssub.s32 %s36, 1
        // Predicated region
        $region13: #{tpu_custom_call.1} parent=11 // pred_check
          %p751 = pneg %p147
        $region14: #{tpu_custom_call.1} parent=11 // pred_check_branch
          %753 = sbr.rel (%p751) target = $region16
        $region15: #{tpu_custom_call.1} parent=11 // pred_region
          _
        $region16: #{tpu_custom_call.1} parent=11 // pred_fallthru
          _
        // Predicated region
        $region17: #{tpu_custom_call.1} parent=11 // pred_check
          %p754 = pneg %p168
        $region18: #{tpu_custom_call.1} parent=11 // pred_check_branch
          %756 = sbr.rel (%p754) target = $region20
        $region19: #{tpu_custom_call.1} parent=11 // pred_region
          _
        $region20: #{tpu_custom_call.1} parent=11 // pred_fallthru
          _
        // Predicated region
        $region21: #{tpu_custom_call.1} parent=11 // pred_check
          %p757 = pneg %p189
        $region22: #{tpu_custom_call.1} parent=11 // pred_check_branch
          %759 = sbr.rel (%p757) target = $region24
        $region23: #{tpu_custom_call.1} parent=11 // pred_region
          _
        $region24: #{tpu_custom_call.1} parent=11 // pred_fallthru
          _
        // Predicated region
        $region25: #{tpu_custom_call.1} parent=11 // pred_check
          %p760 = pneg %p210
        $region26: #{tpu_custom_call.1} parent=11 // pred_check_branch
          %762 = sbr.rel (%p760) target = $region28
        $region27: #{tpu_custom_call.1} parent=11 // pred_region
          _
        $region28: #{tpu_custom_call.1} parent=11 // pred_fallthru
          _
        // Predicated region
        $region29: #{tpu_custom_call.1} parent=11 // pred_check
          %p763 = pneg %p231
        $region30: #{tpu_custom_call.1} parent=11 // pred_check_branch
          %765 = sbr.rel (%p763) target = $region32
        $region31: #{tpu_custom_call.1} parent=11 // pred_region
          _
        $region32: #{tpu_custom_call.1} parent=11 // pred_fallthru
          _
        // Predicated region
        $region33: #{tpu_custom_call.1} parent=11 // pred_check
          %p766 = pneg %p252
        $region34: #{tpu_custom_call.1} parent=11 // pred_check_branch
          %768 = sbr.rel (%p766) target = $region36
        $region35: #{tpu_custom_call.1} parent=11 // pred_region
          _
        $region36: #{tpu_custom_call.1} parent=11 // pred_fallthru
          _
        // Predicated region
        $region37: #{tpu_custom_call.1} parent=11 // pred_check
          %p769 = pneg %p689
        $region38: #{tpu_custom_call.1} parent=11 // pred_check_branch
          %771 = sbr.rel (%p769) target = $region40
        $region39: #{tpu_custom_call.1} parent=11 // pred_region
          _
        $region40: #{tpu_custom_call.1} parent=11 // pred_fallthru
          _
        // Predicated region
        $region41: #{tpu_custom_call.1} parent=11 // pred_check
          %p772 = pneg %p710
        $region42: #{tpu_custom_call.1} parent=11 // pred_check_branch
          %774 = sbr.rel (%p772) target = $region44
        $region43: #{tpu_custom_call.1} parent=11 // pred_region
          _
        $region44: #{tpu_custom_call.1} parent=11 // pred_fallthru
          _
      $region12: #{tpu_custom_call.1} parent=5 // pred_fallthru
        _
      %p775 = scmp.lt.s32.totalorder %s36, 4
      // Predicated region
      $region45: #{tpu_custom_call.1} parent=5 // pred_check
        %p776 = pneg %p775
      $region46: #{tpu_custom_call.1} parent=5 // pred_check_branch
        %778 = sbr.rel (%p776) target = $region48
      $region47: #{tpu_custom_call.1} parent=5 // pred_region
        // Predicated region
        $region49: #{tpu_custom_call.1} parent=47 // pred_check
          %p779 = pneg %p68
        $region50: #{tpu_custom_call.1} parent=47 // pred_check_branch
          %781 = sbr.rel (%p779) target = $region52
        $region51: #{tpu_custom_call.1} parent=47 // pred_region
          %p782 = scmp.lt.s32.totalorder %s43, 1
          %s783 = scalar_select %p782, %s43, 1
          %s784 = smul.addr %s783, 8
          %s785 = scalar_lea.vmem %s0, %s784
        $region52: #{tpu_custom_call.1} parent=47 // pred_fallthru
          _
        // Predicated region
        $region53: #{tpu_custom_call.1} parent=47 // pred_check
          %p786 = pneg %p94
        $region54: #{tpu_custom_call.1} parent=47 // pred_check_branch
          %788 = sbr.rel (%p786) target = $region56
        $region55: #{tpu_custom_call.1} parent=47 // pred_region
          %p789 = scmp.lt.s32.totalorder %s43, 1
          %s790 = scalar_select %p789, %s43, 1
          %s791 = smul.addr %s790, 8
          %s792 = scalar_lea.vmem %s1, %s791
        $region56: #{tpu_custom_call.1} parent=47 // pred_fallthru
          _
        // Predicated region
        $region57: #{tpu_custom_call.1} parent=47 // pred_check
          %p793 = pneg %p120
        $region58: #{tpu_custom_call.1} parent=47 // pred_check_branch
          %795 = sbr.rel (%p793) target = $region60
        $region59: #{tpu_custom_call.1} parent=47 // pred_region
          %p796 = scmp.lt.s32.totalorder %s43, 1
          %s797 = scalar_select %p796, %s43, 1
          %s798 = smul.addr %s797, 8
          %s799 = scalar_lea.vmem %s2, %s798
        $region60: #{tpu_custom_call.1} parent=47 // pred_fallthru
          _
        // Predicated region
        $region61: #{tpu_custom_call.1} parent=47 // pred_check
          %p800 = pneg %p272
        $region62: #{tpu_custom_call.1} parent=47 // pred_check_branch
          %802 = sbr.rel (%p800) target = $region64
        $region63: #{tpu_custom_call.1} parent=47 // pred_region
          %p803 = scmp.lt.s32.totalorder %s44, 1
          %s804 = scalar_select %p803, %s44, 1
          %s805 = scalar_lea.vmem %s9, %s804
        $region64: #{tpu_custom_call.1} parent=47 // pred_fallthru
          _
        // Predicated region
        $region65: #{tpu_custom_call.1} parent=47 // pred_check
          %p806 = pneg %p298
        $region66: #{tpu_custom_call.1} parent=47 // pred_check_branch
          %808 = sbr.rel (%p806) target = $region68
        $region67: #{tpu_custom_call.1} parent=47 // pred_region
          %p809 = scmp.lt.s32.totalorder %s44, 1
          %s810 = scalar_select %p809, %s44, 1
          %s811 = scalar_lea.vmem %s10, %s810
        $region68: #{tpu_custom_call.1} parent=47 // pred_fallthru
          _
        // Predicated region
        $region69: #{tpu_custom_call.1} parent=47 // pred_check
          %p812 = pneg %p324
        $region70: #{tpu_custom_call.1} parent=47 // pred_check_branch
          %814 = sbr.rel (%p812) target = $region72
        $region71: #{tpu_custom_call.1} parent=47 // pred_region
          %p815 = scmp.lt.s32.totalorder %s44, 1
          %s816 = scalar_select %p815, %s44, 1
          %s817 = smul.addr %s816, 4
          %s818 = smul.addr %s817, 8
          %s819 = scalar_lea.vmem %s11, %s818
        $region72: #{tpu_custom_call.1} parent=47 // pred_fallthru
          _
        // Predicated region
        $region73: #{tpu_custom_call.1} parent=47 // pred_check
          %p820 = pneg %p350
        $region74: #{tpu_custom_call.1} parent=47 // pred_check_branch
          %822 = sbr.rel (%p820) target = $region76
        $region75: #{tpu_custom_call.1} parent=47 // pred_region
          %p823 = scmp.lt.s32.totalorder %s44, 1
          %s824 = scalar_select %p823, %s44, 1
          %s825 = smul.addr %s824, 4
          %s826 = smul.addr %s825, 8
          %s827 = scalar_lea.vmem %s12, %s826
        $region76: #{tpu_custom_call.1} parent=47 // pred_fallthru
          _
        // Predicated region
        $region77: #{tpu_custom_call.1} parent=47 // pred_check
          %p828 = pneg %p376
        $region78: #{tpu_custom_call.1} parent=47 // pred_check_branch
          %830 = sbr.rel (%p828) target = $region80
        $region79: #{tpu_custom_call.1} parent=47 // pred_region
          %p831 = scmp.lt.s32.totalorder %s44, 1
          %s832 = scalar_select %p831, %s44, 1
          %s833 = smul.addr %s832, 4
          %s834 = smul.addr %s833, 8
          %s835 = scalar_lea.vmem %s13, %s834
        $region80: #{tpu_custom_call.1} parent=47 // pred_fallthru
          _
        // Predicated region
        $region81: #{tpu_custom_call.1} parent=47 // pred_check
          %p836 = pneg %p402
        $region82: #{tpu_custom_call.1} parent=47 // pred_check_branch
          %838 = sbr.rel (%p836) target = $region84
        $region83: #{tpu_custom_call.1} parent=47 // pred_region
          %p839 = scmp.lt.s32.totalorder %s44, 1
          %s840 = scalar_select %p839, %s44, 1
          %s841 = scalar_lea.vmem %s14, %s840
        $region84: #{tpu_custom_call.1} parent=47 // pred_fallthru
          _
        // Predicated region
        $region85: #{tpu_custom_call.1} parent=47 // pred_check
          %p842 = pneg %p428
        $region86: #{tpu_custom_call.1} parent=47 // pred_check_branch
          %844 = sbr.rel (%p842) target = $region88
        $region87: #{tpu_custom_call.1} parent=47 // pred_region
          %p845 = scmp.lt.s32.totalorder %s44, 1
          %s846 = scalar_select %p845, %s44, 1
          %s847 = scalar_lea.vmem %s15, %s846
        $region88: #{tpu_custom_call.1} parent=47 // pred_fallthru
          _
        // Predicated region
        $region89: #{tpu_custom_call.1} parent=47 // pred_check
          %p848 = pneg %p454
        $region90: #{tpu_custom_call.1} parent=47 // pred_check_branch
          %850 = sbr.rel (%p848) target = $region92
        $region91: #{tpu_custom_call.1} parent=47 // pred_region
          %p851 = scmp.lt.s32.totalorder %s44, 1
          %s852 = scalar_select %p851, %s44, 1
          %s853 = scalar_lea.vmem %s16, %s852
        $region92: #{tpu_custom_call.1} parent=47 // pred_fallthru
          _
        // Predicated region
        $region93: #{tpu_custom_call.1} parent=47 // pred_check
          %p854 = pneg %p480
        $region94: #{tpu_custom_call.1} parent=47 // pred_check_branch
          %856 = sbr.rel (%p854) target = $region96
        $region95: #{tpu_custom_call.1} parent=47 // pred_region
          %p857 = scmp.lt.s32.totalorder %s44, 1
          %s858 = scalar_select %p857, %s44, 1
          %s859 = smul.addr %s858, 4
          %s860 = smul.addr %s859, 8
          %s861 = scalar_lea.vmem %s17, %s860
        $region96: #{tpu_custom_call.1} parent=47 // pred_fallthru
          _
        // Predicated region
        $region97: #{tpu_custom_call.1} parent=47 // pred_check
          %p862 = pneg %p506
        $region98: #{tpu_custom_call.1} parent=47 // pred_check_branch
          %864 = sbr.rel (%p862) target = $region100
        $region99: #{tpu_custom_call.1} parent=47 // pred_region
          %p865 = scmp.lt.s32.totalorder %s44, 1
          %s866 = scalar_select %p865, %s44, 1
          %s867 = scalar_lea.vmem %s18, %s866
        $region100: #{tpu_custom_call.1} parent=47 // pred_fallthru
          _
        // Predicated region
        $region101: #{tpu_custom_call.1} parent=47 // pred_check
          %p868 = pneg %p532
        $region102: #{tpu_custom_call.1} parent=47 // pred_check_branch
          %870 = sbr.rel (%p868) target = $region104
        $region103: #{tpu_custom_call.1} parent=47 // pred_region
          %p871 = scmp.lt.s32.totalorder %s44, 1
          %s872 = scalar_select %p871, %s44, 1
          %s873 = scalar_lea.vmem %s19, %s872
        $region104: #{tpu_custom_call.1} parent=47 // pred_fallthru
          _
        // Predicated region
        $region105: #{tpu_custom_call.1} parent=47 // pred_check
          %p874 = pneg %p558
        $region106: #{tpu_custom_call.1} parent=47 // pred_check_branch
          %876 = sbr.rel (%p874) target = $region108
        $region107: #{tpu_custom_call.1} parent=47 // pred_region
          %p877 = scmp.lt.s32.totalorder %s44, 1
          %s878 = scalar_select %p877, %s44, 1
          %s879 = scalar_lea.vmem %s20, %s878
        $region108: #{tpu_custom_call.1} parent=47 // pred_fallthru
          _
        // Predicated region
        $region109: #{tpu_custom_call.1} parent=47 // pred_check
          %p880 = pneg %p584
        $region110: #{tpu_custom_call.1} parent=47 // pred_check_branch
          %882 = sbr.rel (%p880) target = $region112
        $region111: #{tpu_custom_call.1} parent=47 // pred_region
          %p883 = scmp.lt.s32.totalorder %s44, 1
          %s884 = scalar_select %p883, %s44, 1
          %s885 = smul.addr %s884, 4
          %s886 = smul.addr %s885, 8
          %s887 = scalar_lea.vmem %s21, %s886
        $region112: #{tpu_custom_call.1} parent=47 // pred_fallthru
          _
        // Predicated region
        $region113: #{tpu_custom_call.1} parent=47 // pred_check
          %p888 = pneg %p610
        $region114: #{tpu_custom_call.1} parent=47 // pred_check_branch
          %890 = sbr.rel (%p888) target = $region116
        $region115: #{tpu_custom_call.1} parent=47 // pred_region
          %p891 = scmp.lt.s32.totalorder %s44, 1
          %s892 = scalar_select %p891, %s44, 1
          %s893 = scalar_lea.vmem %s22, %s892
        $region116: #{tpu_custom_call.1} parent=47 // pred_fallthru
          _
        // Predicated region
        $region117: #{tpu_custom_call.1} parent=47 // pred_check
          %p894 = pneg %p636
        $region118: #{tpu_custom_call.1} parent=47 // pred_check_branch
          %896 = sbr.rel (%p894) target = $region120
        $region119: #{tpu_custom_call.1} parent=47 // pred_region
          %p897 = scmp.lt.s32.totalorder %s44, 1
          %s898 = scalar_select %p897, %s44, 1
          %s899 = smul.addr %s898, 16
          %s900 = smul.addr %s899, 8
          %s901 = scalar_lea.vmem %s23, %s900
        $region120: #{tpu_custom_call.1} parent=47 // pred_fallthru
          _
        // Predicated region
        $region121: #{tpu_custom_call.1} parent=47 // pred_check
          %p902 = pneg %p662
        $region122: #{tpu_custom_call.1} parent=47 // pred_check_branch
          %904 = sbr.rel (%p902) target = $region124
        $region123: #{tpu_custom_call.1} parent=47 // pred_region
          %p905 = scmp.lt.s32.totalorder %s44, 1
          %s906 = scalar_select %p905, %s44, 1
          %s907 = scalar_lea.vmem %s24, %s906
        $region124: #{tpu_custom_call.1} parent=47 // pred_fallthru
          _
      $region48: #{tpu_custom_call.1} parent=5 // pred_fallthru
        _
      %p908 = scmp.le.s32.totalorder 1, %s36
      %p909 = scmp.lt.s32.totalorder %s36, 5
      %p910 = pnand %p908, %p909
      %p911 = pneg %p910
      // Predicated region
      $region125: #{tpu_custom_call.1} parent=5 // pred_check
        _
      $region126: #{tpu_custom_call.1} parent=5 // pred_check_branch
        %913 = sbr.rel (%p910) target = $region128
      $region127: #{tpu_custom_call.1} parent=5 // pred_region
        %s914 = ssub.s32 %s36, 1
        %p915 = scmp.lt.s32.totalorder %s45, 1
        %s916 = scalar_select %p915, %s45, 1
        %s917 = smul.addr %s916, 8
        %s918 = scalar_lea.vmem %s0, %s917
        %p919 = pneg %p74
        %p920 = pneg %p71
        %p921 = scmp.lt.s32.totalorder %s45, 1
        %s922 = scalar_select %p921, %s45, 1
        %s923 = smul.addr %s922, 8
        %s924 = scalar_lea.vmem %s1, %s923
        %p925 = pneg %p100
        %p926 = pneg %p97
        %p927 = scmp.lt.s32.totalorder %s45, 1
        %s928 = scalar_select %p927, %s45, 1
        %s929 = smul.addr %s928, 8
        %s930 = scalar_lea.vmem %s2, %s929
        %p931 = pneg %p126
        %p932 = pneg %p123
        %p933 = pneg %p147
        %p934 = pneg %p144
        %p935 = pneg %p168
        %p936 = pneg %p165
        %p937 = pneg %p189
        %p938 = pneg %p186
        %p939 = pneg %p210
        %p940 = pneg %p207
        %p941 = pneg %p231
        %p942 = pneg %p228
        %p943 = pneg %p252
        %p944 = pneg %p249
        %p945 = scmp.lt.s32.totalorder %s46, 1
        %s946 = scalar_select %p945, %s46, 1
        %s947 = scalar_lea.vmem %s9, %s946
        %p948 = pneg %p278
        %p949 = pneg %p275
        %p950 = scmp.lt.s32.totalorder %s46, 1
        %s951 = scalar_select %p950, %s46, 1
        %s952 = scalar_lea.vmem %s10, %s951
        %p953 = pneg %p304
        %p954 = pneg %p301
        %p955 = scmp.lt.s32.totalorder %s46, 1
        %s956 = scalar_select %p955, %s46, 1
        %s957 = smul.addr %s956, 4
        %s958 = smul.addr %s957, 8
        %s959 = scalar_lea.vmem %s11, %s958
        %p960 = pneg %p330
        %p961 = pneg %p327
        %p962 = scmp.lt.s32.totalorder %s46, 1
        %s963 = scalar_select %p962, %s46, 1
        %s964 = smul.addr %s963, 4
        %s965 = smul.addr %s964, 8
        %s966 = scalar_lea.vmem %s12, %s965
        %p967 = pneg %p356
        %p968 = pneg %p353
        %p969 = scmp.lt.s32.totalorder %s46, 1
        %s970 = scalar_select %p969, %s46, 1
        %s971 = smul.addr %s970, 4
        %s972 = smul.addr %s971, 8
        %s973 = scalar_lea.vmem %s13, %s972
        %p974 = pneg %p382
        %p975 = pneg %p379
        %p976 = scmp.lt.s32.totalorder %s46, 1
        %s977 = scalar_select %p976, %s46, 1
        %s978 = scalar_lea.vmem %s14, %s977
        %p979 = pneg %p408
        %p980 = pneg %p405
        %p981 = scmp.lt.s32.totalorder %s46, 1
        %s982 = scalar_select %p981, %s46, 1
        %s983 = scalar_lea.vmem %s15, %s982
        %p984 = pneg %p434
        %p985 = pneg %p431
        %p986 = scmp.lt.s32.totalorder %s46, 1
        %s987 = scalar_select %p986, %s46, 1
        %s988 = scalar_lea.vmem %s16, %s987
        %p989 = pneg %p460
        %p990 = pneg %p457
        %p991 = scmp.lt.s32.totalorder %s46, 1
        %s992 = scalar_select %p991, %s46, 1
        %s993 = smul.addr %s992, 4
        %s994 = smul.addr %s993, 8
        %s995 = scalar_lea.vmem %s17, %s994
        %p996 = pneg %p486
        %p997 = pneg %p483
        %p998 = scmp.lt.s32.totalorder %s46, 1
        %s999 = scalar_select %p998, %s46, 1
        %s1000 = scalar_lea.vmem %s18, %s999
        %p1001 = pneg %p512
        %p1002 = pneg %p509
        %p1003 = scmp.lt.s32.totalorder %s46, 1
        %s1004 = scalar_select %p1003, %s46, 1
        %s1005 = scalar_lea.vmem %s19, %s1004
        %p1006 = pneg %p538
        %p1007 = pneg %p535
        %p1008 = scmp.lt.s32.totalorder %s46, 1
        %s1009 = scalar_select %p1008, %s46, 1
        %s1010 = scalar_lea.vmem %s20, %s1009
        %p1011 = pneg %p564
        %p1012 = pneg %p561
        %p1013 = scmp.lt.s32.totalorder %s46, 1
        %s1014 = scalar_select %p1013, %s46, 1
        %s1015 = smul.addr %s1014, 4
        %s1016 = smul.addr %s1015, 8
        %s1017 = scalar_lea.vmem %s21, %s1016
        %p1018 = pneg %p590
        %p1019 = pneg %p587
        %p1020 = scmp.lt.s32.totalorder %s46, 1
        %s1021 = scalar_select %p1020, %s46, 1
        %s1022 = scalar_lea.vmem %s22, %s1021
        %p1023 = pneg %p616
        %p1024 = pneg %p613
        %p1025 = scmp.lt.s32.totalorder %s46, 1
        %s1026 = scalar_select %p1025, %s46, 1
        %s1027 = smul.addr %s1026, 16
        %s1028 = smul.addr %s1027, 8
        %s1029 = scalar_lea.vmem %s23, %s1028
        %p1030 = pneg %p642
        %p1031 = pneg %p639
        %p1032 = scmp.lt.s32.totalorder %s46, 1
        %s1033 = scalar_select %p1032, %s46, 1
        %s1034 = scalar_lea.vmem %s24, %s1033
        %p1035 = pneg %p668
        %p1036 = pneg %p665
        %p1037 = pneg %p689
        %p1038 = pneg %p686
        %p1039 = pneg %p710
        %p1040 = pneg %p707
        %p1041 = pneg %p736
        %p1042 = pneg %p733
        %s1043 = sand.u32 %s723, 1
        %s1044 = scalar_lea.sflag [#allocation4], %s1043
        %s1045 = sand.u32 %s723, 1
        %s1046 = smul.addr %s1045, 8
        %s1047 = scalar_lea.vmem [#allocation3], %s1046
        %p1048 = scmp.lt.s32.totalorder %s45, 1
        %s1049 = scalar_select %p1048, %s45, 1
        %s1050 = smul.addr %s1049, 8
        %s1051 = scalar_lea.vmem %s0, %s1050
        %p1052 = scmp.lt.s32.totalorder %s45, 1
        %s1053 = scalar_select %p1052, %s45, 1
        %s1054 = smul.addr %s1053, 8
        %s1055 = scalar_lea.vmem %s1, %s1054
        %p1056 = scmp.lt.s32.totalorder %s45, 1
        %s1057 = scalar_select %p1056, %s45, 1
        %s1058 = smul.addr %s1057, 8
        %s1059 = scalar_lea.vmem %s2, %s1058
        %p1060 = scmp.lt.s32.totalorder %s46, 1
        %s1061 = scalar_select %p1060, %s46, 1
        %s1062 = scalar_lea.vmem %s9, %s1061
        %p1063 = scmp.lt.s32.totalorder %s46, 1
        %s1064 = scalar_select %p1063, %s46, 1
        %s1065 = scalar_lea.vmem %s10, %s1064
        %p1066 = scmp.lt.s32.totalorder %s46, 1
        %s1067 = scalar_select %p1066, %s46, 1
        %s1068 = smul.addr %s1067, 4
        %s1069 = smul.addr %s1068, 8
        %s1070 = scalar_lea.vmem %s11, %s1069
        %p1071 = scmp.lt.s32.totalorder %s46, 1
        %s1072 = scalar_select %p1071, %s46, 1
        %s1073 = smul.addr %s1072, 4
        %s1074 = smul.addr %s1073, 8
        %s1075 = scalar_lea.vmem %s12, %s1074
        %p1076 = scmp.lt.s32.totalorder %s46, 1
        %s1077 = scalar_select %p1076, %s46, 1
        %s1078 = smul.addr %s1077, 4
        %s1079 = smul.addr %s1078, 8
        %s1080 = scalar_lea.vmem %s13, %s1079
        %p1081 = scmp.lt.s32.totalorder %s46, 1
        %s1082 = scalar_select %p1081, %s46, 1
        %s1083 = scalar_lea.vmem %s14, %s1082
        %p1084 = scmp.lt.s32.totalorder %s46, 1
        %s1085 = scalar_select %p1084, %s46, 1
        %s1086 = scalar_lea.vmem %s15, %s1085
        %p1087 = scmp.lt.s32.totalorder %s46, 1
        %s1088 = scalar_select %p1087, %s46, 1
        %s1089 = scalar_lea.vmem %s16, %s1088
        %p1090 = scmp.lt.s32.totalorder %s46, 1
        %s1091 = scalar_select %p1090, %s46, 1
        %s1092 = smul.addr %s1091, 4
        %s1093 = smul.addr %s1092, 8
        %s1094 = scalar_lea.vmem %s17, %s1093
        %p1095 = scmp.lt.s32.totalorder %s46, 1
        %s1096 = scalar_select %p1095, %s46, 1
        %s1097 = scalar_lea.vmem %s18, %s1096
        %p1098 = scmp.lt.s32.totalorder %s46, 1
        %s1099 = scalar_select %p1098, %s46, 1
        %s1100 = scalar_lea.vmem %s19, %s1099
        %p1101 = scmp.lt.s32.totalorder %s46, 1
        %s1102 = scalar_select %p1101, %s46, 1
        %s1103 = scalar_lea.vmem %s20, %s1102
        %p1104 = scmp.lt.s32.totalorder %s46, 1
        %s1105 = scalar_select %p1104, %s46, 1
        %s1106 = smul.addr %s1105, 4
        %s1107 = smul.addr %s1106, 8
        %s1108 = scalar_lea.vmem %s21, %s1107
        %p1109 = scmp.lt.s32.totalorder %s46, 1
        %s1110 = scalar_select %p1109, %s46, 1
        %s1111 = scalar_lea.vmem %s22, %s1110
        %p1112 = scmp.lt.s32.totalorder %s46, 1
        %s1113 = scalar_select %p1112, %s46, 1
        %s1114 = smul.addr %s1113, 16
        %s1115 = smul.addr %s1114, 8
        %s1116 = scalar_lea.vmem %s23, %s1115
        %p1117 = scmp.lt.s32.totalorder %s46, 1
        %s1118 = scalar_select %p1117, %s46, 1
        %s1119 = scalar_lea.vmem %s24, %s1118
        %p1120 = scmp.eq.s32.totalorder %s46, 0
        // Predicated region
        $region129: #{tpu_custom_call.1} parent=127 // pred_check
          %p1121 = pneg %p1120
        $region130: #{tpu_custom_call.1} parent=127 // pred_check_branch
          %1123 = sbr.rel (%p1121) target = $region132
        $region131: #{tpu_custom_call.1} parent=127 // pred_region
          %v1124 = vld [vmem:[%s1051] sm:$0xff]
          %v1125 = vadd.f32 %v1124, 1e-05
          %v1126 = vlog2.pop %v1125
          %v1127 = vmul.f32 %v1126, 0.6931472
          %v1128 = vld [vmem:[%s3] sm:$0x1]
          %1130 = vset.pattern.permute.xlu0 0
          %1131 = vperm.xlu0 %1130, %v1127
          %v1132 = vpop.permute.xlu0 %1131
          %v1135 = vlaneseq
          %v1136 = vshrl.u32 %v1135, 7
          %v1137 = vsub.s32 0, %v1136
          %v1138 = vrot.slane %v1128, %v1137
          %v1140 = vmul.f32 %v1132, %v1138
          %v1141 = vld [vmem:[%s4] sm:$0x1]
          %v1143 = vlaneseq
          %v1144 = vshrl.u32 %v1143, 7
          %v1145 = vsub.s32 0, %v1144
          %v1146 = vrot.slane %v1141, %v1145
          %v1148 = vadd.f32 %v1140, %v1146
          %v1149 = vlaneseq
          %v1150 = vand.u32 %v1149, 127
          %vm1151 = vcmp.eq.s32.totalorder %v1150, 0
          %v1152 = vand.u32 2147483647, %v1148
          %vm1153 = vcmp.le.f32.partialorder %v1152, 0.7853982
          %vm1154 = vcmp.lt.s32.totalorder %v1148, 0
          %v1155 = vand.u32 %v1148, 2139095040
          %v1156 = vshrl.u32 %v1155, 23
          %v1157 = vsub.s32 %v1156, 127
          %v1158 = vand.u32 2147483647, %v1148
          %v1159 = vand.u32 %v1158, 8388607
          %v1160 = vor.u32 %v1159, 8388608
          %v1161 = vsub.s32 0, %v1160
          %v1162 = vadd.s32 %v1157, 1
          %vm1163 = vcmp.gt.s32.totalorder %v1162, 0
          %v1164 = vsel %vm1163, %v1162, 0
          %v1165 = vshrl.u32 %v1164, 5
          %v1166 = vand.u32 %v1164, 31
          %v1167 = vsub.s32 32, %v1166
          %v1168 = vshrl.u32 683565275, %v1167
          %v1169 = vshll.u32 683565275, %v1166
          %v1170 = vshrl.u32 2475754826, %v1167
          %v1171 = vor.u32 %v1169, %v1170
          %v1172 = vshll.u32 2475754826, %v1166
          %v1173 = vshrl.u32 2131351028, %v1167
          %v1174 = vor.u32 %v1172, %v1173
          %v1175 = vshll.u32 2131351028, %v1166
          %v1176 = vshrl.u32 2102212464, %v1167
          %v1177 = vor.u32 %v1175, %v1176
          %v1178 = vshll.u32 2102212464, %v1166
          %v1179 = vshrl.u32 920167782, %v1167
          %v1180 = vor.u32 %v1178, %v1179
          %v1181 = vshll.u32 920167782, %v1166
          %v1182 = vshrl.u32 1326507024, %v1167
          %v1183 = vor.u32 %v1181, %v1182
          %vm1184 = vcmp.lt.s32.totalorder %v1165, 1
          %vm1185 = vcmp.lt.s32.totalorder %v1165, 2
          %vm1186 = vcmp.lt.s32.totalorder %v1165, 3
          %vm1187 = vcmp.lt.s32.totalorder %v1165, 4
          %v1188 = vsel %vm1184, %v1168, %v1171
          %v1189 = vsel %vm1187, %v1177, 2102212464
          %v1190 = vsel %vm1186, %v1174, %v1189
          %v1191 = vsel %vm1185, %v1188, %v1190
          %v1192 = vsel %vm1184, %v1171, %v1174
          %v1193 = vsel %vm1187, %v1180, 920167782
          %v1194 = vsel %vm1186, %v1177, %v1193
          %v1195 = vsel %vm1185, %v1192, %v1194
          %v1196 = vsel %vm1184, %v1174, %v1177
          %v1197 = vsel %vm1187, %v1183, 1326507024
          %v1198 = vsel %vm1186, %v1180, %v1197
          %v1199 = vsel %vm1185, %v1196, %v1198
          %v1200 = vshll.u32 %v1160, 8
          %v1201 = vmul.u32.u64.compose %v1200, %v1199
          %v1202 = vextract.low.u32 %v1201
          %v1203 = vextract.high.u32 %v1201
          %v1204 = vmul.u32.u64.compose %v1200, %v1195
          %v1205 = vextract.low.u32 %v1204
          %v1206 = vextract.high.u32 %v1204
          %v1207 = vmul.u32 %v1200, %v1191
          %v1208 = vadd.s32 %v1203, %v1205
          %vm1209 = vc.u32 %v1203, %v1205
          %v1210 = vadd.s32 %v1206, 1
          %v1211 = vsel %vm1209, %v1210, %v1206
          %v1212 = vadd.s32 %v1207, %v1211
          %v1213 = vadd.s32 %v1212, 536870912
          %v1214 = vshrl.u32 %v1213, 30
          %v1215 = vshll.u32 %v1214, 30
          %v1216 = vsub.s32 %v1212, %v1215
          %vm1217 = vcmp.lt.s32.totalorder %v1216, 0
          %v1218 = vsub.s32 0, %v1216
          %v1219 = vsel %vm1217, %v1218, %v1216
          %v1220 = vclz %v1219
          %v1221 = vsub.s32 %v1220, 2
          %vm1222 = vcmp.gt.s32.totalorder 0, %v1221
          %v1223 = vsel %vm1222, 0, %v1221
          %v1224 = vsub.s32 32, %v1223
          %v1225 = vshll.u32 %v1216, %v1223
          %v1226 = vshrl.u32 %v1208, %v1224
          %v1227 = vor.u32 %v1225, %v1226
          %v1228 = vsub.s32 4294967266, %v1223
          %v1229 = vadd.s32 %v1228, 127
          %v1230 = vshll.u32 %v1229, 23
          %v1231 = vor.u32 4788187, %v1230
          %v1232 = vand.u32 2147483647, %v1231
          %v1234 = vcvt.s32.f32 %v1227
          %v1235 = vmul.f32 %v1234, %v1232
          %v1236 = vxor.u32 %v1235, 2147483648
          %v1237 = vsel %vm1154, %v1236, %v1235
          %v1238 = vsub.s32 4, %v1214
          %v1239 = vsel %vm1154, %v1238, %v1214
          %v1240 = vsel %vm1153, %v1148, %v1237
          %v1241 = vsel %vm1153, 0, %v1239
          %v1242 = vcosq.f32.pop %v1240
          %v1243 = vsinq.f32.pop %v1240
          %vm1244 = vweird.f32 %v1148
          %v1245 = vadd.s32 %v1241, 3
          %v1246 = vand.u32 %v1245, 3
          %vm1247 = vcmp.lt.s32.totalorder %v1246, 2
          %vm1248 = vcmp.eq.s32.totalorder %v1246, 0
          %v1249 = vxor.u32 %v1243, 2147483648
          %v1250 = vsel %vm1248, %v1242, %v1249
          %vm1251 = vcmp.eq.s32.totalorder %v1246, 2
          %v1252 = vxor.u32 %v1242, 2147483648
          %v1253 = vsel %vm1251, %v1252, %v1243
          %v1254 = vsel %vm1247, %v1250, %v1253
          %v1255 = vsel %vm1244, nan, %v1254
          %v1256 = vsel %vm1151, %v1148, %v1255
          %v1257 = vld [vmem:[%s1055] sm:$0xff]
          %v1258 = vld [vmem:[%s5] sm:$0xf]
          %v1259 = vld [vmem:[%s1059] sm:$0xff]
          %v1260 = vld [vmem:[%s6] sm:$0xf]
          %vm1261 = vcmask 31744
          %v1263 = vsel %vm1261, %v1259, 0
          %vm1265 = vcmask 1043456
          %v1267 = vsel %vm1265, %v1260, 0
          %1269 = vmatprep.subr.mxu0 0.0
          %1270 = vmatpush1.msra.mxu0 %v1267
          %1271 = vmatprep.subr.mxu0 0.0
          %1272 = vmatpush1.msra.mxu0 0.0
          %1273 = vmatprep.subr.mxu0 0.0
          %1274 = vmatpush1.msra.mxu0 0.0
          %1275 = vmatprep.subr.mxu0 0.0
          %1276 = vmatpush1.msra.mxu0 0.0
          %1277 = vmatprep.subr.mxu0 0.0
          %1278 = vmatpush1.msra.mxu0 0.0
          %1279 = vmatprep.subr.mxu0 0.0
          %1280 = vmatpush1.msra.mxu0 0.0
          %1281 = vmatprep.subr.mxu0 0.0
          %1282 = vmatpush1.msra.mxu0 0.0
          %1283 = vmatprep.subr.mxu0 0.0
          %1284 = vmatpush1.msra.mxu0 0.0
          %1285 = vmatprep.subr.mxu0 0.0
          %1286 = vmatpush1.msra.mxu0 0.0
          %1287 = vmatprep.subr.mxu0 0.0
          %1288 = vmatpush1.msra.mxu0 0.0
          %1289 = vmatprep.subr.mxu0 0.0
          %1290 = vmatpush1.msra.mxu0 0.0
          %1291 = vmatprep.subr.mxu0 0.0
          %1292 = vmatpush1.msra.mxu0 0.0
          %1293 = vmatprep.subr.mxu0 0.0
          %1294 = vmatpush1.msra.mxu0 0.0
          %1295 = vmatprep.subr.mxu0 0.0
          %1296 = vmatpush1.msra.mxu0 0.0
          %1297 = vmatprep.subr.mxu0 0.0
          %1298 = vmatpush1.msra.mxu0 0.0
          %1299 = vmatprep.subr.mxu0 0.0
          %1300 = vmatpush1.msra.mxu0 0.0
          %1301 = vmatprep.subr.mxu0 0.0
          %1302 = vmatpush1.msra.mxu0 0.0
          %1303 = vmatprep.subr.mxu0 0.0
          %1304 = vmatpush1.msra.mxu0 0.0
          %1305 = vmatprep.subr.mxu0 0.0
          %1306 = vmatpush1.msra.mxu0 0.0
          %1307 = vmatprep.subr.mxu0 0.0
          %1308 = vmatpush1.msra.mxu0 0.0
          %1309 = vmatprep.subr.mxu0 0.0
          %1310 = vmatpush1.msra.mxu0 0.0
          %1311 = vmatprep.subr.mxu0 0.0
          %1312 = vmatpush1.msra.mxu0 0.0
          %1313 = vmatprep.subr.mxu0 0.0
          %1314 = vmatpush1.msra.mxu0 0.0
          %1315 = vmatprep.subr.mxu0 0.0
          %1316 = vmatpush1.msra.mxu0 0.0
          %1317 = vmatprep.subr.mxu0 0.0
          %1318 = vmatpush1.msra.mxu0 0.0
          %1319 = vmatprep.subr.mxu0 0.0
          %1320 = vmatpush1.msra.mxu0 0.0
          %1321 = vmatprep.subr.mxu0 0.0
          %1322 = vmatpush1.msra.mxu0 0.0
          %1323 = vmatprep.subr.mxu0 0.0
          %1324 = vmatpush1.msra.mxu0 0.0
          %1325 = vmatprep.subr.mxu0 0.0
          %1326 = vmatpush1.msra.mxu0 0.0
          %1327 = vmatprep.subr.mxu0 0.0
          %1328 = vmatpush1.msra.mxu0 0.0
          %1329 = vmatprep.subr.mxu0 0.0
          %1330 = vmatpush1.msra.mxu0 0.0
          %1331 = vmatprep.subr.mxu0 0.0
          %1332 = vmatpush1.msra.mxu0 0.0
          %1333 = vmatprep.mubr.f32.mxu0 0.0
          %1334 = vmatmul.mubr.f32.gmra.mrb[0].mxu0 %v1263
          %v1335 = vpop.f32.mrb[0].mxu0
          %v1336 = vadd.f32 0.0, %v1335
          %v1337 = vpop.f32.mrb[0].mxu0
          %1338 = vdwg.mxu0
          %v1340 = vsel %vm1261, %v1257, 0
          %v1343 = vsel %vm1265, %v1258, 0
          %1345 = vmatprep.subr.mxu0 0.0
          %1346 = vmatpush1.msra.mxu0 %v1343
          %1347 = vmatprep.subr.mxu0 0.0
          %1348 = vmatpush1.msra.mxu0 0.0
          %1349 = vmatprep.subr.mxu0 0.0
          %1350 = vmatpush1.msra.mxu0 0.0
          %1351 = vmatprep.subr.mxu0 0.0
          %1352 = vmatpush1.msra.mxu0 0.0
          %1353 = vmatprep.subr.mxu0 0.0
          %1354 = vmatpush1.msra.mxu0 0.0
          %1355 = vmatprep.subr.mxu0 0.0
          %1356 = vmatpush1.msra.mxu0 0.0
          %1357 = vmatprep.subr.mxu0 0.0
          %1358 = vmatpush1.msra.mxu0 0.0
          %1359 = vmatprep.subr.mxu0 0.0
          %1360 = vmatpush1.msra.mxu0 0.0
          %1361 = vmatprep.subr.mxu0 0.0
          %1362 = vmatpush1.msra.mxu0 0.0
          %1363 = vmatprep.subr.mxu0 0.0
          %1364 = vmatpush1.msra.mxu0 0.0
          %1365 = vmatprep.subr.mxu0 0.0
          %1366 = vmatpush1.msra.mxu0 0.0
          %1367 = vmatprep.subr.mxu0 0.0
          %1368 = vmatpush1.msra.mxu0 0.0
          %1369 = vmatprep.subr.mxu0 0.0
          %1370 = vmatpush1.msra.mxu0 0.0
          %1371 = vmatprep.subr.mxu0 0.0
          %1372 = vmatpush1.msra.mxu0 0.0
          %1373 = vmatprep.subr.mxu0 0.0
          %1374 = vmatpush1.msra.mxu0 0.0
          %1375 = vmatprep.subr.mxu0 0.0
          %1376 = vmatpush1.msra.mxu0 0.0
          %1377 = vmatprep.subr.mxu0 0.0
          %1378 = vmatpush1.msra.mxu0 0.0
          %1379 = vmatprep.subr.mxu0 0.0
          %1380 = vmatpush1.msra.mxu0 0.0
          %1381 = vmatprep.subr.mxu0 0.0
          %1382 = vmatpush1.msra.mxu0 0.0
          %1383 = vmatprep.subr.mxu0 0.0
          %1384 = vmatpush1.msra.mxu0 0.0
          %1385 = vmatprep.subr.mxu0 0.0
          %1386 = vmatpush1.msra.mxu0 0.0
          %1387 = vmatprep.subr.mxu0 0.0
          %1388 = vmatpush1.msra.mxu0 0.0
          %1389 = vmatprep.subr.mxu0 0.0
          %1390 = vmatpush1.msra.mxu0 0.0
          %1391 = vmatprep.subr.mxu0 0.0
          %1392 = vmatpush1.msra.mxu0 0.0
          %1393 = vmatprep.subr.mxu0 0.0
          %1394 = vmatpush1.msra.mxu0 0.0
          %1395 = vmatprep.subr.mxu0 0.0
          %1396 = vmatpush1.msra.mxu0 0.0
          %1397 = vmatprep.subr.mxu0 0.0
          %1398 = vmatpush1.msra.mxu0 0.0
          %1399 = vmatprep.subr.mxu0 0.0
          %1400 = vmatpush1.msra.mxu0 0.0
          %1401 = vmatprep.subr.mxu0 0.0
          %1402 = vmatpush1.msra.mxu0 0.0
          %1403 = vmatprep.subr.mxu0 0.0
          %1404 = vmatpush1.msra.mxu0 0.0
          %1405 = vmatprep.subr.mxu0 0.0
          %1406 = vmatpush1.msra.mxu0 0.0
          %1407 = vmatprep.subr.mxu0 0.0
          %1408 = vmatpush1.msra.mxu0 0.0
          %1409 = vmatprep.mubr.f32.mxu0 0.0
          %1410 = vmatmul.mubr.f32.gmra.mrb[0].mxu0 %v1340
          %v1411 = vpop.f32.mrb[0].mxu0
          %v1412 = vadd.f32 %v1336, %v1411
          %v1413 = vpop.f32.mrb[0].mxu0
          %1414 = vdwg.mxu0
          %v1415 = vld [vmem:[%s7] sm:$0xff]
          %vm1416 = vcmask 64512
          %v1418 = vsel %vm1416, %v1256, 0
          %1420 = vmatprep.subr.mxu0 0.0
          %1421 = vmatpush1.msra.mxu0 %v1415
          %1422 = vmatprep.subr.mxu0 0.0
          %1423 = vmatpush1.msra.mxu0 0.0
          %1424 = vmatprep.subr.mxu0 0.0
          %1425 = vmatpush1.msra.mxu0 0.0
          %1426 = vmatprep.subr.mxu0 0.0
          %1427 = vmatpush1.msra.mxu0 0.0
          %1428 = vmatprep.subr.mxu0 0.0
          %1429 = vmatpush1.msra.mxu0 0.0
          %1430 = vmatprep.subr.mxu0 0.0
          %1431 = vmatpush1.msra.mxu0 0.0
          %1432 = vmatprep.subr.mxu0 0.0
          %1433 = vmatpush1.msra.mxu0 0.0
          %1434 = vmatprep.subr.mxu0 0.0
          %1435 = vmatpush1.msra.mxu0 0.0
          %1436 = vmatprep.subr.mxu0 0.0
          %1437 = vmatpush1.msra.mxu0 0.0
          %1438 = vmatprep.subr.mxu0 0.0
          %1439 = vmatpush1.msra.mxu0 0.0
          %1440 = vmatprep.subr.mxu0 0.0
          %1441 = vmatpush1.msra.mxu0 0.0
          %1442 = vmatprep.subr.mxu0 0.0
          %1443 = vmatpush1.msra.mxu0 0.0
          %1444 = vmatprep.subr.mxu0 0.0
          %1445 = vmatpush1.msra.mxu0 0.0
          %1446 = vmatprep.subr.mxu0 0.0
          %1447 = vmatpush1.msra.mxu0 0.0
          %1448 = vmatprep.subr.mxu0 0.0
          %1449 = vmatpush1.msra.mxu0 0.0
          %1450 = vmatprep.subr.mxu0 0.0
          %1451 = vmatpush1.msra.mxu0 0.0
          %1452 = vmatprep.subr.mxu0 0.0
          %1453 = vmatpush1.msra.mxu0 0.0
          %1454 = vmatprep.subr.mxu0 0.0
          %1455 = vmatpush1.msra.mxu0 0.0
          %1456 = vmatprep.subr.mxu0 0.0
          %1457 = vmatpush1.msra.mxu0 0.0
          %1458 = vmatprep.subr.mxu0 0.0
          %1459 = vmatpush1.msra.mxu0 0.0
          %1460 = vmatprep.subr.mxu0 0.0
          %1461 = vmatpush1.msra.mxu0 0.0
          %1462 = vmatprep.subr.mxu0 0.0
          %1463 = vmatpush1.msra.mxu0 0.0
          %1464 = vmatprep.subr.mxu0 0.0
          %1465 = vmatpush1.msra.mxu0 0.0
          %1466 = vmatprep.subr.mxu0 0.0
          %1467 = vmatpush1.msra.mxu0 0.0
          %1468 = vmatprep.subr.mxu0 0.0
          %1469 = vmatpush1.msra.mxu0 0.0
          %1470 = vmatprep.subr.mxu0 0.0
          %1471 = vmatpush1.msra.mxu0 0.0
          %1472 = vmatprep.subr.mxu0 0.0
          %1473 = vmatpush1.msra.mxu0 0.0
          %1474 = vmatprep.subr.mxu0 0.0
          %1475 = vmatpush1.msra.mxu0 0.0
          %1476 = vmatprep.subr.mxu0 0.0
          %1477 = vmatpush1.msra.mxu0 0.0
          %1478 = vmatprep.subr.mxu0 0.0
          %1479 = vmatpush1.msra.mxu0 0.0
          %1480 = vmatprep.subr.mxu0 0.0
          %1481 = vmatpush1.msra.mxu0 0.0
          %1482 = vmatprep.subr.mxu0 0.0
          %1483 = vmatpush1.msra.mxu0 0.0
          %1484 = vmatprep.mubr.f32.mxu0 0.0
          %1485 = vmatmul.mubr.f32.gmra.mrb[0].mxu0 %v1418
          %v1486 = vpop.f32.mrb[0].mxu0
          %v1487 = vadd.f32 0.0, %v1486
          %v1488 = vpop.f32.mrb[0].mxu0
          %1489 = vdwg.mxu0
          %v1490 = vadd.f32 %v1412, %v1487
          %v1491 = vld [vmem:[%s8] sm:$0x1]
          %v1493 = vlaneseq
          %v1494 = vshrl.u32 %v1493, 7
          %v1495 = vsub.s32 0, %v1494
          %v1496 = vrot.slane %v1491, %v1495
          %v1498 = vadd.f32 %v1490, %v1496
          %vm1499 = vcmask 261120
          %1500 = vst.msk [vmem:[#allocation2] sm:$0xff] %vm1499, %v1498
        $region132: #{tpu_custom_call.1} parent=127 // pred_fallthru
          _
        %v1501 = vld [vmem:[#allocation2] sm:$0xff]
        %v1502 = vlaneseq
        %v1503 = vshrl.u32 %v1502, 7
        %v1504 = vlaneseq
        %v1505 = vand.u32 %v1504, 127
        %vm1506 = vcmp.le.s32.totalorder %v1505, %v1503
        %v1507 = vsel %vm1506, 0.0, -1e+30
        %v1508 = vld [vmem:[%s1062] sm:$0x1]
        %v1509 = vld [vmem:[%s1065] sm:$0x1]
        %vm1510 = vcmask 261120
        %v1511 = vsel %vm1510, %v1501, 0.0
        %1512 = vadd.xlane.f32.xlu0 %v1511
        %v1513 = vpop.xlane.xlu0 %1512
        %v1514 = vrcp.pop 32.0
        %v1515 = vmul.f32 %v1513, %v1514
        %v1516 = vsub.f32 %v1501, %v1515
        %v1517 = vmul.f32 %v1516, %v1516
        %v1518 = vsel %vm1510, %v1517, 0.0
        %1519 = vadd.xlane.f32.xlu0 %v1518
        %v1520 = vpop.xlane.xlu0 %1519
        %v1521 = vmul.f32 %v1520, %v1514
        %v1522 = vadd.f32 %v1521, 1e-05
        %v1523 = vrsqrt.pop %v1522
        %v1524 = vmul.f32 %v1516, %v1523
        %v1526 = vlaneseq
        %v1527 = vshrl.u32 %v1526, 7
        %v1528 = vsub.s32 0, %v1527
        %v1529 = vrot.slane %v1508, %v1528
        %v1531 = vmul.f32 %v1524, %v1529
        %v1533 = vlaneseq
        %v1534 = vshrl.u32 %v1533, 7
        %v1535 = vsub.s32 0, %v1534
        %v1536 = vrot.slane %v1509, %v1535
        %v1538 = vadd.f32 %v1531, %v1536
        %v1539 = vld [vmem:[%s1070] sm:$0xff]
        %v1540 = vld [vmem:[%s1070 + $0x8] sm:$0xff]
        %v1541 = vld [vmem:[%s1070 + $0x10] sm:$0xff]
        %v1542 = vld [vmem:[%s1070 + $0x18] sm:$0xff]
        %v1543 = vld [vmem:[%s1083] sm:$0x1]
        %v1545 = vlaneseq
        %v1546 = vshrl.u32 %v1545, 7
        %v1547 = vsub.s32 0, %v1546
        %v1548 = vrot.slane %v1543, %v1547
        %v1551 = vsel %vm1510, %v1538, 0
        %1553 = vmatprep.subr.mxu0 0.0
        %1554 = vmatpush1.msra.mxu0 %v1539
        %1555 = vmatprep.subr.mxu0 0.0
        %1556 = vmatpush1.msra.mxu0 %v1540
        %1557 = vmatprep.subr.mxu0 0.0
        %1558 = vmatpush1.msra.mxu0 %v1541
        %1559 = vmatprep.subr.mxu0 0.0
        %1560 = vmatpush1.msra.mxu0 %v1542
        %1561 = vmatprep.subr.mxu0 0.0
        %1562 = vmatpush1.msra.mxu0 0.0
        %1563 = vmatprep.subr.mxu0 0.0
        %1564 = vmatpush1.msra.mxu0 0.0
        %1565 = vmatprep.subr.mxu0 0.0
        %1566 = vmatpush1.msra.mxu0 0.0
        %1567 = vmatprep.subr.mxu0 0.0
        %1568 = vmatpush1.msra.mxu0 0.0
        %1569 = vmatprep.subr.mxu0 0.0
        %1570 = vmatpush1.msra.mxu0 0.0
        %1571 = vmatprep.subr.mxu0 0.0
        %1572 = vmatpush1.msra.mxu0 0.0
        %1573 = vmatprep.subr.mxu0 0.0
        %1574 = vmatpush1.msra.mxu0 0.0
        %1575 = vmatprep.subr.mxu0 0.0
        %1576 = vmatpush1.msra.mxu0 0.0
        %1577 = vmatprep.subr.mxu0 0.0
        %1578 = vmatpush1.msra.mxu0 0.0
        %1579 = vmatprep.subr.mxu0 0.0
        %1580 = vmatpush1.msra.mxu0 0.0
        %1581 = vmatprep.subr.mxu0 0.0
        %1582 = vmatpush1.msra.mxu0 0.0
        %1583 = vmatprep.subr.mxu0 0.0
        %1584 = vmatpush1.msra.mxu0 0.0
        %1585 = vmatprep.subr.mxu0 0.0
        %1586 = vmatpush1.msra.mxu0 0.0
        %1587 = vmatprep.subr.mxu0 0.0
        %1588 = vmatpush1.msra.mxu0 0.0
        %1589 = vmatprep.subr.mxu0 0.0
        %1590 = vmatpush1.msra.mxu0 0.0
        %1591 = vmatprep.subr.mxu0 0.0
        %1592 = vmatpush1.msra.mxu0 0.0
        %1593 = vmatprep.subr.mxu0 0.0
        %1594 = vmatpush1.msra.mxu0 0.0
        %1595 = vmatprep.subr.mxu0 0.0
        %1596 = vmatpush1.msra.mxu0 0.0
        %1597 = vmatprep.subr.mxu0 0.0
        %1598 = vmatpush1.msra.mxu0 0.0
        %1599 = vmatprep.subr.mxu0 0.0
        %1600 = vmatpush1.msra.mxu0 0.0
        %1601 = vmatprep.subr.mxu0 0.0
        %1602 = vmatpush1.msra.mxu0 0.0
        %1603 = vmatprep.subr.mxu0 0.0
        %1604 = vmatpush1.msra.mxu0 0.0
        %1605 = vmatprep.subr.mxu0 0.0
        %1606 = vmatpush1.msra.mxu0 0.0
        %1607 = vmatprep.subr.mxu0 0.0
        %1608 = vmatpush1.msra.mxu0 0.0
        %1609 = vmatprep.subr.mxu0 0.0
        %1610 = vmatpush1.msra.mxu0 0.0
        %1611 = vmatprep.subr.mxu0 0.0
        %1612 = vmatpush1.msra.mxu0 0.0
        %1613 = vmatprep.subr.mxu0 0.0
        %1614 = vmatpush1.msra.mxu0 0.0
        %1615 = vmatprep.subr.mxu0 0.0
        %1616 = vmatpush1.msra.mxu0 0.0
        %1617 = vmatprep.mubr.f32.mxu0 0.0
        %1618 = vmatmul.mubr.f32.gmra.mrb[0].mxu0 %v1551
        %v1619 = vpop.f32.mrb[0].mxu0
        %v1620 = vadd.f32 %v1548, %v1619
        %v1621 = vpop.f32.mrb[0].mxu0
        %1622 = vdwg.mxu0
        %v1623 = vld [vmem:[%s1075] sm:$0xff]
        %v1624 = vld [vmem:[%s1075 + $0x8] sm:$0xff]
        %v1625 = vld [vmem:[%s1075 + $0x10] sm:$0xff]
        %v1626 = vld [vmem:[%s1075 + $0x18] sm:$0xff]
        %v1627 = vld [vmem:[%s1086] sm:$0x1]
        %v1629 = vlaneseq
        %v1630 = vshrl.u32 %v1629, 7
        %v1631 = vsub.s32 0, %v1630
        %v1632 = vrot.slane %v1627, %v1631
        %1634 = vmatprep.subr.mxu0 0.0
        %1635 = vmatpush1.msra.mxu0 %v1623
        %1636 = vmatprep.subr.mxu0 0.0
        %1637 = vmatpush1.msra.mxu0 %v1624
        %1638 = vmatprep.subr.mxu0 0.0
        %1639 = vmatpush1.msra.mxu0 %v1625
        %1640 = vmatprep.subr.mxu0 0.0
        %1641 = vmatpush1.msra.mxu0 %v1626
        %1642 = vmatprep.subr.mxu0 0.0
        %1643 = vmatpush1.msra.mxu0 0.0
        %1644 = vmatprep.subr.mxu0 0.0
        %1645 = vmatpush1.msra.mxu0 0.0
        %1646 = vmatprep.subr.mxu0 0.0
        %1647 = vmatpush1.msra.mxu0 0.0
        %1648 = vmatprep.subr.mxu0 0.0
        %1649 = vmatpush1.msra.mxu0 0.0
        %1650 = vmatprep.subr.mxu0 0.0
        %1651 = vmatpush1.msra.mxu0 0.0
        %1652 = vmatprep.subr.mxu0 0.0
        %1653 = vmatpush1.msra.mxu0 0.0
        %1654 = vmatprep.subr.mxu0 0.0
        %1655 = vmatpush1.msra.mxu0 0.0
        %1656 = vmatprep.subr.mxu0 0.0
        %1657 = vmatpush1.msra.mxu0 0.0
        %1658 = vmatprep.subr.mxu0 0.0
        %1659 = vmatpush1.msra.mxu0 0.0
        %1660 = vmatprep.subr.mxu0 0.0
        %1661 = vmatpush1.msra.mxu0 0.0
        %1662 = vmatprep.subr.mxu0 0.0
        %1663 = vmatpush1.msra.mxu0 0.0
        %1664 = vmatprep.subr.mxu0 0.0
        %1665 = vmatpush1.msra.mxu0 0.0
        %1666 = vmatprep.subr.mxu0 0.0
        %1667 = vmatpush1.msra.mxu0 0.0
        %1668 = vmatprep.subr.mxu0 0.0
        %1669 = vmatpush1.msra.mxu0 0.0
        %1670 = vmatprep.subr.mxu0 0.0
        %1671 = vmatpush1.msra.mxu0 0.0
        %1672 = vmatprep.subr.mxu0 0.0
        %1673 = vmatpush1.msra.mxu0 0.0
        %1674 = vmatprep.subr.mxu0 0.0
        %1675 = vmatpush1.msra.mxu0 0.0
        %1676 = vmatprep.subr.mxu0 0.0
        %1677 = vmatpush1.msra.mxu0 0.0
        %1678 = vmatprep.subr.mxu0 0.0
        %1679 = vmatpush1.msra.mxu0 0.0
        %1680 = vmatprep.subr.mxu0 0.0
        %1681 = vmatpush1.msra.mxu0 0.0
        %1682 = vmatprep.subr.mxu0 0.0
        %1683 = vmatpush1.msra.mxu0 0.0
        %1684 = vmatprep.subr.mxu0 0.0
        %1685 = vmatpush1.msra.mxu0 0.0
        %1686 = vmatprep.subr.mxu0 0.0
        %1687 = vmatpush1.msra.mxu0 0.0
        %1688 = vmatprep.subr.mxu0 0.0
        %1689 = vmatpush1.msra.mxu0 0.0
        %1690 = vmatprep.subr.mxu0 0.0
        %1691 = vmatpush1.msra.mxu0 0.0
        %1692 = vmatprep.subr.mxu0 0.0
        %1693 = vmatpush1.msra.mxu0 0.0
        %1694 = vmatprep.subr.mxu0 0.0
        %1695 = vmatpush1.msra.mxu0 0.0
        %1696 = vmatprep.subr.mxu0 0.0
        %1697 = vmatpush1.msra.mxu0 0.0
        %1698 = vmatprep.mubr.f32.mxu0 0.0
        %1699 = vmatmul.mubr.f32.gmra.mrb[0].mxu0 %v1551
        %v1700 = vpop.f32.mrb[0].mxu0
        %v1701 = vadd.f32 %v1632, %v1700
        %v1702 = vpop.f32.mrb[0].mxu0
        %1703 = vdwg.mxu0
        %v1704 = vld [vmem:[%s1080] sm:$0xff]
        %v1705 = vld [vmem:[%s1080 + $0x8] sm:$0xff]
        %v1706 = vld [vmem:[%s1080 + $0x10] sm:$0xff]
        %v1707 = vld [vmem:[%s1080 + $0x18] sm:$0xff]
        %v1708 = vld [vmem:[%s1089] sm:$0x1]
        %v1710 = vlaneseq
        %v1711 = vshrl.u32 %v1710, 7
        %v1712 = vsub.s32 0, %v1711
        %v1713 = vrot.slane %v1708, %v1712
        %1715 = vmatprep.subr.mxu0 0.0
        %1716 = vmatpush1.msra.mxu0 %v1704
        %1717 = vmatprep.subr.mxu0 0.0
        %1718 = vmatpush1.msra.mxu0 %v1705
        %1719 = vmatprep.subr.mxu0 0.0
        %1720 = vmatpush1.msra.mxu0 %v1706
        %1721 = vmatprep.subr.mxu0 0.0
        %1722 = vmatpush1.msra.mxu0 %v1707
        %1723 = vmatprep.subr.mxu0 0.0
        %1724 = vmatpush1.msra.mxu0 0.0
        %1725 = vmatprep.subr.mxu0 0.0
        %1726 = vmatpush1.msra.mxu0 0.0
        %1727 = vmatprep.subr.mxu0 0.0
        %1728 = vmatpush1.msra.mxu0 0.0
        %1729 = vmatprep.subr.mxu0 0.0
        %1730 = vmatpush1.msra.mxu0 0.0
        %1731 = vmatprep.subr.mxu0 0.0
        %1732 = vmatpush1.msra.mxu0 0.0
        %1733 = vmatprep.subr.mxu0 0.0
        %1734 = vmatpush1.msra.mxu0 0.0
        %1735 = vmatprep.subr.mxu0 0.0
        %1736 = vmatpush1.msra.mxu0 0.0
        %1737 = vmatprep.subr.mxu0 0.0
        %1738 = vmatpush1.msra.mxu0 0.0
        %1739 = vmatprep.subr.mxu0 0.0
        %1740 = vmatpush1.msra.mxu0 0.0
        %1741 = vmatprep.subr.mxu0 0.0
        %1742 = vmatpush1.msra.mxu0 0.0
        %1743 = vmatprep.subr.mxu0 0.0
        %1744 = vmatpush1.msra.mxu0 0.0
        %1745 = vmatprep.subr.mxu0 0.0
        %1746 = vmatpush1.msra.mxu0 0.0
        %1747 = vmatprep.subr.mxu0 0.0
        %1748 = vmatpush1.msra.mxu0 0.0
        %1749 = vmatprep.subr.mxu0 0.0
        %1750 = vmatpush1.msra.mxu0 0.0
        %1751 = vmatprep.subr.mxu0 0.0
        %1752 = vmatpush1.msra.mxu0 0.0
        %1753 = vmatprep.subr.mxu0 0.0
        %1754 = vmatpush1.msra.mxu0 0.0
        %1755 = vmatprep.subr.mxu0 0.0
        %1756 = vmatpush1.msra.mxu0 0.0
        %1757 = vmatprep.subr.mxu0 0.0
        %1758 = vmatpush1.msra.mxu0 0.0
        %1759 = vmatprep.subr.mxu0 0.0
        %1760 = vmatpush1.msra.mxu0 0.0
        %1761 = vmatprep.subr.mxu0 0.0
        %1762 = vmatpush1.msra.mxu0 0.0
        %1763 = vmatprep.subr.mxu0 0.0
        %1764 = vmatpush1.msra.mxu0 0.0
        %1765 = vmatprep.subr.mxu0 0.0
        %1766 = vmatpush1.msra.mxu0 0.0
        %1767 = vmatprep.subr.mxu0 0.0
        %1768 = vmatpush1.msra.mxu0 0.0
        %1769 = vmatprep.subr.mxu0 0.0
        %1770 = vmatpush1.msra.mxu0 0.0
        %1771 = vmatprep.subr.mxu0 0.0
        %1772 = vmatpush1.msra.mxu0 0.0
        %1773 = vmatprep.subr.mxu0 0.0
        %1774 = vmatpush1.msra.mxu0 0.0
        %1775 = vmatprep.subr.mxu0 0.0
        %1776 = vmatpush1.msra.mxu0 0.0
        %1777 = vmatprep.subr.mxu0 0.0
        %1778 = vmatpush1.msra.mxu0 0.0
        %1779 = vmatprep.mubr.f32.mxu0 0.0
        %1780 = vmatmul.mubr.f32.gmra.mrb[0].mxu0 %v1551
        %v1781 = vpop.f32.mrb[0].mxu0
        %v1782 = vadd.f32 %v1713, %v1781
        %v1783 = vpop.f32.mrb[0].mxu0
        %1784 = vdwg.mxu0
        %1786 = vrot.lane.b32.xlu0 %v1620, 120
        %v1787 = vpop.permute.xlu0 %1786
        %1789 = vrot.lane.b32.xlu0 %v1620, 112
        %v1790 = vpop.permute.xlu0 %1789
        %1792 = vrot.lane.b32.xlu0 %v1620, 104
        %v1793 = vpop.permute.xlu0 %1792
        %v1795 = vcombine.low %v1620, %v1790
        %v1796 = vcombine.high %v1620, %v1790
        %v1798 = vunpack.c.l.s4 1983009808
        %v1799 = vunpack.c.0.s8 %v1798
        %v1800 = vlaneseq
        %v1801 = vshrl.u32 %v1800, 7
        %v1802 = vsub.s32 %v1799, %v1801
        %v1803 = vrot.slane %v1795, %v1802
        %v1805 = vunpack.c.l.s4 1983009808
        %v1806 = vunpack.c.0.s8 %v1805
        %v1807 = vlaneseq
        %v1808 = vshrl.u32 %v1807, 7
        %v1809 = vsub.s32 %v1806, %v1808
        %v1810 = vrot.slane %v1796, %v1809
        %v1811 = vcombine.low %v1787, %v1793
        %v1812 = vcombine.high %v1787, %v1793
        %v1814 = vunpack.c.l.s4 1983009808
        %v1815 = vunpack.c.0.s8 %v1814
        %v1816 = vlaneseq
        %v1817 = vshrl.u32 %v1816, 7
        %v1818 = vsub.s32 %v1815, %v1817
        %v1819 = vrot.slane %v1811, %v1818
        %v1821 = vunpack.c.l.s4 1983009808
        %v1822 = vunpack.c.0.s8 %v1821
        %v1823 = vlaneseq
        %v1824 = vshrl.u32 %v1823, 7
        %v1825 = vsub.s32 %v1822, %v1824
        %v1826 = vrot.slane %v1812, %v1825
        %v1827 = vcombine.low %v1803, %v1819
        %v1828 = vcombine.high %v1803, %v1819
        %v1830 = vunpack.c.l.s4 1934713408
        %v1831 = vunpack.c.0.s8 %v1830
        %v1832 = vlaneseq
        %v1833 = vshrl.u32 %v1832, 7
        %v1834 = vsub.s32 %v1831, %v1833
        %v1835 = vrot.slane %v1827, %v1834
        %v1837 = vunpack.c.l.s4 1934713408
        %v1838 = vunpack.c.0.s8 %v1837
        %v1839 = vlaneseq
        %v1840 = vshrl.u32 %v1839, 7
        %v1841 = vsub.s32 %v1838, %v1840
        %v1842 = vrot.slane %v1828, %v1841
        %v1843 = vcombine.low %v1810, %v1826
        %v1844 = vcombine.high %v1810, %v1826
        %v1846 = vunpack.c.l.s4 1934713408
        %v1847 = vunpack.c.0.s8 %v1846
        %v1848 = vlaneseq
        %v1849 = vshrl.u32 %v1848, 7
        %v1850 = vsub.s32 %v1847, %v1849
        %v1851 = vrot.slane %v1843, %v1850
        %v1853 = vunpack.c.l.s4 1934713408
        %v1854 = vunpack.c.0.s8 %v1853
        %v1855 = vlaneseq
        %v1856 = vshrl.u32 %v1855, 7
        %v1857 = vsub.s32 %v1854, %v1856
        %v1858 = vrot.slane %v1844, %v1857
        %v1859 = vcombine.high %v1835, 0.0
        %v1860 = vcombine.high %v1842, 0.0
        %v1861 = vcombine.high %v1851, 0.0
        %v1862 = vcombine.high %v1858, 0.0
        %v1863 = vcombine.low %v1835, %v1842
        %v1865 = vunpack.c.l.s4 1983009808
        %v1866 = vunpack.c.0.s8 %v1865
        %v1867 = vlaneseq
        %v1868 = vshrl.u32 %v1867, 7
        %v1869 = vsub.s32 %v1866, %v1868
        %v1870 = vrot.slane %v1863, %v1869
        %v1871 = vcombine.low %v1859, %v1860
        %v1873 = vunpack.c.l.s4 1983009808
        %v1874 = vunpack.c.0.s8 %v1873
        %v1875 = vlaneseq
        %v1876 = vshrl.u32 %v1875, 7
        %v1877 = vsub.s32 %v1874, %v1876
        %v1878 = vrot.slane %v1871, %v1877
        %v1879 = vcombine.low %v1851, %v1858
        %v1881 = vunpack.c.l.s4 1983009808
        %v1882 = vunpack.c.0.s8 %v1881
        %v1883 = vlaneseq
        %v1884 = vshrl.u32 %v1883, 7
        %v1885 = vsub.s32 %v1882, %v1884
        %v1886 = vrot.slane %v1879, %v1885
        %v1887 = vcombine.low %v1861, %v1862
        %v1889 = vunpack.c.l.s4 1983009808
        %v1890 = vunpack.c.0.s8 %v1889
        %v1891 = vlaneseq
        %v1892 = vshrl.u32 %v1891, 7
        %v1893 = vsub.s32 %v1890, %v1892
        %v1894 = vrot.slane %v1887, %v1893
        %v1895 = vcombine.low %v1870, %v1878
        %v1896 = vcombine.high %v1870, %v1878
        %v1898 = vunpack.c.l.s4 1934713408
        %v1899 = vunpack.c.0.s8 %v1898
        %v1900 = vlaneseq
        %v1901 = vshrl.u32 %v1900, 7
        %v1902 = vsub.s32 %v1899, %v1901
        %v1903 = vrot.slane %v1895, %v1902
        %v1905 = vunpack.c.l.s4 1934713408
        %v1906 = vunpack.c.0.s8 %v1905
        %v1907 = vlaneseq
        %v1908 = vshrl.u32 %v1907, 7
        %v1909 = vsub.s32 %v1906, %v1908
        %v1910 = vrot.slane %v1896, %v1909
        %v1911 = vcombine.low %v1886, %v1894
        %v1912 = vcombine.high %v1886, %v1894
        %v1914 = vunpack.c.l.s4 1934713408
        %v1915 = vunpack.c.0.s8 %v1914
        %v1916 = vlaneseq
        %v1917 = vshrl.u32 %v1916, 7
        %v1918 = vsub.s32 %v1915, %v1917
        %v1919 = vrot.slane %v1911, %v1918
        %v1921 = vunpack.c.l.s4 1934713408
        %v1922 = vunpack.c.0.s8 %v1921
        %v1923 = vlaneseq
        %v1924 = vshrl.u32 %v1923, 7
        %v1925 = vsub.s32 %v1922, %v1924
        %v1926 = vrot.slane %v1912, %v1925
        %v1927 = vcombine.low %v1903, %v1919
        %v1928 = vcombine.high %v1903, %v1919
        %v1929 = vcombine.low %v1910, %v1926
        %v1930 = vcombine.high %v1910, %v1926
        %1932 = vrot.lane.b32.xlu0 %v1701, 120
        %v1933 = vpop.permute.xlu0 %1932
        %1935 = vrot.lane.b32.xlu0 %v1701, 112
        %v1936 = vpop.permute.xlu0 %1935
        %1938 = vrot.lane.b32.xlu0 %v1701, 104
        %v1939 = vpop.permute.xlu0 %1938
        %v1941 = vcombine.low %v1701, %v1936
        %v1942 = vcombine.high %v1701, %v1936
        %v1944 = vunpack.c.l.s4 1983009808
        %v1945 = vunpack.c.0.s8 %v1944
        %v1946 = vlaneseq
        %v1947 = vshrl.u32 %v1946, 7
        %v1948 = vsub.s32 %v1945, %v1947
        %v1949 = vrot.slane %v1941, %v1948
        %v1951 = vunpack.c.l.s4 1983009808
        %v1952 = vunpack.c.0.s8 %v1951
        %v1953 = vlaneseq
        %v1954 = vshrl.u32 %v1953, 7
        %v1955 = vsub.s32 %v1952, %v1954
        %v1956 = vrot.slane %v1942, %v1955
        %v1957 = vcombine.low %v1933, %v1939
        %v1958 = vcombine.high %v1933, %v1939
        %v1960 = vunpack.c.l.s4 1983009808
        %v1961 = vunpack.c.0.s8 %v1960
        %v1962 = vlaneseq
        %v1963 = vshrl.u32 %v1962, 7
        %v1964 = vsub.s32 %v1961, %v1963
        %v1965 = vrot.slane %v1957, %v1964
        %v1967 = vunpack.c.l.s4 1983009808
        %v1968 = vunpack.c.0.s8 %v1967
        %v1969 = vlaneseq
        %v1970 = vshrl.u32 %v1969, 7
        %v1971 = vsub.s32 %v1968, %v1970
        %v1972 = vrot.slane %v1958, %v1971
        %v1973 = vcombine.low %v1949, %v1965
        %v1974 = vcombine.high %v1949, %v1965
        %v1976 = vunpack.c.l.s4 1934713408
        %v1977 = vunpack.c.0.s8 %v1976
        %v1978 = vlaneseq
        %v1979 = vshrl.u32 %v1978, 7
        %v1980 = vsub.s32 %v1977, %v1979
        %v1981 = vrot.slane %v1973, %v1980
        %v1983 = vunpack.c.l.s4 1934713408
        %v1984 = vunpack.c.0.s8 %v1983
        %v1985 = vlaneseq
        %v1986 = vshrl.u32 %v1985, 7
        %v1987 = vsub.s32 %v1984, %v1986
        %v1988 = vrot.slane %v1974, %v1987
        %v1989 = vcombine.low %v1956, %v1972
        %v1990 = vcombine.high %v1956, %v1972
        %v1992 = vunpack.c.l.s4 1934713408
        %v1993 = vunpack.c.0.s8 %v1992
        %v1994 = vlaneseq
        %v1995 = vshrl.u32 %v1994, 7
        %v1996 = vsub.s32 %v1993, %v1995
        %v1997 = vrot.slane %v1989, %v1996
        %v1999 = vunpack.c.l.s4 1934713408
        %v2000 = vunpack.c.0.s8 %v1999
        %v2001 = vlaneseq
        %v2002 = vshrl.u32 %v2001, 7
        %v2003 = vsub.s32 %v2000, %v2002
        %v2004 = vrot.slane %v1990, %v2003
        %v2005 = vcombine.high %v1981, 0.0
        %v2006 = vcombine.high %v1988, 0.0
        %v2007 = vcombine.high %v1997, 0.0
        %v2008 = vcombine.high %v2004, 0.0
        %v2009 = vcombine.low %v1981, %v1988
        %v2011 = vunpack.c.l.s4 1983009808
        %v2012 = vunpack.c.0.s8 %v2011
        %v2013 = vlaneseq
        %v2014 = vshrl.u32 %v2013, 7
        %v2015 = vsub.s32 %v2012, %v2014
        %v2016 = vrot.slane %v2009, %v2015
        %v2017 = vcombine.low %v2005, %v2006
        %v2019 = vunpack.c.l.s4 1983009808
        %v2020 = vunpack.c.0.s8 %v2019
        %v2021 = vlaneseq
        %v2022 = vshrl.u32 %v2021, 7
        %v2023 = vsub.s32 %v2020, %v2022
        %v2024 = vrot.slane %v2017, %v2023
        %v2025 = vcombine.low %v1997, %v2004
        %v2027 = vunpack.c.l.s4 1983009808
        %v2028 = vunpack.c.0.s8 %v2027
        %v2029 = vlaneseq
        %v2030 = vshrl.u32 %v2029, 7
        %v2031 = vsub.s32 %v2028, %v2030
        %v2032 = vrot.slane %v2025, %v2031
        %v2033 = vcombine.low %v2007, %v2008
        %v2035 = vunpack.c.l.s4 1983009808
        %v2036 = vunpack.c.0.s8 %v2035
        %v2037 = vlaneseq
        %v2038 = vshrl.u32 %v2037, 7
        %v2039 = vsub.s32 %v2036, %v2038
        %v2040 = vrot.slane %v2033, %v2039
        %v2041 = vcombine.low %v2016, %v2024
        %v2042 = vcombine.high %v2016, %v2024
        %v2044 = vunpack.c.l.s4 1934713408
        %v2045 = vunpack.c.0.s8 %v2044
        %v2046 = vlaneseq
        %v2047 = vshrl.u32 %v2046, 7
        %v2048 = vsub.s32 %v2045, %v2047
        %v2049 = vrot.slane %v2041, %v2048
        %v2051 = vunpack.c.l.s4 1934713408
        %v2052 = vunpack.c.0.s8 %v2051
        %v2053 = vlaneseq
        %v2054 = vshrl.u32 %v2053, 7
        %v2055 = vsub.s32 %v2052, %v2054
        %v2056 = vrot.slane %v2042, %v2055
        %v2057 = vcombine.low %v2032, %v2040
        %v2058 = vcombine.high %v2032, %v2040
        %v2060 = vunpack.c.l.s4 1934713408
        %v2061 = vunpack.c.0.s8 %v2060
        %v2062 = vlaneseq
        %v2063 = vshrl.u32 %v2062, 7
        %v2064 = vsub.s32 %v2061, %v2063
        %v2065 = vrot.slane %v2057, %v2064
        %v2067 = vunpack.c.l.s4 1934713408
        %v2068 = vunpack.c.0.s8 %v2067
        %v2069 = vlaneseq
        %v2070 = vshrl.u32 %v2069, 7
        %v2071 = vsub.s32 %v2068, %v2070
        %v2072 = vrot.slane %v2058, %v2071
        %v2073 = vcombine.low %v2049, %v2065
        %v2074 = vcombine.high %v2049, %v2065
        %v2075 = vcombine.low %v2056, %v2072
        %v2076 = vcombine.high %v2056, %v2072
        %2078 = vrot.lane.b32.xlu0 %v1782, 120
        %v2079 = vpop.permute.xlu0 %2078
        %2081 = vrot.lane.b32.xlu0 %v1782, 112
        %v2082 = vpop.permute.xlu0 %2081
        %2084 = vrot.lane.b32.xlu0 %v1782, 104
        %v2085 = vpop.permute.xlu0 %2084
        %v2087 = vcombine.low %v1782, %v2082
        %v2088 = vcombine.high %v1782, %v2082
        %v2090 = vunpack.c.l.s4 1983009808
        %v2091 = vunpack.c.0.s8 %v2090
        %v2092 = vlaneseq
        %v2093 = vshrl.u32 %v2092, 7
        %v2094 = vsub.s32 %v2091, %v2093
        %v2095 = vrot.slane %v2087, %v2094
        %v2097 = vunpack.c.l.s4 1983009808
        %v2098 = vunpack.c.0.s8 %v2097
        %v2099 = vlaneseq
        %v2100 = vshrl.u32 %v2099, 7
        %v2101 = vsub.s32 %v2098, %v2100
        %v2102 = vrot.slane %v2088, %v2101
        %v2103 = vcombine.low %v2079, %v2085
        %v2104 = vcombine.high %v2079, %v2085
        %v2106 = vunpack.c.l.s4 1983009808
        %v2107 = vunpack.c.0.s8 %v2106
        %v2108 = vlaneseq
        %v2109 = vshrl.u32 %v2108, 7
        %v2110 = vsub.s32 %v2107, %v2109
        %v2111 = vrot.slane %v2103, %v2110
        %v2113 = vunpack.c.l.s4 1983009808
        %v2114 = vunpack.c.0.s8 %v2113
        %v2115 = vlaneseq
        %v2116 = vshrl.u32 %v2115, 7
        %v2117 = vsub.s32 %v2114, %v2116
        %v2118 = vrot.slane %v2104, %v2117
        %v2119 = vcombine.low %v2095, %v2111
        %v2120 = vcombine.high %v2095, %v2111
        %v2122 = vunpack.c.l.s4 1934713408
        %v2123 = vunpack.c.0.s8 %v2122
        %v2124 = vlaneseq
        %v2125 = vshrl.u32 %v2124, 7
        %v2126 = vsub.s32 %v2123, %v2125
        %v2127 = vrot.slane %v2119, %v2126
        %v2129 = vunpack.c.l.s4 1934713408
        %v2130 = vunpack.c.0.s8 %v2129
        %v2131 = vlaneseq
        %v2132 = vshrl.u32 %v2131, 7
        %v2133 = vsub.s32 %v2130, %v2132
        %v2134 = vrot.slane %v2120, %v2133
        %v2135 = vcombine.low %v2102, %v2118
        %v2136 = vcombine.high %v2102, %v2118
        %v2138 = vunpack.c.l.s4 1934713408
        %v2139 = vunpack.c.0.s8 %v2138
        %v2140 = vlaneseq
        %v2141 = vshrl.u32 %v2140, 7
        %v2142 = vsub.s32 %v2139, %v2141
        %v2143 = vrot.slane %v2135, %v2142
        %v2145 = vunpack.c.l.s4 1934713408
        %v2146 = vunpack.c.0.s8 %v2145
        %v2147 = vlaneseq
        %v2148 = vshrl.u32 %v2147, 7
        %v2149 = vsub.s32 %v2146, %v2148
        %v2150 = vrot.slane %v2136, %v2149
        %v2151 = vcombine.high %v2127, 0.0
        %v2152 = vcombine.high %v2134, 0.0
        %v2153 = vcombine.high %v2143, 0.0
        %v2154 = vcombine.high %v2150, 0.0
        %v2155 = vcombine.low %v2127, %v2134
        %v2157 = vunpack.c.l.s4 1983009808
        %v2158 = vunpack.c.0.s8 %v2157
        %v2159 = vlaneseq
        %v2160 = vshrl.u32 %v2159, 7
        %v2161 = vsub.s32 %v2158, %v2160
        %v2162 = vrot.slane %v2155, %v2161
        %v2163 = vcombine.low %v2151, %v2152
        %v2165 = vunpack.c.l.s4 1983009808
        %v2166 = vunpack.c.0.s8 %v2165
        %v2167 = vlaneseq
        %v2168 = vshrl.u32 %v2167, 7
        %v2169 = vsub.s32 %v2166, %v2168
        %v2170 = vrot.slane %v2163, %v2169
        %v2171 = vcombine.low %v2143, %v2150
        %v2173 = vunpack.c.l.s4 1983009808
        %v2174 = vunpack.c.0.s8 %v2173
        %v2175 = vlaneseq
        %v2176 = vshrl.u32 %v2175, 7
        %v2177 = vsub.s32 %v2174, %v2176
        %v2178 = vrot.slane %v2171, %v2177
        %v2179 = vcombine.low %v2153, %v2154
        %v2181 = vunpack.c.l.s4 1983009808
        %v2182 = vunpack.c.0.s8 %v2181
        %v2183 = vlaneseq
        %v2184 = vshrl.u32 %v2183, 7
        %v2185 = vsub.s32 %v2182, %v2184
        %v2186 = vrot.slane %v2179, %v2185
        %v2187 = vcombine.low %v2162, %v2170
        %v2188 = vcombine.high %v2162, %v2170
        %v2190 = vunpack.c.l.s4 1934713408
        %v2191 = vunpack.c.0.s8 %v2190
        %v2192 = vlaneseq
        %v2193 = vshrl.u32 %v2192, 7
        %v2194 = vsub.s32 %v2191, %v2193
        %v2195 = vrot.slane %v2187, %v2194
        %v2197 = vunpack.c.l.s4 1934713408
        %v2198 = vunpack.c.0.s8 %v2197
        %v2199 = vlaneseq
        %v2200 = vshrl.u32 %v2199, 7
        %v2201 = vsub.s32 %v2198, %v2200
        %v2202 = vrot.slane %v2188, %v2201
        %v2203 = vcombine.low %v2178, %v2186
        %v2204 = vcombine.high %v2178, %v2186
        %v2206 = vunpack.c.l.s4 1934713408
        %v2207 = vunpack.c.0.s8 %v2206
        %v2208 = vlaneseq
        %v2209 = vshrl.u32 %v2208, 7
        %v2210 = vsub.s32 %v2207, %v2209
        %v2211 = vrot.slane %v2203, %v2210
        %v2213 = vunpack.c.l.s4 1934713408
        %v2214 = vunpack.c.0.s8 %v2213
        %v2215 = vlaneseq
        %v2216 = vshrl.u32 %v2215, 7
        %v2217 = vsub.s32 %v2214, %v2216
        %v2218 = vrot.slane %v2204, %v2217
        %v2219 = vcombine.low %v2195, %v2211
        %v2220 = vcombine.high %v2195, %v2211
        %v2221 = vcombine.low %v2202, %v2218
        %v2222 = vcombine.high %v2202, %v2218
        %vm2223 = vcmask 64512
        %v2225 = vsel %vm2223, %v1927, 0
        %v2228 = vsel %vm2223, %v2073, 0
        %2230 = vmatprep.subr.mxu0 0.0
        %2231 = vmatpush1.xpose.msra.mxu0 %v2228
        %2232 = vmatprep.subr.mxu0 0.0
        %2233 = vmatpush1.xpose.msra.mxu0 0.0
        %2234 = vmatprep.subr.mxu0 0.0
        %2235 = vmatpush1.xpose.msra.mxu0 0.0
        %2236 = vmatprep.subr.mxu0 0.0
        %2237 = vmatpush1.xpose.msra.mxu0 0.0
        %2238 = vmatprep.subr.mxu0 0.0
        %2239 = vmatpush1.xpose.msra.mxu0 0.0
        %2240 = vmatprep.subr.mxu0 0.0
        %2241 = vmatpush1.xpose.msra.mxu0 0.0
        %2242 = vmatprep.subr.mxu0 0.0
        %2243 = vmatpush1.xpose.msra.mxu0 0.0
        %2244 = vmatprep.subr.mxu0 0.0
        %2245 = vmatpush1.xpose.msra.mxu0 0.0
        %2246 = vmatprep.subr.mxu0 0.0
        %2247 = vmatpush1.xpose.msra.mxu0 0.0
        %2248 = vmatprep.subr.mxu0 0.0
        %2249 = vmatpush1.xpose.msra.mxu0 0.0
        %2250 = vmatprep.subr.mxu0 0.0
        %2251 = vmatpush1.xpose.msra.mxu0 0.0
        %2252 = vmatprep.subr.mxu0 0.0
        %2253 = vmatpush1.xpose.msra.mxu0 0.0
        %2254 = vmatprep.subr.mxu0 0.0
        %2255 = vmatpush1.xpose.msra.mxu0 0.0
        %2256 = vmatprep.subr.mxu0 0.0
        %2257 = vmatpush1.xpose.msra.mxu0 0.0
        %2258 = vmatprep.subr.mxu0 0.0
        %2259 = vmatpush1.xpose.msra.mxu0 0.0
        %2260 = vmatprep.subr.mxu0 0.0
        %2261 = vmatpush1.xpose.msra.mxu0 0.0
        %2262 = vmatprep.subr.mxu0 0.0
        %2263 = vmatpush1.xpose.msra.mxu0 0.0
        %2264 = vmatprep.subr.mxu0 0.0
        %2265 = vmatpush1.xpose.msra.mxu0 0.0
        %2266 = vmatprep.subr.mxu0 0.0
        %2267 = vmatpush1.xpose.msra.mxu0 0.0
        %2268 = vmatprep.subr.mxu0 0.0
        %2269 = vmatpush1.xpose.msra.mxu0 0.0
        %2270 = vmatprep.subr.mxu0 0.0
        %2271 = vmatpush1.xpose.msra.mxu0 0.0
        %2272 = vmatprep.subr.mxu0 0.0
        %2273 = vmatpush1.xpose.msra.mxu0 0.0
        %2274 = vmatprep.subr.mxu0 0.0
        %2275 = vmatpush1.xpose.msra.mxu0 0.0
        %2276 = vmatprep.subr.mxu0 0.0
        %2277 = vmatpush1.xpose.msra.mxu0 0.0
        %2278 = vmatprep.subr.mxu0 0.0
        %2279 = vmatpush1.xpose.msra.mxu0 0.0
        %2280 = vmatprep.subr.mxu0 0.0
        %2281 = vmatpush1.xpose.msra.mxu0 0.0
        %2282 = vmatprep.subr.mxu0 0.0
        %2283 = vmatpush1.xpose.msra.mxu0 0.0
        %2284 = vmatprep.subr.mxu0 0.0
        %2285 = vmatpush1.xpose.msra.mxu0 0.0
        %2286 = vmatprep.subr.mxu0 0.0
        %2287 = vmatpush1.xpose.msra.mxu0 0.0
        %2288 = vmatprep.subr.mxu0 0.0
        %2289 = vmatpush1.xpose.msra.mxu0 0.0
        %2290 = vmatprep.subr.mxu0 0.0
        %2291 = vmatpush1.xpose.msra.mxu0 0.0
        %2292 = vmatprep.subr.mxu0 0.0
        %2293 = vmatpush1.xpose.msra.mxu0 0.0
        %2294 = vmatprep.mubr.f32.mxu0 0.0
        %2295 = vmatmul.mubr.f32.gmra.mrb[0].mxu0 %v2225
        %v2296 = vpop.f32.mrb[0].mxu0
        %v2297 = vadd.f32 0.0, %v2296
        %v2298 = vpop.f32.mrb[0].mxu0
        %2299 = vdwg.mxu0
        %v2301 = vsel %vm2223, %v1928, 0
        %v2304 = vsel %vm2223, %v2074, 0
        %2306 = vmatprep.subr.mxu0 0.0
        %2307 = vmatpush1.xpose.msra.mxu0 %v2304
        %2308 = vmatprep.subr.mxu0 0.0
        %2309 = vmatpush1.xpose.msra.mxu0 0.0
        %2310 = vmatprep.subr.mxu0 0.0
        %2311 = vmatpush1.xpose.msra.mxu0 0.0
        %2312 = vmatprep.subr.mxu0 0.0
        %2313 = vmatpush1.xpose.msra.mxu0 0.0
        %2314 = vmatprep.subr.mxu0 0.0
        %2315 = vmatpush1.xpose.msra.mxu0 0.0
        %2316 = vmatprep.subr.mxu0 0.0
        %2317 = vmatpush1.xpose.msra.mxu0 0.0
        %2318 = vmatprep.subr.mxu0 0.0
        %2319 = vmatpush1.xpose.msra.mxu0 0.0
        %2320 = vmatprep.subr.mxu0 0.0
        %2321 = vmatpush1.xpose.msra.mxu0 0.0
        %2322 = vmatprep.subr.mxu0 0.0
        %2323 = vmatpush1.xpose.msra.mxu0 0.0
        %2324 = vmatprep.subr.mxu0 0.0
        %2325 = vmatpush1.xpose.msra.mxu0 0.0
        %2326 = vmatprep.subr.mxu0 0.0
        %2327 = vmatpush1.xpose.msra.mxu0 0.0
        %2328 = vmatprep.subr.mxu0 0.0
        %2329 = vmatpush1.xpose.msra.mxu0 0.0
        %2330 = vmatprep.subr.mxu0 0.0
        %2331 = vmatpush1.xpose.msra.mxu0 0.0
        %2332 = vmatprep.subr.mxu0 0.0
        %2333 = vmatpush1.xpose.msra.mxu0 0.0
        %2334 = vmatprep.subr.mxu0 0.0
        %2335 = vmatpush1.xpose.msra.mxu0 0.0
        %2336 = vmatprep.subr.mxu0 0.0
        %2337 = vmatpush1.xpose.msra.mxu0 0.0
        %2338 = vmatprep.subr.mxu0 0.0
        %2339 = vmatpush1.xpose.msra.mxu0 0.0
        %2340 = vmatprep.subr.mxu0 0.0
        %2341 = vmatpush1.xpose.msra.mxu0 0.0
        %2342 = vmatprep.subr.mxu0 0.0
        %2343 = vmatpush1.xpose.msra.mxu0 0.0
        %2344 = vmatprep.subr.mxu0 0.0
        %2345 = vmatpush1.xpose.msra.mxu0 0.0
        %2346 = vmatprep.subr.mxu0 0.0
        %2347 = vmatpush1.xpose.msra.mxu0 0.0
        %2348 = vmatprep.subr.mxu0 0.0
        %2349 = vmatpush1.xpose.msra.mxu0 0.0
        %2350 = vmatprep.subr.mxu0 0.0
        %2351 = vmatpush1.xpose.msra.mxu0 0.0
        %2352 = vmatprep.subr.mxu0 0.0
        %2353 = vmatpush1.xpose.msra.mxu0 0.0
        %2354 = vmatprep.subr.mxu0 0.0
        %2355 = vmatpush1.xpose.msra.mxu0 0.0
        %2356 = vmatprep.subr.mxu0 0.0
        %2357 = vmatpush1.xpose.msra.mxu0 0.0
        %2358 = vmatprep.subr.mxu0 0.0
        %2359 = vmatpush1.xpose.msra.mxu0 0.0
        %2360 = vmatprep.subr.mxu0 0.0
        %2361 = vmatpush1.xpose.msra.mxu0 0.0
        %2362 = vmatprep.subr.mxu0 0.0
        %2363 = vmatpush1.xpose.msra.mxu0 0.0
        %2364 = vmatprep.subr.mxu0 0.0
        %2365 = vmatpush1.xpose.msra.mxu0 0.0
        %2366 = vmatprep.subr.mxu0 0.0
        %2367 = vmatpush1.xpose.msra.mxu0 0.0
        %2368 = vmatprep.subr.mxu0 0.0
        %2369 = vmatpush1.xpose.msra.mxu0 0.0
        %2370 = vmatprep.mubr.f32.mxu0 0.0
        %2371 = vmatmul.mubr.f32.gmra.mrb[0].mxu0 %v2301
        %v2372 = vpop.f32.mrb[0].mxu0
        %v2373 = vadd.f32 0.0, %v2372
        %v2374 = vpop.f32.mrb[0].mxu0
        %2375 = vdwg.mxu0
        %v2377 = vsel %vm2223, %v1929, 0
        %v2380 = vsel %vm2223, %v2075, 0
        %2382 = vmatprep.subr.mxu0 0.0
        %2383 = vmatpush1.xpose.msra.mxu0 %v2380
        %2384 = vmatprep.subr.mxu0 0.0
        %2385 = vmatpush1.xpose.msra.mxu0 0.0
        %2386 = vmatprep.subr.mxu0 0.0
        %2387 = vmatpush1.xpose.msra.mxu0 0.0
        %2388 = vmatprep.subr.mxu0 0.0
        %2389 = vmatpush1.xpose.msra.mxu0 0.0
        %2390 = vmatprep.subr.mxu0 0.0
        %2391 = vmatpush1.xpose.msra.mxu0 0.0
        %2392 = vmatprep.subr.mxu0 0.0
        %2393 = vmatpush1.xpose.msra.mxu0 0.0
        %2394 = vmatprep.subr.mxu0 0.0
        %2395 = vmatpush1.xpose.msra.mxu0 0.0
        %2396 = vmatprep.subr.mxu0 0.0
        %2397 = vmatpush1.xpose.msra.mxu0 0.0
        %2398 = vmatprep.subr.mxu0 0.0
        %2399 = vmatpush1.xpose.msra.mxu0 0.0
        %2400 = vmatprep.subr.mxu0 0.0
        %2401 = vmatpush1.xpose.msra.mxu0 0.0
        %2402 = vmatprep.subr.mxu0 0.0
        %2403 = vmatpush1.xpose.msra.mxu0 0.0
        %2404 = vmatprep.subr.mxu0 0.0
        %2405 = vmatpush1.xpose.msra.mxu0 0.0
        %2406 = vmatprep.subr.mxu0 0.0
        %2407 = vmatpush1.xpose.msra.mxu0 0.0
        %2408 = vmatprep.subr.mxu0 0.0
        %2409 = vmatpush1.xpose.msra.mxu0 0.0
        %2410 = vmatprep.subr.mxu0 0.0
        %2411 = vmatpush1.xpose.msra.mxu0 0.0
        %2412 = vmatprep.subr.mxu0 0.0
        %2413 = vmatpush1.xpose.msra.mxu0 0.0
        %2414 = vmatprep.subr.mxu0 0.0
        %2415 = vmatpush1.xpose.msra.mxu0 0.0
        %2416 = vmatprep.subr.mxu0 0.0
        %2417 = vmatpush1.xpose.msra.mxu0 0.0
        %2418 = vmatprep.subr.mxu0 0.0
        %2419 = vmatpush1.xpose.msra.mxu0 0.0
        %2420 = vmatprep.subr.mxu0 0.0
        %2421 = vmatpush1.xpose.msra.mxu0 0.0
        %2422 = vmatprep.subr.mxu0 0.0
        %2423 = vmatpush1.xpose.msra.mxu0 0.0
        %2424 = vmatprep.subr.mxu0 0.0
        %2425 = vmatpush1.xpose.msra.mxu0 0.0
        %2426 = vmatprep.subr.mxu0 0.0
        %2427 = vmatpush1.xpose.msra.mxu0 0.0
        %2428 = vmatprep.subr.mxu0 0.0
        %2429 = vmatpush1.xpose.msra.mxu0 0.0
        %2430 = vmatprep.subr.mxu0 0.0
        %2431 = vmatpush1.xpose.msra.mxu0 0.0
        %2432 = vmatprep.subr.mxu0 0.0
        %2433 = vmatpush1.xpose.msra.mxu0 0.0
        %2434 = vmatprep.subr.mxu0 0.0
        %2435 = vmatpush1.xpose.msra.mxu0 0.0
        %2436 = vmatprep.subr.mxu0 0.0
        %2437 = vmatpush1.xpose.msra.mxu0 0.0
        %2438 = vmatprep.subr.mxu0 0.0
        %2439 = vmatpush1.xpose.msra.mxu0 0.0
        %2440 = vmatprep.subr.mxu0 0.0
        %2441 = vmatpush1.xpose.msra.mxu0 0.0
        %2442 = vmatprep.subr.mxu0 0.0
        %2443 = vmatpush1.xpose.msra.mxu0 0.0
        %2444 = vmatprep.subr.mxu0 0.0
        %2445 = vmatpush1.xpose.msra.mxu0 0.0
        %2446 = vmatprep.mubr.f32.mxu0 0.0
        %2447 = vmatmul.mubr.f32.gmra.mrb[0].mxu0 %v2377
        %v2448 = vpop.f32.mrb[0].mxu0
        %v2449 = vadd.f32 0.0, %v2448
        %v2450 = vpop.f32.mrb[0].mxu0
        %2451 = vdwg.mxu0
        %v2453 = vsel %vm2223, %v1930, 0
        %v2456 = vsel %vm2223, %v2076, 0
        %2458 = vmatprep.subr.mxu0 0.0
        %2459 = vmatpush1.xpose.msra.mxu0 %v2456
        %2460 = vmatprep.subr.mxu0 0.0
        %2461 = vmatpush1.xpose.msra.mxu0 0.0
        %2462 = vmatprep.subr.mxu0 0.0
        %2463 = vmatpush1.xpose.msra.mxu0 0.0
        %2464 = vmatprep.subr.mxu0 0.0
        %2465 = vmatpush1.xpose.msra.mxu0 0.0
        %2466 = vmatprep.subr.mxu0 0.0
        %2467 = vmatpush1.xpose.msra.mxu0 0.0
        %2468 = vmatprep.subr.mxu0 0.0
        %2469 = vmatpush1.xpose.msra.mxu0 0.0
        %2470 = vmatprep.subr.mxu0 0.0
        %2471 = vmatpush1.xpose.msra.mxu0 0.0
        %2472 = vmatprep.subr.mxu0 0.0
        %2473 = vmatpush1.xpose.msra.mxu0 0.0
        %2474 = vmatprep.subr.mxu0 0.0
        %2475 = vmatpush1.xpose.msra.mxu0 0.0
        %2476 = vmatprep.subr.mxu0 0.0
        %2477 = vmatpush1.xpose.msra.mxu0 0.0
        %2478 = vmatprep.subr.mxu0 0.0
        %2479 = vmatpush1.xpose.msra.mxu0 0.0
        %2480 = vmatprep.subr.mxu0 0.0
        %2481 = vmatpush1.xpose.msra.mxu0 0.0
        %2482 = vmatprep.subr.mxu0 0.0
        %2483 = vmatpush1.xpose.msra.mxu0 0.0
        %2484 = vmatprep.subr.mxu0 0.0
        %2485 = vmatpush1.xpose.msra.mxu0 0.0
        %2486 = vmatprep.subr.mxu0 0.0
        %2487 = vmatpush1.xpose.msra.mxu0 0.0
        %2488 = vmatprep.subr.mxu0 0.0
        %2489 = vmatpush1.xpose.msra.mxu0 0.0
        %2490 = vmatprep.subr.mxu0 0.0
        %2491 = vmatpush1.xpose.msra.mxu0 0.0
        %2492 = vmatprep.subr.mxu0 0.0
        %2493 = vmatpush1.xpose.msra.mxu0 0.0
        %2494 = vmatprep.subr.mxu0 0.0
        %2495 = vmatpush1.xpose.msra.mxu0 0.0
        %2496 = vmatprep.subr.mxu0 0.0
        %2497 = vmatpush1.xpose.msra.mxu0 0.0
        %2498 = vmatprep.subr.mxu0 0.0
        %2499 = vmatpush1.xpose.msra.mxu0 0.0
        %2500 = vmatprep.subr.mxu0 0.0
        %2501 = vmatpush1.xpose.msra.mxu0 0.0
        %2502 = vmatprep.subr.mxu0 0.0
        %2503 = vmatpush1.xpose.msra.mxu0 0.0
        %2504 = vmatprep.subr.mxu0 0.0
        %2505 = vmatpush1.xpose.msra.mxu0 0.0
        %2506 = vmatprep.subr.mxu0 0.0
        %2507 = vmatpush1.xpose.msra.mxu0 0.0
        %2508 = vmatprep.subr.mxu0 0.0
        %2509 = vmatpush1.xpose.msra.mxu0 0.0
        %2510 = vmatprep.subr.mxu0 0.0
        %2511 = vmatpush1.xpose.msra.mxu0 0.0
        %2512 = vmatprep.subr.mxu0 0.0
        %2513 = vmatpush1.xpose.msra.mxu0 0.0
        %2514 = vmatprep.subr.mxu0 0.0
        %2515 = vmatpush1.xpose.msra.mxu0 0.0
        %2516 = vmatprep.subr.mxu0 0.0
        %2517 = vmatpush1.xpose.msra.mxu0 0.0
        %2518 = vmatprep.subr.mxu0 0.0
        %2519 = vmatpush1.xpose.msra.mxu0 0.0
        %2520 = vmatprep.subr.mxu0 0.0
        %2521 = vmatpush1.xpose.msra.mxu0 0.0
        %2522 = vmatprep.mubr.f32.mxu0 0.0
        %2523 = vmatmul.mubr.f32.gmra.mrb[0].mxu0 %v2453
        %v2524 = vpop.f32.mrb[0].mxu0
        %v2525 = vadd.f32 0.0, %v2524
        %v2526 = vpop.f32.mrb[0].mxu0
        %2527 = vdwg.mxu0
        %v2528 = vmul.f32 %v2297, 0.35355338
        %v2529 = vmul.f32 %v2373, 0.35355338
        %v2530 = vmul.f32 %v2449, 0.35355338
        %v2531 = vmul.f32 %v2525, 0.35355338
        %v2532 = vadd.f32 %v2528, %v1507
        %v2533 = vadd.f32 %v2529, %v1507
        %v2534 = vadd.f32 %v2530, %v1507
        %v2535 = vadd.f32 %v2531, %v1507
        %v2536 = vsel %vm2223, %v2532, -inf
        %2537 = vmax.xlane.f32.xlu0 %v2536
        %v2538 = vpop.xlane.xlu0 %2537
        %v2539 = vsel %vm2223, %v2533, -inf
        %2540 = vmax.xlane.f32.xlu0 %v2539
        %v2541 = vpop.xlane.xlu0 %2540
        %v2542 = vsel %vm2223, %v2534, -inf
        %2543 = vmax.xlane.f32.xlu0 %v2542
        %v2544 = vpop.xlane.xlu0 %2543
        %v2545 = vsel %vm2223, %v2535, -inf
        %2546 = vmax.xlane.f32.xlu0 %v2545
        %v2547 = vpop.xlane.xlu0 %2546
        %v2548 = vsub.f32 %v2532, %v2538
        %v2549 = vsub.f32 %v2533, %v2541
        %v2550 = vsub.f32 %v2534, %v2544
        %v2551 = vsub.f32 %v2535, %v2547
        %v2552 = vmul.f32 %v2548, 1.442695
        %v2553 = vpow.pop %v2552
        %v2554 = vmul.f32 %v2549, 1.442695
        %v2555 = vpow.pop %v2554
        %v2556 = vmul.f32 %v2550, 1.442695
        %v2557 = vpow.pop %v2556
        %v2558 = vmul.f32 %v2551, 1.442695
        %v2559 = vpow.pop %v2558
        %v2560 = vsel %vm2223, %v2553, 0.0
        %2561 = vadd.xlane.f32.xlu0 %v2560
        %v2562 = vpop.xlane.xlu0 %2561
        %v2563 = vsel %vm2223, %v2555, 0.0
        %2564 = vadd.xlane.f32.xlu0 %v2563
        %v2565 = vpop.xlane.xlu0 %2564
        %v2566 = vsel %vm2223, %v2557, 0.0
        %2567 = vadd.xlane.f32.xlu0 %v2566
        %v2568 = vpop.xlane.xlu0 %2567
        %v2569 = vsel %vm2223, %v2559, 0.0
        %2570 = vadd.xlane.f32.xlu0 %v2569
        %v2571 = vpop.xlane.xlu0 %2570
        %v2572 = vrcp.pop %v2562
        %v2573 = vrcp.pop %v2565
        %v2574 = vrcp.pop %v2568
        %v2575 = vrcp.pop %v2571
        %v2576 = vmul.f32 %v2553, %v2572
        %v2577 = vmul.f32 %v2555, %v2573
        %v2578 = vmul.f32 %v2557, %v2574
        %v2579 = vmul.f32 %v2559, %v2575
        %v2581 = vsel %vm2223, %v2576, 0
        %2583 = vmatprep.subr.mxu0 0.0
        %2584 = vmatpush1.msra.mxu0 %v2219
        %2585 = vmatprep.subr.mxu0 0.0
        %2586 = vmatpush1.msra.mxu0 0.0
        %2587 = vmatprep.subr.mxu0 0.0
        %2588 = vmatpush1.msra.mxu0 0.0
        %2589 = vmatprep.subr.mxu0 0.0
        %2590 = vmatpush1.msra.mxu0 0.0
        %2591 = vmatprep.subr.mxu0 0.0
        %2592 = vmatpush1.msra.mxu0 0.0
        %2593 = vmatprep.subr.mxu0 0.0
        %2594 = vmatpush1.msra.mxu0 0.0
        %2595 = vmatprep.subr.mxu0 0.0
        %2596 = vmatpush1.msra.mxu0 0.0
        %2597 = vmatprep.subr.mxu0 0.0
        %2598 = vmatpush1.msra.mxu0 0.0
        %2599 = vmatprep.subr.mxu0 0.0
        %2600 = vmatpush1.msra.mxu0 0.0
        %2601 = vmatprep.subr.mxu0 0.0
        %2602 = vmatpush1.msra.mxu0 0.0
        %2603 = vmatprep.subr.mxu0 0.0
        %2604 = vmatpush1.msra.mxu0 0.0
        %2605 = vmatprep.subr.mxu0 0.0
        %2606 = vmatpush1.msra.mxu0 0.0
        %2607 = vmatprep.subr.mxu0 0.0
        %2608 = vmatpush1.msra.mxu0 0.0
        %2609 = vmatprep.subr.mxu0 0.0
        %2610 = vmatpush1.msra.mxu0 0.0
        %2611 = vmatprep.subr.mxu0 0.0
        %2612 = vmatpush1.msra.mxu0 0.0
        %2613 = vmatprep.subr.mxu0 0.0
        %2614 = vmatpush1.msra.mxu0 0.0
        %2615 = vmatprep.subr.mxu0 0.0
        %2616 = vmatpush1.msra.mxu0 0.0
        %2617 = vmatprep.subr.mxu0 0.0
        %2618 = vmatpush1.msra.mxu0 0.0
        %2619 = vmatprep.subr.mxu0 0.0
        %2620 = vmatpush1.msra.mxu0 0.0
        %2621 = vmatprep.subr.mxu0 0.0
        %2622 = vmatpush1.msra.mxu0 0.0
        %2623 = vmatprep.subr.mxu0 0.0
        %2624 = vmatpush1.msra.mxu0 0.0
        %2625 = vmatprep.subr.mxu0 0.0
        %2626 = vmatpush1.msra.mxu0 0.0
        %2627 = vmatprep.subr.mxu0 0.0
        %2628 = vmatpush1.msra.mxu0 0.0
        %2629 = vmatprep.subr.mxu0 0.0
        %2630 = vmatpush1.msra.mxu0 0.0
        %2631 = vmatprep.subr.mxu0 0.0
        %2632 = vmatpush1.msra.mxu0 0.0
        %2633 = vmatprep.subr.mxu0 0.0
        %2634 = vmatpush1.msra.mxu0 0.0
        %2635 = vmatprep.subr.mxu0 0.0
        %2636 = vmatpush1.msra.mxu0 0.0
        %2637 = vmatprep.subr.mxu0 0.0
        %2638 = vmatpush1.msra.mxu0 0.0
        %2639 = vmatprep.subr.mxu0 0.0
        %2640 = vmatpush1.msra.mxu0 0.0
        %2641 = vmatprep.subr.mxu0 0.0
        %2642 = vmatpush1.msra.mxu0 0.0
        %2643 = vmatprep.subr.mxu0 0.0
        %2644 = vmatpush1.msra.mxu0 0.0
        %2645 = vmatprep.subr.mxu0 0.0
        %2646 = vmatpush1.msra.mxu0 0.0
        %2647 = vmatprep.mubr.f32.mxu0 0.0
        %2648 = vmatmul.mubr.f32.gmra.mrb[0].mxu0 %v2581
        %v2649 = vpop.f32.mrb[0].mxu0
        %v2650 = vadd.f32 0.0, %v2649
        %v2651 = vpop.f32.mrb[0].mxu0
        %2652 = vdwg.mxu0
        %v2654 = vsel %vm2223, %v2577, 0
        %2656 = vmatprep.subr.mxu0 0.0
        %2657 = vmatpush1.msra.mxu0 %v2220
        %2658 = vmatprep.subr.mxu0 0.0
        %2659 = vmatpush1.msra.mxu0 0.0
        %2660 = vmatprep.subr.mxu0 0.0
        %2661 = vmatpush1.msra.mxu0 0.0
        %2662 = vmatprep.subr.mxu0 0.0
        %2663 = vmatpush1.msra.mxu0 0.0
        %2664 = vmatprep.subr.mxu0 0.0
        %2665 = vmatpush1.msra.mxu0 0.0
        %2666 = vmatprep.subr.mxu0 0.0
        %2667 = vmatpush1.msra.mxu0 0.0
        %2668 = vmatprep.subr.mxu0 0.0
        %2669 = vmatpush1.msra.mxu0 0.0
        %2670 = vmatprep.subr.mxu0 0.0
        %2671 = vmatpush1.msra.mxu0 0.0
        %2672 = vmatprep.subr.mxu0 0.0
        %2673 = vmatpush1.msra.mxu0 0.0
        %2674 = vmatprep.subr.mxu0 0.0
        %2675 = vmatpush1.msra.mxu0 0.0
        %2676 = vmatprep.subr.mxu0 0.0
        %2677 = vmatpush1.msra.mxu0 0.0
        %2678 = vmatprep.subr.mxu0 0.0
        %2679 = vmatpush1.msra.mxu0 0.0
        %2680 = vmatprep.subr.mxu0 0.0
        %2681 = vmatpush1.msra.mxu0 0.0
        %2682 = vmatprep.subr.mxu0 0.0
        %2683 = vmatpush1.msra.mxu0 0.0
        %2684 = vmatprep.subr.mxu0 0.0
        %2685 = vmatpush1.msra.mxu0 0.0
        %2686 = vmatprep.subr.mxu0 0.0
        %2687 = vmatpush1.msra.mxu0 0.0
        %2688 = vmatprep.subr.mxu0 0.0
        %2689 = vmatpush1.msra.mxu0 0.0
        %2690 = vmatprep.subr.mxu0 0.0
        %2691 = vmatpush1.msra.mxu0 0.0
        %2692 = vmatprep.subr.mxu0 0.0
        %2693 = vmatpush1.msra.mxu0 0.0
        %2694 = vmatprep.subr.mxu0 0.0
        %2695 = vmatpush1.msra.mxu0 0.0
        %2696 = vmatprep.subr.mxu0 0.0
        %2697 = vmatpush1.msra.mxu0 0.0
        %2698 = vmatprep.subr.mxu0 0.0
        %2699 = vmatpush1.msra.mxu0 0.0
        %2700 = vmatprep.subr.mxu0 0.0
        %2701 = vmatpush1.msra.mxu0 0.0
        %2702 = vmatprep.subr.mxu0 0.0
        %2703 = vmatpush1.msra.mxu0 0.0
        %2704 = vmatprep.subr.mxu0 0.0
        %2705 = vmatpush1.msra.mxu0 0.0
        %2706 = vmatprep.subr.mxu0 0.0
        %2707 = vmatpush1.msra.mxu0 0.0
        %2708 = vmatprep.subr.mxu0 0.0
        %2709 = vmatpush1.msra.mxu0 0.0
        %2710 = vmatprep.subr.mxu0 0.0
        %2711 = vmatpush1.msra.mxu0 0.0
        %2712 = vmatprep.subr.mxu0 0.0
        %2713 = vmatpush1.msra.mxu0 0.0
        %2714 = vmatprep.subr.mxu0 0.0
        %2715 = vmatpush1.msra.mxu0 0.0
        %2716 = vmatprep.subr.mxu0 0.0
        %2717 = vmatpush1.msra.mxu0 0.0
        %2718 = vmatprep.subr.mxu0 0.0
        %2719 = vmatpush1.msra.mxu0 0.0
        %2720 = vmatprep.mubr.f32.mxu0 0.0
        %2721 = vmatmul.mubr.f32.gmra.mrb[0].mxu0 %v2654
        %v2722 = vpop.f32.mrb[0].mxu0
        %v2723 = vadd.f32 0.0, %v2722
        %v2724 = vpop.f32.mrb[0].mxu0
        %2725 = vdwg.mxu0
        %v2727 = vsel %vm2223, %v2578, 0
        %2729 = vmatprep.subr.mxu0 0.0
        %2730 = vmatpush1.msra.mxu0 %v2221
        %2731 = vmatprep.subr.mxu0 0.0
        %2732 = vmatpush1.msra.mxu0 0.0
        %2733 = vmatprep.subr.mxu0 0.0
        %2734 = vmatpush1.msra.mxu0 0.0
        %2735 = vmatprep.subr.mxu0 0.0
        %2736 = vmatpush1.msra.mxu0 0.0
        %2737 = vmatprep.subr.mxu0 0.0
        %2738 = vmatpush1.msra.mxu0 0.0
        %2739 = vmatprep.subr.mxu0 0.0
        %2740 = vmatpush1.msra.mxu0 0.0
        %2741 = vmatprep.subr.mxu0 0.0
        %2742 = vmatpush1.msra.mxu0 0.0
        %2743 = vmatprep.subr.mxu0 0.0
        %2744 = vmatpush1.msra.mxu0 0.0
        %2745 = vmatprep.subr.mxu0 0.0
        %2746 = vmatpush1.msra.mxu0 0.0
        %2747 = vmatprep.subr.mxu0 0.0
        %2748 = vmatpush1.msra.mxu0 0.0
        %2749 = vmatprep.subr.mxu0 0.0
        %2750 = vmatpush1.msra.mxu0 0.0
        %2751 = vmatprep.subr.mxu0 0.0
        %2752 = vmatpush1.msra.mxu0 0.0
        %2753 = vmatprep.subr.mxu0 0.0
        %2754 = vmatpush1.msra.mxu0 0.0
        %2755 = vmatprep.subr.mxu0 0.0
        %2756 = vmatpush1.msra.mxu0 0.0
        %2757 = vmatprep.subr.mxu0 0.0
        %2758 = vmatpush1.msra.mxu0 0.0
        %2759 = vmatprep.subr.mxu0 0.0
        %2760 = vmatpush1.msra.mxu0 0.0
        %2761 = vmatprep.subr.mxu0 0.0
        %2762 = vmatpush1.msra.mxu0 0.0
        %2763 = vmatprep.subr.mxu0 0.0
        %2764 = vmatpush1.msra.mxu0 0.0
        %2765 = vmatprep.subr.mxu0 0.0
        %2766 = vmatpush1.msra.mxu0 0.0
        %2767 = vmatprep.subr.mxu0 0.0
        %2768 = vmatpush1.msra.mxu0 0.0
        %2769 = vmatprep.subr.mxu0 0.0
        %2770 = vmatpush1.msra.mxu0 0.0
        %2771 = vmatprep.subr.mxu0 0.0
        %2772 = vmatpush1.msra.mxu0 0.0
        %2773 = vmatprep.subr.mxu0 0.0
        %2774 = vmatpush1.msra.mxu0 0.0
        %2775 = vmatprep.subr.mxu0 0.0
        %2776 = vmatpush1.msra.mxu0 0.0
        %2777 = vmatprep.subr.mxu0 0.0
        %2778 = vmatpush1.msra.mxu0 0.0
        %2779 = vmatprep.subr.mxu0 0.0
        %2780 = vmatpush1.msra.mxu0 0.0
        %2781 = vmatprep.subr.mxu0 0.0
        %2782 = vmatpush1.msra.mxu0 0.0
        %2783 = vmatprep.subr.mxu0 0.0
        %2784 = vmatpush1.msra.mxu0 0.0
        %2785 = vmatprep.subr.mxu0 0.0
        %2786 = vmatpush1.msra.mxu0 0.0
        %2787 = vmatprep.subr.mxu0 0.0
        %2788 = vmatpush1.msra.mxu0 0.0
        %2789 = vmatprep.subr.mxu0 0.0
        %2790 = vmatpush1.msra.mxu0 0.0
        %2791 = vmatprep.subr.mxu0 0.0
        %2792 = vmatpush1.msra.mxu0 0.0
        %2793 = vmatprep.mubr.f32.mxu0 0.0
        %2794 = vmatmul.mubr.f32.gmra.mrb[0].mxu0 %v2727
        %v2795 = vpop.f32.mrb[0].mxu0
        %v2796 = vadd.f32 0.0, %v2795
        %v2797 = vpop.f32.mrb[0].mxu0
        %2798 = vdwg.mxu0
        %v2800 = vsel %vm2223, %v2579, 0
        %2802 = vmatprep.subr.mxu0 0.0
        %2803 = vmatpush1.msra.mxu0 %v2222
        %2804 = vmatprep.subr.mxu0 0.0
        %2805 = vmatpush1.msra.mxu0 0.0
        %2806 = vmatprep.subr.mxu0 0.0
        %2807 = vmatpush1.msra.mxu0 0.0
        %2808 = vmatprep.subr.mxu0 0.0
        %2809 = vmatpush1.msra.mxu0 0.0
        %2810 = vmatprep.subr.mxu0 0.0
        %2811 = vmatpush1.msra.mxu0 0.0
        %2812 = vmatprep.subr.mxu0 0.0
        %2813 = vmatpush1.msra.mxu0 0.0
        %2814 = vmatprep.subr.mxu0 0.0
        %2815 = vmatpush1.msra.mxu0 0.0
        %2816 = vmatprep.subr.mxu0 0.0
        %2817 = vmatpush1.msra.mxu0 0.0
        %2818 = vmatprep.subr.mxu0 0.0
        %2819 = vmatpush1.msra.mxu0 0.0
        %2820 = vmatprep.subr.mxu0 0.0
        %2821 = vmatpush1.msra.mxu0 0.0
        %2822 = vmatprep.subr.mxu0 0.0
        %2823 = vmatpush1.msra.mxu0 0.0
        %2824 = vmatprep.subr.mxu0 0.0
        %2825 = vmatpush1.msra.mxu0 0.0
        %2826 = vmatprep.subr.mxu0 0.0
        %2827 = vmatpush1.msra.mxu0 0.0
        %2828 = vmatprep.subr.mxu0 0.0
        %2829 = vmatpush1.msra.mxu0 0.0
        %2830 = vmatprep.subr.mxu0 0.0
        %2831 = vmatpush1.msra.mxu0 0.0
        %2832 = vmatprep.subr.mxu0 0.0
        %2833 = vmatpush1.msra.mxu0 0.0
        %2834 = vmatprep.subr.mxu0 0.0
        %2835 = vmatpush1.msra.mxu0 0.0
        %2836 = vmatprep.subr.mxu0 0.0
        %2837 = vmatpush1.msra.mxu0 0.0
        %2838 = vmatprep.subr.mxu0 0.0
        %2839 = vmatpush1.msra.mxu0 0.0
        %2840 = vmatprep.subr.mxu0 0.0
        %2841 = vmatpush1.msra.mxu0 0.0
        %2842 = vmatprep.subr.mxu0 0.0
        %2843 = vmatpush1.msra.mxu0 0.0
        %2844 = vmatprep.subr.mxu0 0.0
        %2845 = vmatpush1.msra.mxu0 0.0
        %2846 = vmatprep.subr.mxu0 0.0
        %2847 = vmatpush1.msra.mxu0 0.0
        %2848 = vmatprep.subr.mxu0 0.0
        %2849 = vmatpush1.msra.mxu0 0.0
        %2850 = vmatprep.subr.mxu0 0.0
        %2851 = vmatpush1.msra.mxu0 0.0
        %2852 = vmatprep.subr.mxu0 0.0
        %2853 = vmatpush1.msra.mxu0 0.0
        %2854 = vmatprep.subr.mxu0 0.0
        %2855 = vmatpush1.msra.mxu0 0.0
        %2856 = vmatprep.subr.mxu0 0.0
        %2857 = vmatpush1.msra.mxu0 0.0
        %2858 = vmatprep.subr.mxu0 0.0
        %2859 = vmatpush1.msra.mxu0 0.0
        %2860 = vmatprep.subr.mxu0 0.0
        %2861 = vmatpush1.msra.mxu0 0.0
        %2862 = vmatprep.subr.mxu0 0.0
        %2863 = vmatpush1.msra.mxu0 0.0
        %2864 = vmatprep.subr.mxu0 0.0
        %2865 = vmatpush1.msra.mxu0 0.0
        %2866 = vmatprep.mubr.f32.mxu0 0.0
        %2867 = vmatmul.mubr.f32.gmra.mrb[0].mxu0 %v2800
        %v2868 = vpop.f32.mrb[0].mxu0
        %v2869 = vadd.f32 0.0, %v2868
        %v2870 = vpop.f32.mrb[0].mxu0
        %2871 = vdwg.mxu0
        %v2872 = vld [vmem:[%s1094] sm:$0xff]
        %v2873 = vld [vmem:[%s1094 + $0x8] sm:$0xff]
        %v2874 = vld [vmem:[%s1094 + $0x10] sm:$0xff]
        %v2875 = vld [vmem:[%s1094 + $0x18] sm:$0xff]
        %v2877 = vsel %vm2223, %v2650, 0
        %2879 = vmatprep.subr.mxu0 0.0
        %2880 = vmatpush1.msra.mxu0 %v2872
        %2881 = vmatprep.subr.mxu0 0.0
        %2882 = vmatpush1.msra.mxu0 0.0
        %2883 = vmatprep.subr.mxu0 0.0
        %2884 = vmatpush1.msra.mxu0 0.0
        %2885 = vmatprep.subr.mxu0 0.0
        %2886 = vmatpush1.msra.mxu0 0.0
        %2887 = vmatprep.subr.mxu0 0.0
        %2888 = vmatpush1.msra.mxu0 0.0
        %2889 = vmatprep.subr.mxu0 0.0
        %2890 = vmatpush1.msra.mxu0 0.0
        %2891 = vmatprep.subr.mxu0 0.0
        %2892 = vmatpush1.msra.mxu0 0.0
        %2893 = vmatprep.subr.mxu0 0.0
        %2894 = vmatpush1.msra.mxu0 0.0
        %2895 = vmatprep.subr.mxu0 0.0
        %2896 = vmatpush1.msra.mxu0 0.0
        %2897 = vmatprep.subr.mxu0 0.0
        %2898 = vmatpush1.msra.mxu0 0.0
        %2899 = vmatprep.subr.mxu0 0.0
        %2900 = vmatpush1.msra.mxu0 0.0
        %2901 = vmatprep.subr.mxu0 0.0
        %2902 = vmatpush1.msra.mxu0 0.0
        %2903 = vmatprep.subr.mxu0 0.0
        %2904 = vmatpush1.msra.mxu0 0.0
        %2905 = vmatprep.subr.mxu0 0.0
        %2906 = vmatpush1.msra.mxu0 0.0
        %2907 = vmatprep.subr.mxu0 0.0
        %2908 = vmatpush1.msra.mxu0 0.0
        %2909 = vmatprep.subr.mxu0 0.0
        %2910 = vmatpush1.msra.mxu0 0.0
        %2911 = vmatprep.subr.mxu0 0.0
        %2912 = vmatpush1.msra.mxu0 0.0
        %2913 = vmatprep.subr.mxu0 0.0
        %2914 = vmatpush1.msra.mxu0 0.0
        %2915 = vmatprep.subr.mxu0 0.0
        %2916 = vmatpush1.msra.mxu0 0.0
        %2917 = vmatprep.subr.mxu0 0.0
        %2918 = vmatpush1.msra.mxu0 0.0
        %2919 = vmatprep.subr.mxu0 0.0
        %2920 = vmatpush1.msra.mxu0 0.0
        %2921 = vmatprep.subr.mxu0 0.0
        %2922 = vmatpush1.msra.mxu0 0.0
        %2923 = vmatprep.subr.mxu0 0.0
        %2924 = vmatpush1.msra.mxu0 0.0
        %2925 = vmatprep.subr.mxu0 0.0
        %2926 = vmatpush1.msra.mxu0 0.0
        %2927 = vmatprep.subr.mxu0 0.0
        %2928 = vmatpush1.msra.mxu0 0.0
        %2929 = vmatprep.subr.mxu0 0.0
        %2930 = vmatpush1.msra.mxu0 0.0
        %2931 = vmatprep.subr.mxu0 0.0
        %2932 = vmatpush1.msra.mxu0 0.0
        %2933 = vmatprep.subr.mxu0 0.0
        %2934 = vmatpush1.msra.mxu0 0.0
        %2935 = vmatprep.subr.mxu0 0.0
        %2936 = vmatpush1.msra.mxu0 0.0
        %2937 = vmatprep.subr.mxu0 0.0
        %2938 = vmatpush1.msra.mxu0 0.0
        %2939 = vmatprep.subr.mxu0 0.0
        %2940 = vmatpush1.msra.mxu0 0.0
        %2941 = vmatprep.subr.mxu0 0.0
        %2942 = vmatpush1.msra.mxu0 0.0
        %2943 = vmatprep.mubr.f32.mxu0 0.0
        %2944 = vmatmul.mubr.f32.gmra.mrb[0].mxu0 %v2877
        %v2945 = vpop.f32.mrb[0].mxu0
        %v2946 = vadd.f32 0.0, %v2945
        %v2947 = vpop.f32.mrb[0].mxu0
        %2948 = vdwg.mxu0
        %v2950 = vsel %vm2223, %v2723, 0
        %2952 = vmatprep.subr.mxu0 0.0
        %2953 = vmatpush1.msra.mxu0 %v2873
        %2954 = vmatprep.subr.mxu0 0.0
        %2955 = vmatpush1.msra.mxu0 0.0
        %2956 = vmatprep.subr.mxu0 0.0
        %2957 = vmatpush1.msra.mxu0 0.0
        %2958 = vmatprep.subr.mxu0 0.0
        %2959 = vmatpush1.msra.mxu0 0.0
        %2960 = vmatprep.subr.mxu0 0.0
        %2961 = vmatpush1.msra.mxu0 0.0
        %2962 = vmatprep.subr.mxu0 0.0
        %2963 = vmatpush1.msra.mxu0 0.0
        %2964 = vmatprep.subr.mxu0 0.0
        %2965 = vmatpush1.msra.mxu0 0.0
        %2966 = vmatprep.subr.mxu0 0.0
        %2967 = vmatpush1.msra.mxu0 0.0
        %2968 = vmatprep.subr.mxu0 0.0
        %2969 = vmatpush1.msra.mxu0 0.0
        %2970 = vmatprep.subr.mxu0 0.0
        %2971 = vmatpush1.msra.mxu0 0.0
        %2972 = vmatprep.subr.mxu0 0.0
        %2973 = vmatpush1.msra.mxu0 0.0
        %2974 = vmatprep.subr.mxu0 0.0
        %2975 = vmatpush1.msra.mxu0 0.0
        %2976 = vmatprep.subr.mxu0 0.0
        %2977 = vmatpush1.msra.mxu0 0.0
        %2978 = vmatprep.subr.mxu0 0.0
        %2979 = vmatpush1.msra.mxu0 0.0
        %2980 = vmatprep.subr.mxu0 0.0
        %2981 = vmatpush1.msra.mxu0 0.0
        %2982 = vmatprep.subr.mxu0 0.0
        %2983 = vmatpush1.msra.mxu0 0.0
        %2984 = vmatprep.subr.mxu0 0.0
        %2985 = vmatpush1.msra.mxu0 0.0
        %2986 = vmatprep.subr.mxu0 0.0
        %2987 = vmatpush1.msra.mxu0 0.0
        %2988 = vmatprep.subr.mxu0 0.0
        %2989 = vmatpush1.msra.mxu0 0.0
        %2990 = vmatprep.subr.mxu0 0.0
        %2991 = vmatpush1.msra.mxu0 0.0
        %2992 = vmatprep.subr.mxu0 0.0
        %2993 = vmatpush1.msra.mxu0 0.0
        %2994 = vmatprep.subr.mxu0 0.0
        %2995 = vmatpush1.msra.mxu0 0.0
        %2996 = vmatprep.subr.mxu0 0.0
        %2997 = vmatpush1.msra.mxu0 0.0
        %2998 = vmatprep.subr.mxu0 0.0
        %2999 = vmatpush1.msra.mxu0 0.0
        %3000 = vmatprep.subr.mxu0 0.0
        %3001 = vmatpush1.msra.mxu0 0.0
        %3002 = vmatprep.subr.mxu0 0.0
        %3003 = vmatpush1.msra.mxu0 0.0
        %3004 = vmatprep.subr.mxu0 0.0
        %3005 = vmatpush1.msra.mxu0 0.0
        %3006 = vmatprep.subr.mxu0 0.0
        %3007 = vmatpush1.msra.mxu0 0.0
        %3008 = vmatprep.subr.mxu0 0.0
        %3009 = vmatpush1.msra.mxu0 0.0
        %3010 = vmatprep.subr.mxu0 0.0
        %3011 = vmatpush1.msra.mxu0 0.0
        %3012 = vmatprep.subr.mxu0 0.0
        %3013 = vmatpush1.msra.mxu0 0.0
        %3014 = vmatprep.subr.mxu0 0.0
        %3015 = vmatpush1.msra.mxu0 0.0
        %3016 = vmatprep.mubr.f32.mxu0 0.0
        %3017 = vmatmul.mubr.f32.gmra.mrb[0].mxu0 %v2950
        %v3018 = vpop.f32.mrb[0].mxu0
        %v3019 = vadd.f32 0.0, %v3018
        %v3020 = vpop.f32.mrb[0].mxu0
        %3021 = vdwg.mxu0
        %v3023 = vsel %vm2223, %v2796, 0
        %3025 = vmatprep.subr.mxu0 0.0
        %3026 = vmatpush1.msra.mxu0 %v2874
        %3027 = vmatprep.subr.mxu0 0.0
        %3028 = vmatpush1.msra.mxu0 0.0
        %3029 = vmatprep.subr.mxu0 0.0
        %3030 = vmatpush1.msra.mxu0 0.0
        %3031 = vmatprep.subr.mxu0 0.0
        %3032 = vmatpush1.msra.mxu0 0.0
        %3033 = vmatprep.subr.mxu0 0.0
        %3034 = vmatpush1.msra.mxu0 0.0
        %3035 = vmatprep.subr.mxu0 0.0
        %3036 = vmatpush1.msra.mxu0 0.0
        %3037 = vmatprep.subr.mxu0 0.0
        %3038 = vmatpush1.msra.mxu0 0.0
        %3039 = vmatprep.subr.mxu0 0.0
        %3040 = vmatpush1.msra.mxu0 0.0
        %3041 = vmatprep.subr.mxu0 0.0
        %3042 = vmatpush1.msra.mxu0 0.0
        %3043 = vmatprep.subr.mxu0 0.0
        %3044 = vmatpush1.msra.mxu0 0.0
        %3045 = vmatprep.subr.mxu0 0.0
        %3046 = vmatpush1.msra.mxu0 0.0
        %3047 = vmatprep.subr.mxu0 0.0
        %3048 = vmatpush1.msra.mxu0 0.0
        %3049 = vmatprep.subr.mxu0 0.0
        %3050 = vmatpush1.msra.mxu0 0.0
        %3051 = vmatprep.subr.mxu0 0.0
        %3052 = vmatpush1.msra.mxu0 0.0
        %3053 = vmatprep.subr.mxu0 0.0
        %3054 = vmatpush1.msra.mxu0 0.0
        %3055 = vmatprep.subr.mxu0 0.0
        %3056 = vmatpush1.msra.mxu0 0.0
        %3057 = vmatprep.subr.mxu0 0.0
        %3058 = vmatpush1.msra.mxu0 0.0
        %3059 = vmatprep.subr.mxu0 0.0
        %3060 = vmatpush1.msra.mxu0 0.0
        %3061 = vmatprep.subr.mxu0 0.0
        %3062 = vmatpush1.msra.mxu0 0.0
        %3063 = vmatprep.subr.mxu0 0.0
        %3064 = vmatpush1.msra.mxu0 0.0
        %3065 = vmatprep.subr.mxu0 0.0
        %3066 = vmatpush1.msra.mxu0 0.0
        %3067 = vmatprep.subr.mxu0 0.0
        %3068 = vmatpush1.msra.mxu0 0.0
        %3069 = vmatprep.subr.mxu0 0.0
        %3070 = vmatpush1.msra.mxu0 0.0
        %3071 = vmatprep.subr.mxu0 0.0
        %3072 = vmatpush1.msra.mxu0 0.0
        %3073 = vmatprep.subr.mxu0 0.0
        %3074 = vmatpush1.msra.mxu0 0.0
        %3075 = vmatprep.subr.mxu0 0.0
        %3076 = vmatpush1.msra.mxu0 0.0
        %3077 = vmatprep.subr.mxu0 0.0
        %3078 = vmatpush1.msra.mxu0 0.0
        %3079 = vmatprep.subr.mxu0 0.0
        %3080 = vmatpush1.msra.mxu0 0.0
        %3081 = vmatprep.subr.mxu0 0.0
        %3082 = vmatpush1.msra.mxu0 0.0
        %3083 = vmatprep.subr.mxu0 0.0
        %3084 = vmatpush1.msra.mxu0 0.0
        %3085 = vmatprep.subr.mxu0 0.0
        %3086 = vmatpush1.msra.mxu0 0.0
        %3087 = vmatprep.subr.mxu0 0.0
        %3088 = vmatpush1.msra.mxu0 0.0
        %3089 = vmatprep.mubr.f32.mxu0 0.0
        %3090 = vmatmul.mubr.f32.gmra.mrb[0].mxu0 %v3023
        %v3091 = vpop.f32.mrb[0].mxu0
        %v3092 = vadd.f32 0.0, %v3091
        %v3093 = vpop.f32.mrb[0].mxu0
        %3094 = vdwg.mxu0
        %v3096 = vsel %vm2223, %v2869, 0
        %3098 = vmatprep.subr.mxu0 0.0
        %3099 = vmatpush1.msra.mxu0 %v2875
        %3100 = vmatprep.subr.mxu0 0.0
        %3101 = vmatpush1.msra.mxu0 0.0
        %3102 = vmatprep.subr.mxu0 0.0
        %3103 = vmatpush1.msra.mxu0 0.0
        %3104 = vmatprep.subr.mxu0 0.0
        %3105 = vmatpush1.msra.mxu0 0.0
        %3106 = vmatprep.subr.mxu0 0.0
        %3107 = vmatpush1.msra.mxu0 0.0
        %3108 = vmatprep.subr.mxu0 0.0
        %3109 = vmatpush1.msra.mxu0 0.0
        %3110 = vmatprep.subr.mxu0 0.0
        %3111 = vmatpush1.msra.mxu0 0.0
        %3112 = vmatprep.subr.mxu0 0.0
        %3113 = vmatpush1.msra.mxu0 0.0
        %3114 = vmatprep.subr.mxu0 0.0
        %3115 = vmatpush1.msra.mxu0 0.0
        %3116 = vmatprep.subr.mxu0 0.0
        %3117 = vmatpush1.msra.mxu0 0.0
        %3118 = vmatprep.subr.mxu0 0.0
        %3119 = vmatpush1.msra.mxu0 0.0
        %3120 = vmatprep.subr.mxu0 0.0
        %3121 = vmatpush1.msra.mxu0 0.0
        %3122 = vmatprep.subr.mxu0 0.0
        %3123 = vmatpush1.msra.mxu0 0.0
        %3124 = vmatprep.subr.mxu0 0.0
        %3125 = vmatpush1.msra.mxu0 0.0
        %3126 = vmatprep.subr.mxu0 0.0
        %3127 = vmatpush1.msra.mxu0 0.0
        %3128 = vmatprep.subr.mxu0 0.0
        %3129 = vmatpush1.msra.mxu0 0.0
        %3130 = vmatprep.subr.mxu0 0.0
        %3131 = vmatpush1.msra.mxu0 0.0
        %3132 = vmatprep.subr.mxu0 0.0
        %3133 = vmatpush1.msra.mxu0 0.0
        %3134 = vmatprep.subr.mxu0 0.0
        %3135 = vmatpush1.msra.mxu0 0.0
        %3136 = vmatprep.subr.mxu0 0.0
        %3137 = vmatpush1.msra.mxu0 0.0
        %3138 = vmatprep.subr.mxu0 0.0
        %3139 = vmatpush1.msra.mxu0 0.0
        %3140 = vmatprep.subr.mxu0 0.0
        %3141 = vmatpush1.msra.mxu0 0.0
        %3142 = vmatprep.subr.mxu0 0.0
        %3143 = vmatpush1.msra.mxu0 0.0
        %3144 = vmatprep.subr.mxu0 0.0
        %3145 = vmatpush1.msra.mxu0 0.0
        %3146 = vmatprep.subr.mxu0 0.0
        %3147 = vmatpush1.msra.mxu0 0.0
        %3148 = vmatprep.subr.mxu0 0.0
        %3149 = vmatpush1.msra.mxu0 0.0
        %3150 = vmatprep.subr.mxu0 0.0
        %3151 = vmatpush1.msra.mxu0 0.0
        %3152 = vmatprep.subr.mxu0 0.0
        %3153 = vmatpush1.msra.mxu0 0.0
        %3154 = vmatprep.subr.mxu0 0.0
        %3155 = vmatpush1.msra.mxu0 0.0
        %3156 = vmatprep.subr.mxu0 0.0
        %3157 = vmatpush1.msra.mxu0 0.0
        %3158 = vmatprep.subr.mxu0 0.0
        %3159 = vmatpush1.msra.mxu0 0.0
        %3160 = vmatprep.subr.mxu0 0.0
        %3161 = vmatpush1.msra.mxu0 0.0
        %3162 = vmatprep.mubr.f32.mxu0 0.0
        %3163 = vmatmul.mubr.f32.gmra.mrb[0].mxu0 %v3096
        %v3164 = vpop.f32.mrb[0].mxu0
        %v3165 = vadd.f32 0.0, %v3164
        %v3166 = vpop.f32.mrb[0].mxu0
        %3167 = vdwg.mxu0
        %v3168 = vsel %vm1510, %v2946, 0.0
        %v3169 = vsel %vm1510, %v3019, 0.0
        %v3170 = vadd.f32 %v3168, %v3169
        %v3171 = vsel %vm1510, %v3092, 0.0
        %v3172 = vadd.f32 %v3170, %v3171
        %v3173 = vsel %vm1510, %v3165, 0.0
        %v3174 = vadd.f32 %v3172, %v3173
        %v3175 = vadd.f32 %v1501, %v3174
        %v3176 = vld [vmem:[%s1097] sm:$0x1]
        %v3178 = vlaneseq
        %v3179 = vshrl.u32 %v3178, 7
        %v3180 = vsub.s32 0, %v3179
        %v3181 = vrot.slane %v3176, %v3180
        %v3183 = vadd.f32 %v3175, %v3181
        %v3184 = vld [vmem:[%s1100] sm:$0x1]
        %v3185 = vld [vmem:[%s1103] sm:$0x1]
        %v3186 = vsel %vm1510, %v3183, 0.0
        %3187 = vadd.xlane.f32.xlu0 %v3186
        %v3188 = vpop.xlane.xlu0 %3187
        %v3189 = vmul.f32 %v3188, %v1514
        %v3190 = vsub.f32 %v3183, %v3189
        %v3191 = vmul.f32 %v3190, %v3190
        %v3192 = vsel %vm1510, %v3191, 0.0
        %3193 = vadd.xlane.f32.xlu0 %v3192
        %v3194 = vpop.xlane.xlu0 %3193
        %v3195 = vmul.f32 %v3194, %v1514
        %v3196 = vadd.f32 %v3195, 1e-05
        %v3197 = vrsqrt.pop %v3196
        %v3198 = vmul.f32 %v3190, %v3197
        %v3200 = vlaneseq
        %v3201 = vshrl.u32 %v3200, 7
        %v3202 = vsub.s32 0, %v3201
        %v3203 = vrot.slane %v3184, %v3202
        %v3205 = vmul.f32 %v3198, %v3203
        %v3207 = vlaneseq
        %v3208 = vshrl.u32 %v3207, 7
        %v3209 = vsub.s32 0, %v3208
        %v3210 = vrot.slane %v3185, %v3209
        %v3212 = vadd.f32 %v3205, %v3210
        %v3213 = vld [vmem:[%s1108] sm:$0xff]
        %v3214 = vld [vmem:[%s1108 + $0x8] sm:$0xff]
        %v3215 = vld [vmem:[%s1108 + $0x10] sm:$0xff]
        %v3216 = vld [vmem:[%s1108 + $0x18] sm:$0xff]
        %v3217 = vld [vmem:[%s1111] sm:$0x1]
        %v3219 = vlaneseq
        %v3220 = vshrl.u32 %v3219, 7
        %v3221 = vsub.s32 0, %v3220
        %v3222 = vrot.slane %v3217, %v3221
        %v3225 = vsel %vm1510, %v3212, 0
        %3227 = vmatprep.subr.mxu0 0.0
        %3228 = vmatpush1.msra.mxu0 %v3213
        %3229 = vmatprep.subr.mxu0 0.0
        %3230 = vmatpush1.msra.mxu0 %v3214
        %3231 = vmatprep.subr.mxu0 0.0
        %3232 = vmatpush1.msra.mxu0 %v3215
        %3233 = vmatprep.subr.mxu0 0.0
        %3234 = vmatpush1.msra.mxu0 %v3216
        %3235 = vmatprep.subr.mxu0 0.0
        %3236 = vmatpush1.msra.mxu0 0.0
        %3237 = vmatprep.subr.mxu0 0.0
        %3238 = vmatpush1.msra.mxu0 0.0
        %3239 = vmatprep.subr.mxu0 0.0
        %3240 = vmatpush1.msra.mxu0 0.0
        %3241 = vmatprep.subr.mxu0 0.0
        %3242 = vmatpush1.msra.mxu0 0.0
        %3243 = vmatprep.subr.mxu0 0.0
        %3244 = vmatpush1.msra.mxu0 0.0
        %3245 = vmatprep.subr.mxu0 0.0
        %3246 = vmatpush1.msra.mxu0 0.0
        %3247 = vmatprep.subr.mxu0 0.0
        %3248 = vmatpush1.msra.mxu0 0.0
        %3249 = vmatprep.subr.mxu0 0.0
        %3250 = vmatpush1.msra.mxu0 0.0
        %3251 = vmatprep.subr.mxu0 0.0
        %3252 = vmatpush1.msra.mxu0 0.0
        %3253 = vmatprep.subr.mxu0 0.0
        %3254 = vmatpush1.msra.mxu0 0.0
        %3255 = vmatprep.subr.mxu0 0.0
        %3256 = vmatpush1.msra.mxu0 0.0
        %3257 = vmatprep.subr.mxu0 0.0
        %3258 = vmatpush1.msra.mxu0 0.0
        %3259 = vmatprep.subr.mxu0 0.0
        %3260 = vmatpush1.msra.mxu0 0.0
        %3261 = vmatprep.subr.mxu0 0.0
        %3262 = vmatpush1.msra.mxu0 0.0
        %3263 = vmatprep.subr.mxu0 0.0
        %3264 = vmatpush1.msra.mxu0 0.0
        %3265 = vmatprep.subr.mxu0 0.0
        %3266 = vmatpush1.msra.mxu0 0.0
        %3267 = vmatprep.subr.mxu0 0.0
        %3268 = vmatpush1.msra.mxu0 0.0
        %3269 = vmatprep.subr.mxu0 0.0
        %3270 = vmatpush1.msra.mxu0 0.0
        %3271 = vmatprep.subr.mxu0 0.0
        %3272 = vmatpush1.msra.mxu0 0.0
        %3273 = vmatprep.subr.mxu0 0.0
        %3274 = vmatpush1.msra.mxu0 0.0
        %3275 = vmatprep.subr.mxu0 0.0
        %3276 = vmatpush1.msra.mxu0 0.0
        %3277 = vmatprep.subr.mxu0 0.0
        %3278 = vmatpush1.msra.mxu0 0.0
        %3279 = vmatprep.subr.mxu0 0.0
        %3280 = vmatpush1.msra.mxu0 0.0
        %3281 = vmatprep.subr.mxu0 0.0
        %3282 = vmatpush1.msra.mxu0 0.0
        %3283 = vmatprep.subr.mxu0 0.0
        %3284 = vmatpush1.msra.mxu0 0.0
        %3285 = vmatprep.subr.mxu0 0.0
        %3286 = vmatpush1.msra.mxu0 0.0
        %3287 = vmatprep.subr.mxu0 0.0
        %3288 = vmatpush1.msra.mxu0 0.0
        %3289 = vmatprep.subr.mxu0 0.0
        %3290 = vmatpush1.msra.mxu0 0.0
        %3291 = vmatprep.mubr.f32.mxu0 0.0
        %3292 = vmatmul.mubr.f32.gmra.mrb[0].mxu0 %v3225
        %v3293 = vpop.f32.mrb[0].mxu0
        %v3294 = vadd.f32 %v3222, %v3293
        %v3295 = vpop.f32.mrb[0].mxu0
        %3296 = vdwg.mxu0
        %v3297 = vmul.f32 %v3294, 0.5
        %v3298 = vmul.f32 %v3294, 0.044715
        %v3299 = vmul.f32 %v3298, %v3294
        %v3300 = vmul.f32 %v3299, %v3294
        %v3301 = vadd.f32 %v3294, %v3300
        %v3302 = vmul.f32 %v3301, 0.7978846
        %v3303 = vtanh.pop %v3302
        %v3304 = vadd.f32 %v3303, 1.0
        %v3305 = vmul.f32 %v3297, %v3304
        %v3306 = vld [vmem:[%s1116] sm:$0xff]
        %v3307 = vld [vmem:[%s1116 + $0x8] sm:$0xff]
        %v3308 = vld [vmem:[%s1116 + $0x10] sm:$0xff]
        %v3309 = vld [vmem:[%s1116 + $0x18] sm:$0xff]
        %v3310 = vld [vmem:[%s1116 + $0x20] sm:$0xff]
        %v3311 = vld [vmem:[%s1116 + $0x28] sm:$0xff]
        %v3312 = vld [vmem:[%s1116 + $0x30] sm:$0xff]
        %v3313 = vld [vmem:[%s1116 + $0x38] sm:$0xff]
        %v3314 = vld [vmem:[%s1116 + $0x40] sm:$0xff]
        %v3315 = vld [vmem:[%s1116 + $0x48] sm:$0xff]
        %v3316 = vld [vmem:[%s1116 + $0x50] sm:$0xff]
        %v3317 = vld [vmem:[%s1116 + $0x58] sm:$0xff]
        %v3318 = vld [vmem:[%s1116 + $0x60] sm:$0xff]
        %v3319 = vld [vmem:[%s1116 + $0x68] sm:$0xff]
        %v3320 = vld [vmem:[%s1116 + $0x70] sm:$0xff]
        %v3321 = vld [vmem:[%s1116 + $0x78] sm:$0xff]
        %v3322 = vld [vmem:[%s1119] sm:$0x1]
        %v3324 = vlaneseq
        %v3325 = vshrl.u32 %v3324, 7
        %v3326 = vsub.s32 0, %v3325
        %v3327 = vrot.slane %v3322, %v3326
        %3329 = vmatprep.subr.mxu0 0.0
        %3330 = vmatpush1.msra.mxu0 %v3306
        %3331 = vmatprep.subr.mxu0 0.0
        %3332 = vmatpush1.msra.mxu0 %v3307
        %3333 = vmatprep.subr.mxu0 0.0
        %3334 = vmatpush1.msra.mxu0 %v3308
        %3335 = vmatprep.subr.mxu0 0.0
        %3336 = vmatpush1.msra.mxu0 %v3309
        %3337 = vmatprep.subr.mxu0 0.0
        %3338 = vmatpush1.msra.mxu0 %v3310
        %3339 = vmatprep.subr.mxu0 0.0
        %3340 = vmatpush1.msra.mxu0 %v3311
        %3341 = vmatprep.subr.mxu0 0.0
        %3342 = vmatpush1.msra.mxu0 %v3312
        %3343 = vmatprep.subr.mxu0 0.0
        %3344 = vmatpush1.msra.mxu0 %v3313
        %3345 = vmatprep.subr.mxu0 0.0
        %3346 = vmatpush1.msra.mxu0 %v3314
        %3347 = vmatprep.subr.mxu0 0.0
        %3348 = vmatpush1.msra.mxu0 %v3315
        %3349 = vmatprep.subr.mxu0 0.0
        %3350 = vmatpush1.msra.mxu0 %v3316
        %3351 = vmatprep.subr.mxu0 0.0
        %3352 = vmatpush1.msra.mxu0 %v3317
        %3353 = vmatprep.subr.mxu0 0.0
        %3354 = vmatpush1.msra.mxu0 %v3318
        %3355 = vmatprep.subr.mxu0 0.0
        %3356 = vmatpush1.msra.mxu0 %v3319
        %3357 = vmatprep.subr.mxu0 0.0
        %3358 = vmatpush1.msra.mxu0 %v3320
        %3359 = vmatprep.subr.mxu0 0.0
        %3360 = vmatpush1.msra.mxu0 %v3321
        %3361 = vmatprep.subr.mxu0 0.0
        %3362 = vmatpush1.msra.mxu0 0.0
        %3363 = vmatprep.subr.mxu0 0.0
        %3364 = vmatpush1.msra.mxu0 0.0
        %3365 = vmatprep.subr.mxu0 0.0
        %3366 = vmatpush1.msra.mxu0 0.0
        %3367 = vmatprep.subr.mxu0 0.0
        %3368 = vmatpush1.msra.mxu0 0.0
        %3369 = vmatprep.subr.mxu0 0.0
        %3370 = vmatpush1.msra.mxu0 0.0
        %3371 = vmatprep.subr.mxu0 0.0
        %3372 = vmatpush1.msra.mxu0 0.0
        %3373 = vmatprep.subr.mxu0 0.0
        %3374 = vmatpush1.msra.mxu0 0.0
        %3375 = vmatprep.subr.mxu0 0.0
        %3376 = vmatpush1.msra.mxu0 0.0
        %3377 = vmatprep.subr.mxu0 0.0
        %3378 = vmatpush1.msra.mxu0 0.0
        %3379 = vmatprep.subr.mxu0 0.0
        %3380 = vmatpush1.msra.mxu0 0.0
        %3381 = vmatprep.subr.mxu0 0.0
        %3382 = vmatpush1.msra.mxu0 0.0
        %3383 = vmatprep.subr.mxu0 0.0
        %3384 = vmatpush1.msra.mxu0 0.0
        %3385 = vmatprep.subr.mxu0 0.0
        %3386 = vmatpush1.msra.mxu0 0.0
        %3387 = vmatprep.subr.mxu0 0.0
        %3388 = vmatpush1.msra.mxu0 0.0
        %3389 = vmatprep.subr.mxu0 0.0
        %3390 = vmatpush1.msra.mxu0 0.0
        %3391 = vmatprep.subr.mxu0 0.0
        %3392 = vmatpush1.msra.mxu0 0.0
        %3393 = vmatprep.mubr.f32.mxu0 0.0
        %3394 = vmatmul.mubr.f32.gmra.mrb[0].mxu0 %v3305
        %v3395 = vpop.f32.mrb[0].mxu0
        %v3396 = vadd.f32 %v3327, %v3395
        %v3397 = vpop.f32.mrb[0].mxu0
        %3398 = vdwg.mxu0
        %v3399 = vadd.f32 %v3183, %v3396
        %3400 = vst.msk [vmem:[#allocation2] sm:$0xff] %vm1510, %v3399
        %p3401 = scmp.eq.s32.totalorder %s46, 1
        // Predicated region
        $region133: #{tpu_custom_call.1} parent=127 // pred_check
          %p3402 = pneg %p3401
        $region134: #{tpu_custom_call.1} parent=127 // pred_check_branch
          %3404 = sbr.rel (%p3402) target = $region136
        $region135: #{tpu_custom_call.1} parent=127 // pred_region
          %v3405 = vld [vmem:[%s25] sm:$0x1]
          %v3406 = vld [vmem:[%s26] sm:$0x1]
          %v3407 = vsel %vm1510, %v3399, 0.0
          %3408 = vadd.xlane.f32.xlu0 %v3407
          %v3409 = vpop.xlane.xlu0 %3408
          %v3410 = vmul.f32 %v3409, %v1514
          %v3411 = vsub.f32 %v3399, %v3410
          %v3412 = vmul.f32 %v3411, %v3411
          %v3413 = vsel %vm1510, %v3412, 0.0
          %3414 = vadd.xlane.f32.xlu0 %v3413
          %v3415 = vpop.xlane.xlu0 %3414
          %v3416 = vmul.f32 %v3415, %v1514
          %v3417 = vadd.f32 %v3416, 1e-05
          %v3418 = vrsqrt.pop %v3417
          %v3419 = vmul.f32 %v3411, %v3418
          %v3421 = vlaneseq
          %v3422 = vshrl.u32 %v3421, 7
          %v3423 = vsub.s32 0, %v3422
          %v3424 = vrot.slane %v3405, %v3423
          %v3426 = vmul.f32 %v3419, %v3424
          %v3428 = vlaneseq
          %v3429 = vshrl.u32 %v3428, 7
          %v3430 = vsub.s32 0, %v3429
          %v3431 = vrot.slane %v3406, %v3430
          %v3433 = vadd.f32 %v3426, %v3431
          %3434 = vst.msk [vmem:[%s1047] sm:$0xff] %vm1510, %v3433
        $region136: #{tpu_custom_call.1} parent=127 // pred_fallthru
          _
        %s3435 = sand.u32 %s723, 1
        %s3436 = scalar_lea.sflag [#allocation4], %s3435
        %s3437 = sand.u32 %s723, 1
        %s3438 = smul.addr %s3437, 8
        %s3439 = scalar_lea.vmem [#allocation3], %s3438
        // Predicated region
        $region137: #{tpu_custom_call.1} parent=127 // pred_check
          %p3440 = pneg %p733
        $region138: #{tpu_custom_call.1} parent=127 // pred_check_branch
          %3442 = sbr.rel (%p3440) target = $region140
        $region139: #{tpu_custom_call.1} parent=127 // pred_region
          %s3444 = ssub.s32 128, 128
          %3445 = vsyncadd %s3436, %s3444
          %s3446 = smul.addr %s45, 128
          %s3447 = scalar_lea.hbm %s27, %s3446
          %s3449 = sshll.u32 %s3439, 4
          %s3450 = int_to_ptr.vmem [resolvable:$true] %s3449
          %3452 = dma.vmem_to_hbm [thread:$0]  %s3450, 128, %s3447, %s3436
        $region140: #{tpu_custom_call.1} parent=127 // pred_fallthru
          _
      $region128: #{tpu_custom_call.1} parent=5 // pred_fallthru
        _
      %p3453 = scmp.le.s32.totalorder 2, %s36
      // Predicated region
      $region141: #{tpu_custom_call.1} parent=5 // pred_check
        %p3454 = pneg %p3453
      $region142: #{tpu_custom_call.1} parent=5 // pred_check_branch
        %3456 = sbr.rel (%p3454) target = $region144
      $region143: #{tpu_custom_call.1} parent=5 // pred_region
        %s3457 = ssub.s32 %s36, 2
        // Predicated region
        $region145: #{tpu_custom_call.1} parent=143 // pred_check
          %p3458 = pneg %p739
        $region146: #{tpu_custom_call.1} parent=143 // pred_check_branch
          %3460 = sbr.rel (%p3458) target = $region148
        $region147: #{tpu_custom_call.1} parent=143 // pred_region
          %s3461 = sand.u32 %s724, 1
          %s3462 = scalar_lea.sflag [#allocation4], %s3461
          %s3463 = sand.u32 %s724, 1
          %s3464 = smul.addr %s3463, 8
          %s3465 = scalar_lea.vmem [#allocation3], %s3464
          %3466 = dma.done %s3462, 128
        $region148: #{tpu_custom_call.1} parent=143 // pred_fallthru
          _
      $region144: #{tpu_custom_call.1} parent=5 // pred_fallthru
        _
    $region6: #{tpu_custom_call.1} parent=1 // loop_footer
      %s40 = sadd.s32 1, %s36
    $region7: #{tpu_custom_call.1} parent=1 // loop_footer_branch
      %35 = sbr.rel target = $region3
    $region8: #{tpu_custom_call.1} parent=1 // loop_exit
      _
    %3467 = vsyncpa [#allocation4], 1
    %s3468 = scalar_lea.sflag [#allocation4], 1
    %3469 = vsyncpa %s3468, 1

</llo_original>
